<compile_context>
chip_gen: v7x
topology: tpu7x:2x2x1
jax: 0.10.0
libtpu: 0.0.40
codegen_flags: <defaults>
</compile_context>

<pallas_src>
import functools

import jax
import jax.numpy as jnp
from jax import lax
from jax.experimental import pallas as pl
from jax.experimental.pallas import tpu as pltpu


def _round_up(x, m):
    return (x + m - 1) // m * m


def _spectral_loss_kernel(ph_ref, ker_ref, w_ref, y_ref, out_ref, *,
                          C, KH, KW, ratio, NRp, NCp, mtf_r, mtf_c):
    """One grid step = one batch element, all bands.

    ph_ref : (1, C*ratio*ratio, Hs, Ws)  space-to-depth phase planes of the output
    ker_ref: (C*KH*KW,) in SMEM          flattened MTF taps (scalar reads)
    w_ref  : (1, C, NRp, NCp)            normalized weights at the strided positions
                                         (batch-invariant, re-used across the grid)
    y_ref  : (1, C, NRp, NCp)            subsampled labels at the strided positions
    out_ref: (1, 8, 128)                 per-batch partial loss (scalar splatted)
    """
    rr = ratio * ratio
    part = jnp.zeros((), jnp.float32)
    for c in range(C):
        r0 = int(mtf_r[c])
        c0 = int(mtf_c[c])

        acc = jnp.zeros((NRp, NCp), jnp.float32)
        for p in range(KH):
            pr, dr = (r0 + p) % ratio, (r0 + p) // ratio
            for q in range(KW):
                pc, dc = (c0 + q) % ratio, (c0 + q) // ratio
                tap = ker_ref[c * KH * KW + p * KW + q]          # scalar from SMEM
                # Offset window loaded directly from the Ref (no value-slice copy,
                # no cached full planes -> no vreg spills).
                win = ph_ref[0, c * rr + pr * ratio + pc, dr:dr + NRp, dc:dc + NCp]
                acc = acc + win * tap

        w = w_ref[0, c]
        diff = jnp.abs(acc * w - y_ref[0, c] * w)                # matches |x*W - y*W|
        part = part + jnp.sum(diff)                              # per-band reduce (XLU)

    out_ref[...] = jnp.full(out_ref.shape, part, dtype=jnp.float32)


def spectral_loss(outputs, labels, mtf_kernel, mtf_r, mtf_c, ratio, mask):
    """Pallas-backed SpectralLoss.forward.

    outputs    : (B, C, H, W)  f32   network output
    labels     : (B, C, H, W)  f32
    mtf_kernel : (C, KH, KW)   f32   depthwise MTF filters
    mtf_r/mtf_c: length-C lists of ints (per-band strided offsets)
    mask       : (1, C, Ho, Wo) f32  (already cropped to the conv-output extent)
    """
    B, C, H, W = outputs.shape
    KH, KW = int(mtf_kernel.shape[1]), int(mtf_kernel.shape[2])
    pad = (KH - 1) // 2
    Ho, Wo = H - 2 * pad, W - 2 * pad
    mtf_r = tuple(int(v) for v in mtf_r)
    mtf_c = tuple(int(v) for v in mtf_c)

    # Strided extents; the PyTorch forward implicitly requires the per-band
    # scatter extent to match the `2::ratio` gather extent.
    NR = len(range(2, Ho, ratio))
    NC = len(range(2, Wo, ratio))
    for band in range(C):
        if (len(range(mtf_r[band], Ho, ratio)) != NR
                or len(range(mtf_c[band], Wo, ratio)) != NC):
            raise ValueError("per-band MTF offsets incompatible with label stride")
        # Every strided conv window stays inside the original image -> the zero
        # padding added below never leaks into a real (unpadded) position.
        if (mtf_r[band] + ratio * (NR - 1) + KH - 1 > H - 1
                or mtf_c[band] + ratio * (NC - 1) + KW - 1 > W - 1):
            raise ValueError("MTF offsets push the conv window outside the image")

    if mask.shape[1] != C:
        raise ValueError("mask band count mismatch")
    mask_sub = mask[:, :, 2::ratio, 2::ratio]                             # (1,C,NR,NC)
    if mask_sub.shape[-2] != NR or mask_sub.shape[-1] != NC:
        raise ValueError(
            "mask subsample extent does not match label subsample extent; apply "
            "any net_scope cropping to `mask` before calling spectral_loss")

    # Lane/sublane-dense padded extents.
    NRp = max(_round_up(NR, 8), 8)
    NCp = max(_round_up(NC, 128), 128)
    max_dr = (max(mtf_r) + KH - 1) // ratio
    max_dc = (max(mtf_c) + KW - 1) // ratio
    Hs = max(NRp + max_dr, -(-H // ratio))      # phase-plane extents (incl. halo)
    Ws = max(NCp + max_dc, -(-W // ratio))
    Hp, Wp = Hs * ratio, Ws * ratio

    # ---- glue (plain JAX): subsampled targets / weights ----------------------
    labels_c = labels[:, :, pad:H - pad, pad:W - pad]                     # (B,C,Ho,Wo)
    y_sub = labels_c[:, :, 2::ratio, 2::ratio].astype(jnp.float32)        # (B,C,NR,NC)
    # PyTorch normalizes by the sum over the full scattered (B,C,Ho,Wo) W_,
    # i.e. B * sum(mask_sub).
    w_sub = (mask_sub / (B * jnp.sum(mask_sub))).astype(jnp.float32)      # (1,C,NR,NC)
    y_pad = jnp.pad(y_sub, ((0, 0), (0, 0), (0, NRp - NR), (0, NCp - NC)))
    w_pad = jnp.pad(w_sub, ((0, 0), (0, 0), (0, NRp - NR), (0, NCp - NC)))

    # Space-to-depth: phases[b, c*r*r + pr*r + pc, i, j] = outputs[b, c, r*i+pr, r*j+pc]
    xp = jnp.pad(outputs.astype(jnp.float32),
                 ((0, 0), (0, 0), (0, Hp - H), (0, Wp - W)))
    phases = xp.reshape(B, C, Hs, ratio, Ws, ratio).transpose(0, 1, 3, 5, 2, 4)
    phases = phases.reshape(B, C * ratio * ratio, Hs, Ws)

    ker_flat = mtf_kernel.reshape(C * KH * KW).astype(jnp.float32)

    kernel_fn = functools.partial(
        _spectral_loss_kernel, C=C, KH=KH, KW=KW, ratio=ratio,
        NRp=NRp, NCp=NCp, mtf_r=mtf_r, mtf_c=mtf_c)

    # VMEM budget: double-buffered blocks with (8,128) VMEM tile padding.
    def _tile_bytes(*dims):
        *lead, s, l = dims
        b = 4 * _round_up(s, 8) * _round_up(l, 128)
        for d in lead:
            b *= d
        return b

    est = 2 * (_tile_bytes(C * ratio * ratio, Hs, Ws)
               + 2 * _tile_bytes(C, NRp, NCp)
               + _tile_bytes(8, 128))
    vmem_limit = int(min(64 << 20, max(32 << 20, est + (4 << 20))))
    # TODO(synk): for very large images on v7x (64 MiB VMEM) add a row-chunked
    # grid axis (1-row halo on the phase planes) instead of one whole-image
    # block per grid step.

    partials = pl.pallas_call(
        kernel_fn,
        out_shape=jax.ShapeDtypeStruct((B, 8, 128), jnp.float32),
        grid=(B,),
        in_specs=[
            pl.BlockSpec((1, C * ratio * ratio, Hs, Ws),
                         lambda b: (b, 0, 0, 0)),                       # phase planes
            pl.BlockSpec(memory_space=pltpu.MemorySpace.SMEM),          # MTF taps
            pl.BlockSpec((1, C, NRp, NCp), lambda b: (0, 0, 0, 0)),     # W_ (shared)
            pl.BlockSpec((1, C, NRp, NCp), lambda b: (b, 0, 0, 0)),     # y
        ],
        out_specs=pl.BlockSpec((1, 8, 128), lambda b: (b, 0, 0)),
        compiler_params=pltpu.CompilerParams(
            dimension_semantics=("parallel",),
            vmem_limit_bytes=vmem_limit,
            allow_input_fusion=[True, False, False, False],
        ),
    )(phases, ker_flat, w_pad, y_pad)

    return jnp.sum(partials[:, 0, 0])


def spectral_loss_reference(outputs, labels, mtf_kernel, mtf_r, mtf_c, ratio, mask):
    """Pure-JAX reference matching the PyTorch forward exactly."""
    B, C, H, W = outputs.shape
    KH = mtf_kernel.shape[1]
    pad = (KH - 1) // 2
    x = lax.conv_general_dilated(
        outputs, mtf_kernel[:, None, :, :], window_strides=(1, 1), padding="VALID",
        dimension_numbers=("NCHW", "OIHW", "NCHW"), feature_group_count=C,
        precision=lax.Precision.HIGHEST)
    labels_c = labels[:, :, pad:H - pad, pad:W - pad]
    y = jnp.zeros_like(x)
    w_arr = jnp.zeros_like(x)
    for band in range(C):
        y = y.at[:, band, mtf_r[band]::ratio, mtf_c[band]::ratio].set(
            labels_c[:, band, 2::ratio, 2::ratio])
        w_arr = w_arr.at[:, band, mtf_r[band]::ratio, mtf_c[band]::ratio].set(
            mask[:, band, 2::ratio, 2::ratio])
    w_arr = w_arr / jnp.sum(w_arr)
    return jnp.sum(jnp.abs(x * w_arr - y * w_arr))


if __name__ == "__main__":
    # Small shapes consistent with the module's forward.
    B, C, H, W = 2, 4, 16, 16          # batch, nbands, spatial
    KH = KW = 5                        # MTF kernel size -> pad = 2
    ratio = 4
    net_scope = 0
    pad = (KH - 1) // 2
    mtf_r = [2, 3, 2, 3]               # per-band row offsets
    mtf_c = [3, 2, 3, 2]               # per-band col offsets

    key = jax.random.PRNGKey(0)
    k1, k2 = jax.random.split(key)
    outputs = jax.random.normal(k1, (B, C, H, W), dtype=jnp.float32)
    labels = jax.random.normal(k2, (B, C, H, W), dtype=jnp.float32)

    # Deterministic per-band MTF kernels: normalized Gaussians, band-dep sigma.
    yy, xx = jnp.meshgrid(jnp.arange(KH) - pad, jnp.arange(KW) - pad, indexing="ij")
    bands = []
    for band in range(C):
        sigma = 1.0 + 0.25 * band
        g = jnp.exp(-(yy.astype(jnp.float32) ** 2 + xx.astype(jnp.float32) ** 2)
                    / (2.0 * sigma * sigma))
        bands.append(g / jnp.sum(g))
    mtf_kernel = jnp.stack(bands, axis=0).astype(jnp.float32)   # (C, KH, KW)

    # Default mask (ones), as in the module's __init__ with net_scope = 0.
    mask = jnp.ones((1, C, H - (net_scope + pad) * 2, W - (net_scope + pad) * 2),
                    dtype=jnp.float32)

    loss = spectral_loss(outputs, labels, mtf_kernel, mtf_r, mtf_c, ratio, mask)
    loss = jax.block_until_ready(loss)

    ref = jax.block_until_ready(
        spectral_loss_reference(outputs, labels, mtf_kernel, mtf_r, mtf_c, ratio, mask))

    if not jnp.allclose(loss, ref, rtol=1e-3, atol=1e-5):
        raise AssertionError(f"mismatch: pallas={loss} ref={ref}")
    print("KERNEL_OK")
</pallas_src>

<mosaic_0001>
module attributes {stable_mosaic.version = 11 : i64} {
  func.func @_spectral_loss_kernel(%arg0: i32, %arg1: memref<1x64x9x129xf32, #tpu.memory_space<vmem>>, %arg2: memref<100xf32, #tpu.memory_space<smem>>, %arg3: memref<1x4x8x128xf32, #tpu.memory_space<vmem>>, %arg4: memref<1x4x8x128xf32, #tpu.memory_space<vmem>>, %arg5: memref<1x8x128xf32, #tpu.memory_space<vmem>>) attributes {dimension_semantics = [#tpu.dimension_semantics<parallel>], iteration_bounds = array<i64: 2>, scalar_prefetch = 0 : i64, scratch_operands = 0 : i64, tpu.core_type = #tpu.core_type<tc>, window_params = [{transform_indices = @transform_0, window_bounds = array<i64: 1, 64, 9, 129>}, {transform_indices = @transform_1, window_bounds = array<i64: 100>}, {pipeline_mode = #tpu.pipeline_mode<synchronous>, transform_indices = @transform_2, window_bounds = array<i64: 1, 4, 8, 128>}, {transform_indices = @transform_3, window_bounds = array<i64: 1, 4, 8, 128>}, {transform_indices = @transform_4, window_bounds = array<i64: 1, 8, 128>}]} {
    %cst = arith.constant 0.000000e+00 : f32
    %0 = vector.broadcast %cst : f32 to vector<8x128xf32>
    %c0 = arith.constant 0 : index
    %1 = memref.load %arg2[%c0] : memref<100xf32, #tpu.memory_space<smem>>
    %c0_0 = arith.constant 0 : index
    %c11 = arith.constant 11 : index
    %c0_1 = arith.constant 0 : index
    %c0_2 = arith.constant 0 : index
    %2 = vector.load %arg1[%c0_0, %c11, %c0_1, %c0_2] : memref<1x64x9x129xf32, #tpu.memory_space<vmem>>, vector<1x1x8x128xf32>
    %3 = vector.shape_cast %2 : vector<1x1x8x128xf32> to vector<8x128xf32>
    %4 = vector.broadcast %1 : f32 to vector<8x128xf32>
    %5 = arith.mulf %3, %4 : vector<8x128xf32>
    %6 = arith.addf %0, %5 : vector<8x128xf32>
    %c1 = arith.constant 1 : index
    %7 = memref.load %arg2[%c1] : memref<100xf32, #tpu.memory_space<smem>>
    %c0_3 = arith.constant 0 : index
    %c8 = arith.constant 8 : index
    %c0_4 = arith.constant 0 : index
    %c1_5 = arith.constant 1 : index
    %8 = vector.load %arg1[%c0_3, %c8, %c0_4, %c1_5] : memref<1x64x9x129xf32, #tpu.memory_space<vmem>>, vector<1x1x8x128xf32>
    %9 = vector.shape_cast %8 : vector<1x1x8x128xf32> to vector<8x128xf32>
    %10 = vector.broadcast %7 : f32 to vector<8x128xf32>
    %11 = arith.mulf %9, %10 : vector<8x128xf32>
    %12 = arith.addf %6, %11 : vector<8x128xf32>
    %c2 = arith.constant 2 : index
    %13 = memref.load %arg2[%c2] : memref<100xf32, #tpu.memory_space<smem>>
    %c0_6 = arith.constant 0 : index
    %c9 = arith.constant 9 : index
    %c0_7 = arith.constant 0 : index
    %c1_8 = arith.constant 1 : index
    %14 = vector.load %arg1[%c0_6, %c9, %c0_7, %c1_8] : memref<1x64x9x129xf32, #tpu.memory_space<vmem>>, vector<1x1x8x128xf32>
    %15 = vector.shape_cast %14 : vector<1x1x8x128xf32> to vector<8x128xf32>
    %16 = vector.broadcast %13 : f32 to vector<8x128xf32>
    %17 = arith.mulf %15, %16 : vector<8x128xf32>
    %18 = arith.addf %12, %17 : vector<8x128xf32>
    %c3 = arith.constant 3 : index
    %19 = memref.load %arg2[%c3] : memref<100xf32, #tpu.memory_space<smem>>
    %c0_9 = arith.constant 0 : index
    %c10 = arith.constant 10 : index
    %c0_10 = arith.constant 0 : index
    %c1_11 = arith.constant 1 : index
    %20 = vector.load %arg1[%c0_9, %c10, %c0_10, %c1_11] : memref<1x64x9x129xf32, #tpu.memory_space<vmem>>, vector<1x1x8x128xf32>
    %21 = vector.shape_cast %20 : vector<1x1x8x128xf32> to vector<8x128xf32>
    %22 = vector.broadcast %19 : f32 to vector<8x128xf32>
    %23 = arith.mulf %21, %22 : vector<8x128xf32>
    %24 = arith.addf %18, %23 : vector<8x128xf32>
    %c4 = arith.constant 4 : index
    %25 = memref.load %arg2[%c4] : memref<100xf32, #tpu.memory_space<smem>>
    %c0_12 = arith.constant 0 : index
    %c11_13 = arith.constant 11 : index
    %c0_14 = arith.constant 0 : index
    %c1_15 = arith.constant 1 : index
    %26 = vector.load %arg1[%c0_12, %c11_13, %c0_14, %c1_15] : memref<1x64x9x129xf32, #tpu.memory_space<vmem>>, vector<1x1x8x128xf32>
    %27 = vector.shape_cast %26 : vector<1x1x8x128xf32> to vector<8x128xf32>
    %28 = vector.broadcast %25 : f32 to vector<8x128xf32>
    %29 = arith.mulf %27, %28 : vector<8x128xf32>
    %30 = arith.addf %24, %29 : vector<8x128xf32>
    %c5 = arith.constant 5 : index
    %31 = memref.load %arg2[%c5] : memref<100xf32, #tpu.memory_space<smem>>
    %c0_16 = arith.constant 0 : index
    %c15 = arith.constant 15 : index
    %c0_17 = arith.constant 0 : index
    %c0_18 = arith.constant 0 : index
    %32 = vector.load %arg1[%c0_16, %c15, %c0_17, %c0_18] : memref<1x64x9x129xf32, #tpu.memory_space<vmem>>, vector<1x1x8x128xf32>
    %33 = vector.shape_cast %32 : vector<1x1x8x128xf32> to vector<8x128xf32>
    %34 = vector.broadcast %31 : f32 to vector<8x128xf32>
    %35 = arith.mulf %33, %34 : vector<8x128xf32>
    %36 = arith.addf %30, %35 : vector<8x128xf32>
    %c6 = arith.constant 6 : index
    %37 = memref.load %arg2[%c6] : memref<100xf32, #tpu.memory_space<smem>>
    %c0_19 = arith.constant 0 : index
    %c12 = arith.constant 12 : index
    %c0_20 = arith.constant 0 : index
    %c1_21 = arith.constant 1 : index
    %38 = vector.load %arg1[%c0_19, %c12, %c0_20, %c1_21] : memref<1x64x9x129xf32, #tpu.memory_space<vmem>>, vector<1x1x8x128xf32>
    %39 = vector.shape_cast %38 : vector<1x1x8x128xf32> to vector<8x128xf32>
    %40 = vector.broadcast %37 : f32 to vector<8x128xf32>
    %41 = arith.mulf %39, %40 : vector<8x128xf32>
    %42 = arith.addf %36, %41 : vector<8x128xf32>
    %c7 = arith.constant 7 : index
    %43 = memref.load %arg2[%c7] : memref<100xf32, #tpu.memory_space<smem>>
    %c0_22 = arith.constant 0 : index
    %c13 = arith.constant 13 : index
    %c0_23 = arith.constant 0 : index
    %c1_24 = arith.constant 1 : index
    %44 = vector.load %arg1[%c0_22, %c13, %c0_23, %c1_24] : memref<1x64x9x129xf32, #tpu.memory_space<vmem>>, vector<1x1x8x128xf32>
    %45 = vector.shape_cast %44 : vector<1x1x8x128xf32> to vector<8x128xf32>
    %46 = vector.broadcast %43 : f32 to vector<8x128xf32>
    %47 = arith.mulf %45, %46 : vector<8x128xf32>
    %48 = arith.addf %42, %47 : vector<8x128xf32>
    %c8_25 = arith.constant 8 : index
    %49 = memref.load %arg2[%c8_25] : memref<100xf32, #tpu.memory_space<smem>>
    %c0_26 = arith.constant 0 : index
    %c14 = arith.constant 14 : index
    %c0_27 = arith.constant 0 : index
    %c1_28 = arith.constant 1 : index
    %50 = vector.load %arg1[%c0_26, %c14, %c0_27, %c1_28] : memref<1x64x9x129xf32, #tpu.memory_space<vmem>>, vector<1x1x8x128xf32>
    %51 = vector.shape_cast %50 : vector<1x1x8x128xf32> to vector<8x128xf32>
    %52 = vector.broadcast %49 : f32 to vector<8x128xf32>
    %53 = arith.mulf %51, %52 : vector<8x128xf32>
    %54 = arith.addf %48, %53 : vector<8x128xf32>
    %c9_29 = arith.constant 9 : index
    %55 = memref.load %arg2[%c9_29] : memref<100xf32, #tpu.memory_space<smem>>
    %c0_30 = arith.constant 0 : index
    %c15_31 = arith.constant 15 : index
    %c0_32 = arith.constant 0 : index
    %c1_33 = arith.constant 1 : index
    %56 = vector.load %arg1[%c0_30, %c15_31, %c0_32, %c1_33] : memref<1x64x9x129xf32, #tpu.memory_space<vmem>>, vector<1x1x8x128xf32>
    %57 = vector.shape_cast %56 : vector<1x1x8x128xf32> to vector<8x128xf32>
    %58 = vector.broadcast %55 : f32 to vector<8x128xf32>
    %59 = arith.mulf %57, %58 : vector<8x128xf32>
    %60 = arith.addf %54, %59 : vector<8x128xf32>
    %c10_34 = arith.constant 10 : index
    %61 = memref.load %arg2[%c10_34] : memref<100xf32, #tpu.memory_space<smem>>
    %c0_35 = arith.constant 0 : index
    %c3_36 = arith.constant 3 : index
    %c1_37 = arith.constant 1 : index
    %c0_38 = arith.constant 0 : index
    %62 = vector.load %arg1[%c0_35, %c3_36, %c1_37, %c0_38] : memref<1x64x9x129xf32, #tpu.memory_space<vmem>>, vector<1x1x8x128xf32>
    %63 = vector.shape_cast %62 : vector<1x1x8x128xf32> to vector<8x128xf32>
    %64 = vector.broadcast %61 : f32 to vector<8x128xf32>
    %65 = arith.mulf %63, %64 : vector<8x128xf32>
    %66 = arith.addf %60, %65 : vector<8x128xf32>
    %c11_39 = arith.constant 11 : index
    %67 = memref.load %arg2[%c11_39] : memref<100xf32, #tpu.memory_space<smem>>
    %c0_40 = arith.constant 0 : index
    %c0_41 = arith.constant 0 : index
    %c1_42 = arith.constant 1 : index
    %c1_43 = arith.constant 1 : index
    %68 = vector.load %arg1[%c0_40, %c0_41, %c1_42, %c1_43] : memref<1x64x9x129xf32, #tpu.memory_space<vmem>>, vector<1x1x8x128xf32>
    %69 = vector.shape_cast %68 : vector<1x1x8x128xf32> to vector<8x128xf32>
    %70 = vector.broadcast %67 : f32 to vector<8x128xf32>
    %71 = arith.mulf %69, %70 : vector<8x128xf32>
    %72 = arith.addf %66, %71 : vector<8x128xf32>
    %c12_44 = arith.constant 12 : index
    %73 = memref.load %arg2[%c12_44] : memref<100xf32, #tpu.memory_space<smem>>
    %c0_45 = arith.constant 0 : index
    %c1_46 = arith.constant 1 : index
    %c1_47 = arith.constant 1 : index
    %c1_48 = arith.constant 1 : index
    %74 = vector.load %arg1[%c0_45, %c1_46, %c1_47, %c1_48] : memref<1x64x9x129xf32, #tpu.memory_space<vmem>>, vector<1x1x8x128xf32>
    %75 = vector.shape_cast %74 : vector<1x1x8x128xf32> to vector<8x128xf32>
    %76 = vector.broadcast %73 : f32 to vector<8x128xf32>
    %77 = arith.mulf %75, %76 : vector<8x128xf32>
    %78 = arith.addf %72, %77 : vector<8x128xf32>
    %c13_49 = arith.constant 13 : index
    %79 = memref.load %arg2[%c13_49] : memref<100xf32, #tpu.memory_space<smem>>
    %c0_50 = arith.constant 0 : index
    %c2_51 = arith.constant 2 : index
    %c1_52 = arith.constant 1 : index
    %c1_53 = arith.constant 1 : index
    %80 = vector.load %arg1[%c0_50, %c2_51, %c1_52, %c1_53] : memref<1x64x9x129xf32, #tpu.memory_space<vmem>>, vector<1x1x8x128xf32>
    %81 = vector.shape_cast %80 : vector<1x1x8x128xf32> to vector<8x128xf32>
    %82 = vector.broadcast %79 : f32 to vector<8x128xf32>
    %83 = arith.mulf %81, %82 : vector<8x128xf32>
    %84 = arith.addf %78, %83 : vector<8x128xf32>
    %c14_54 = arith.constant 14 : index
    %85 = memref.load %arg2[%c14_54] : memref<100xf32, #tpu.memory_space<smem>>
    %c0_55 = arith.constant 0 : index
    %c3_56 = arith.constant 3 : index
    %c1_57 = arith.constant 1 : index
    %c1_58 = arith.constant 1 : index
    %86 = vector.load %arg1[%c0_55, %c3_56, %c1_57, %c1_58] : memref<1x64x9x129xf32, #tpu.memory_space<vmem>>, vector<1x1x8x128xf32>
    %87 = vector.shape_cast %86 : vector<1x1x8x128xf32> to vector<8x128xf32>
    %88 = vector.broadcast %85 : f32 to vector<8x128xf32>
    %89 = arith.mulf %87, %88 : vector<8x128xf32>
    %90 = arith.addf %84, %89 : vector<8x128xf32>
    %c15_59 = arith.constant 15 : index
    %91 = memref.load %arg2[%c15_59] : memref<100xf32, #tpu.memory_space<smem>>
    %c0_60 = arith.constant 0 : index
    %c7_61 = arith.constant 7 : index
    %c1_62 = arith.constant 1 : index
    %c0_63 = arith.constant 0 : index
    %92 = vector.load %arg1[%c0_60, %c7_61, %c1_62, %c0_63] : memref<1x64x9x129xf32, #tpu.memory_space<vmem>>, vector<1x1x8x128xf32>
    %93 = vector.shape_cast %92 : vector<1x1x8x128xf32> to vector<8x128xf32>
    %94 = vector.broadcast %91 : f32 to vector<8x128xf32>
    %95 = arith.mulf %93, %94 : vector<8x128xf32>
    %96 = arith.addf %90, %95 : vector<8x128xf32>
    %c16 = arith.constant 16 : index
    %97 = memref.load %arg2[%c16] : memref<100xf32, #tpu.memory_space<smem>>
    %c0_64 = arith.constant 0 : index
    %c4_65 = arith.constant 4 : index
    %c1_66 = arith.constant 1 : index
    %c1_67 = arith.constant 1 : index
    %98 = vector.load %arg1[%c0_64, %c4_65, %c1_66, %c1_67] : memref<1x64x9x129xf32, #tpu.memory_space<vmem>>, vector<1x1x8x128xf32>
    %99 = vector.shape_cast %98 : vector<1x1x8x128xf32> to vector<8x128xf32>
    %100 = vector.broadcast %97 : f32 to vector<8x128xf32>
    %101 = arith.mulf %99, %100 : vector<8x128xf32>
    %102 = arith.addf %96, %101 : vector<8x128xf32>
    %c17 = arith.constant 17 : index
    %103 = memref.load %arg2[%c17] : memref<100xf32, #tpu.memory_space<smem>>
    %c0_68 = arith.constant 0 : index
    %c5_69 = arith.constant 5 : index
    %c1_70 = arith.constant 1 : index
    %c1_71 = arith.constant 1 : index
    %104 = vector.load %arg1[%c0_68, %c5_69, %c1_70, %c1_71] : memref<1x64x9x129xf32, #tpu.memory_space<vmem>>, vector<1x1x8x128xf32>
    %105 = vector.shape_cast %104 : vector<1x1x8x128xf32> to vector<8x128xf32>
    %106 = vector.broadcast %103 : f32 to vector<8x128xf32>
    %107 = arith.mulf %105, %106 : vector<8x128xf32>
    %108 = arith.addf %102, %107 : vector<8x128xf32>
    %c18 = arith.constant 18 : index
    %109 = memref.load %arg2[%c18] : memref<100xf32, #tpu.memory_space<smem>>
    %c0_72 = arith.constant 0 : index
    %c6_73 = arith.constant 6 : index
    %c1_74 = arith.constant 1 : index
    %c1_75 = arith.constant 1 : index
    %110 = vector.load %arg1[%c0_72, %c6_73, %c1_74, %c1_75] : memref<1x64x9x129xf32, #tpu.memory_space<vmem>>, vector<1x1x8x128xf32>
    %111 = vector.shape_cast %110 : vector<1x1x8x128xf32> to vector<8x128xf32>
    %112 = vector.broadcast %109 : f32 to vector<8x128xf32>
    %113 = arith.mulf %111, %112 : vector<8x128xf32>
    %114 = arith.addf %108, %113 : vector<8x128xf32>
    %c19 = arith.constant 19 : index
    %115 = memref.load %arg2[%c19] : memref<100xf32, #tpu.memory_space<smem>>
    %c0_76 = arith.constant 0 : index
    %c7_77 = arith.constant 7 : index
    %c1_78 = arith.constant 1 : index
    %c1_79 = arith.constant 1 : index
    %116 = vector.load %arg1[%c0_76, %c7_77, %c1_78, %c1_79] : memref<1x64x9x129xf32, #tpu.memory_space<vmem>>, vector<1x1x8x128xf32>
    %117 = vector.shape_cast %116 : vector<1x1x8x128xf32> to vector<8x128xf32>
    %118 = vector.broadcast %115 : f32 to vector<8x128xf32>
    %119 = arith.mulf %117, %118 : vector<8x128xf32>
    %120 = arith.addf %114, %119 : vector<8x128xf32>
    %c20 = arith.constant 20 : index
    %121 = memref.load %arg2[%c20] : memref<100xf32, #tpu.memory_space<smem>>
    %c0_80 = arith.constant 0 : index
    %c11_81 = arith.constant 11 : index
    %c1_82 = arith.constant 1 : index
    %c0_83 = arith.constant 0 : index
    %122 = vector.load %arg1[%c0_80, %c11_81, %c1_82, %c0_83] : memref<1x64x9x129xf32, #tpu.memory_space<vmem>>, vector<1x1x8x128xf32>
    %123 = vector.shape_cast %122 : vector<1x1x8x128xf32> to vector<8x128xf32>
    %124 = vector.broadcast %121 : f32 to vector<8x128xf32>
    %125 = arith.mulf %123, %124 : vector<8x128xf32>
    %126 = arith.addf %120, %125 : vector<8x128xf32>
    %c21 = arith.constant 21 : index
    %127 = memref.load %arg2[%c21] : memref<100xf32, #tpu.memory_space<smem>>
    %c0_84 = arith.constant 0 : index
    %c8_85 = arith.constant 8 : index
    %c1_86 = arith.constant 1 : index
    %c1_87 = arith.constant 1 : index
    %128 = vector.load %arg1[%c0_84, %c8_85, %c1_86, %c1_87] : memref<1x64x9x129xf32, #tpu.memory_space<vmem>>, vector<1x1x8x128xf32>
    %129 = vector.shape_cast %128 : vector<1x1x8x128xf32> to vector<8x128xf32>
    %130 = vector.broadcast %127 : f32 to vector<8x128xf32>
    %131 = arith.mulf %129, %130 : vector<8x128xf32>
    %132 = arith.addf %126, %131 : vector<8x128xf32>
    %c22 = arith.constant 22 : index
    %133 = memref.load %arg2[%c22] : memref<100xf32, #tpu.memory_space<smem>>
    %c0_88 = arith.constant 0 : index
    %c9_89 = arith.constant 9 : index
    %c1_90 = arith.constant 1 : index
    %c1_91 = arith.constant 1 : index
    %134 = vector.load %arg1[%c0_88, %c9_89, %c1_90, %c1_91] : memref<1x64x9x129xf32, #tpu.memory_space<vmem>>, vector<1x1x8x128xf32>
    %135 = vector.shape_cast %134 : vector<1x1x8x128xf32> to vector<8x128xf32>
    %136 = vector.broadcast %133 : f32 to vector<8x128xf32>
    %137 = arith.mulf %135, %136 : vector<8x128xf32>
    %138 = arith.addf %132, %137 : vector<8x128xf32>
    %c23 = arith.constant 23 : index
    %139 = memref.load %arg2[%c23] : memref<100xf32, #tpu.memory_space<smem>>
    %c0_92 = arith.constant 0 : index
    %c10_93 = arith.constant 10 : index
    %c1_94 = arith.constant 1 : index
    %c1_95 = arith.constant 1 : index
    %140 = vector.load %arg1[%c0_92, %c10_93, %c1_94, %c1_95] : memref<1x64x9x129xf32, #tpu.memory_space<vmem>>, vector<1x1x8x128xf32>
    %141 = vector.shape_cast %140 : vector<1x1x8x128xf32> to vector<8x128xf32>
    %142 = vector.broadcast %139 : f32 to vector<8x128xf32>
    %143 = arith.mulf %141, %142 : vector<8x128xf32>
    %144 = arith.addf %138, %143 : vector<8x128xf32>
    %c24 = arith.constant 24 : index
    %145 = memref.load %arg2[%c24] : memref<100xf32, #tpu.memory_space<smem>>
    %c0_96 = arith.constant 0 : index
    %c11_97 = arith.constant 11 : index
    %c1_98 = arith.constant 1 : index
    %c1_99 = arith.constant 1 : index
    %146 = vector.load %arg1[%c0_96, %c11_97, %c1_98, %c1_99] : memref<1x64x9x129xf32, #tpu.memory_space<vmem>>, vector<1x1x8x128xf32>
    %147 = vector.shape_cast %146 : vector<1x1x8x128xf32> to vector<8x128xf32>
    %148 = vector.broadcast %145 : f32 to vector<8x128xf32>
    %149 = arith.mulf %147, %148 : vector<8x128xf32>
    %150 = arith.addf %144, %149 : vector<8x128xf32>
    %c0_100 = arith.constant 0 : index
    %c0_101 = arith.constant 0 : index
    %c0_102 = arith.constant 0 : index
    %c0_103 = arith.constant 0 : index
    %151 = vector.load %arg3[%c0_100, %c0_101, %c0_102, %c0_103] : memref<1x4x8x128xf32, #tpu.memory_space<vmem>>, vector<1x1x8x128xf32>
    %152 = vector.shape_cast %151 : vector<1x1x8x128xf32> to vector<8x128xf32>
    %153 = arith.mulf %150, %152 : vector<8x128xf32>
    %c0_104 = arith.constant 0 : index
    %c0_105 = arith.constant 0 : index
    %c0_106 = arith.constant 0 : index
    %c0_107 = arith.constant 0 : index
    %154 = vector.load %arg4[%c0_104, %c0_105, %c0_106, %c0_107] : memref<1x4x8x128xf32, #tpu.memory_space<vmem>>, vector<1x1x8x128xf32>
    %155 = vector.shape_cast %154 : vector<1x1x8x128xf32> to vector<8x128xf32>
    %156 = arith.mulf %155, %152 : vector<8x128xf32>
    %157 = arith.subf %153, %156 : vector<8x128xf32>
    %158 = math.absf %157 : vector<8x128xf32>
    %159 = vector.shape_cast %158 : vector<8x128xf32> to vector<1x8x128xf32>
    %cst_108 = arith.constant dense<0.000000e+00> : vector<1xf32>
    %160 = vector.multi_reduction <add>, %159, %cst_108 [1, 2] : vector<1x8x128xf32> to vector<1xf32>
    %161 = vector.shape_cast %160 : vector<1xf32> to vector<1x1x1xf32>
    %162 = vector.extract %161[0, 0, 0] : f32 from vector<1x1x1xf32>
    %cst_109 = arith.constant 0.000000e+00 : f32
    %163 = arith.addf %cst_109, %162 : f32
    %cst_110 = arith.constant 0.000000e+00 : f32
    %164 = vector.broadcast %cst_110 : f32 to vector<8x128xf32>
    %c25 = arith.constant 25 : index
    %165 = memref.load %arg2[%c25] : memref<100xf32, #tpu.memory_space<smem>>
    %c0_111 = arith.constant 0 : index
    %c30 = arith.constant 30 : index
    %c0_112 = arith.constant 0 : index
    %c0_113 = arith.constant 0 : index
    %166 = vector.load %arg1[%c0_111, %c30, %c0_112, %c0_113] : memref<1x64x9x129xf32, #tpu.memory_space<vmem>>, vector<1x1x8x128xf32>
    %167 = vector.shape_cast %166 : vector<1x1x8x128xf32> to vector<8x128xf32>
    %168 = vector.broadcast %165 : f32 to vector<8x128xf32>
    %169 = arith.mulf %167, %168 : vector<8x128xf32>
    %170 = arith.addf %164, %169 : vector<8x128xf32>
    %c26 = arith.constant 26 : index
    %171 = memref.load %arg2[%c26] : memref<100xf32, #tpu.memory_space<smem>>
    %c0_114 = arith.constant 0 : index
    %c31 = arith.constant 31 : index
    %c0_115 = arith.constant 0 : index
    %c0_116 = arith.constant 0 : index
    %172 = vector.load %arg1[%c0_114, %c31, %c0_115, %c0_116] : memref<1x64x9x129xf32, #tpu.memory_space<vmem>>, vector<1x1x8x128xf32>
    %173 = vector.shape_cast %172 : vector<1x1x8x128xf32> to vector<8x128xf32>
    %174 = vector.broadcast %171 : f32 to vector<8x128xf32>
    %175 = arith.mulf %173, %174 : vector<8x128xf32>
    %176 = arith.addf %170, %175 : vector<8x128xf32>
    %c27 = arith.constant 27 : index
    %177 = memref.load %arg2[%c27] : memref<100xf32, #tpu.memory_space<smem>>
    %c0_117 = arith.constant 0 : index
    %c28 = arith.constant 28 : index
    %c0_118 = arith.constant 0 : index
    %c1_119 = arith.constant 1 : index
    %178 = vector.load %arg1[%c0_117, %c28, %c0_118, %c1_119] : memref<1x64x9x129xf32, #tpu.memory_space<vmem>>, vector<1x1x8x128xf32>
    %179 = vector.shape_cast %178 : vector<1x1x8x128xf32> to vector<8x128xf32>
    %180 = vector.broadcast %177 : f32 to vector<8x128xf32>
    %181 = arith.mulf %179, %180 : vector<8x128xf32>
    %182 = arith.addf %176, %181 : vector<8x128xf32>
    %c28_120 = arith.constant 28 : index
    %183 = memref.load %arg2[%c28_120] : memref<100xf32, #tpu.memory_space<smem>>
    %c0_121 = arith.constant 0 : index
    %c29 = arith.constant 29 : index
    %c0_122 = arith.constant 0 : index
    %c1_123 = arith.constant 1 : index
    %184 = vector.load %arg1[%c0_121, %c29, %c0_122, %c1_123] : memref<1x64x9x129xf32, #tpu.memory_space<vmem>>, vector<1x1x8x128xf32>
    %185 = vector.shape_cast %184 : vector<1x1x8x128xf32> to vector<8x128xf32>
    %186 = vector.broadcast %183 : f32 to vector<8x128xf32>
    %187 = arith.mulf %185, %186 : vector<8x128xf32>
    %188 = arith.addf %182, %187 : vector<8x128xf32>
    %c29_124 = arith.constant 29 : index
    %189 = memref.load %arg2[%c29_124] : memref<100xf32, #tpu.memory_space<smem>>
    %c0_125 = arith.constant 0 : index
    %c30_126 = arith.constant 30 : index
    %c0_127 = arith.constant 0 : index
    %c1_128 = arith.constant 1 : index
    %190 = vector.load %arg1[%c0_125, %c30_126, %c0_127, %c1_128] : memref<1x64x9x129xf32, #tpu.memory_space<vmem>>, vector<1x1x8x128xf32>
    %191 = vector.shape_cast %190 : vector<1x1x8x128xf32> to vector<8x128xf32>
    %192 = vector.broadcast %189 : f32 to vector<8x128xf32>
    %193 = arith.mulf %191, %192 : vector<8x128xf32>
    %194 = arith.addf %188, %193 : vector<8x128xf32>
    %c30_129 = arith.constant 30 : index
    %195 = memref.load %arg2[%c30_129] : memref<100xf32, #tpu.memory_space<smem>>
    %c0_130 = arith.constant 0 : index
    %c18_131 = arith.constant 18 : index
    %c1_132 = arith.constant 1 : index
    %c0_133 = arith.constant 0 : index
    %196 = vector.load %arg1[%c0_130, %c18_131, %c1_132, %c0_133] : memref<1x64x9x129xf32, #tpu.memory_space<vmem>>, vector<1x1x8x128xf32>
    %197 = vector.shape_cast %196 : vector<1x1x8x128xf32> to vector<8x128xf32>
    %198 = vector.broadcast %195 : f32 to vector<8x128xf32>
    %199 = arith.mulf %197, %198 : vector<8x128xf32>
    %200 = arith.addf %194, %199 : vector<8x128xf32>
    %c31_134 = arith.constant 31 : index
    %201 = memref.load %arg2[%c31_134] : memref<100xf32, #tpu.memory_space<smem>>
    %c0_135 = arith.constant 0 : index
    %c19_136 = arith.constant 19 : index
    %c1_137 = arith.constant 1 : index
    %c0_138 = arith.constant 0 : index
    %202 = vector.load %arg1[%c0_135, %c19_136, %c1_137, %c0_138] : memref<1x64x9x129xf32, #tpu.memory_space<vmem>>, vector<1x1x8x128xf32>
    %203 = vector.shape_cast %202 : vector<1x1x8x128xf32> to vector<8x128xf32>
    %204 = vector.broadcast %201 : f32 to vector<8x128xf32>
    %205 = arith.mulf %203, %204 : vector<8x128xf32>
    %206 = arith.addf %200, %205 : vector<8x128xf32>
    %c32 = arith.constant 32 : index
    %207 = memref.load %arg2[%c32] : memref<100xf32, #tpu.memory_space<smem>>
    %c0_139 = arith.constant 0 : index
    %c16_140 = arith.constant 16 : index
    %c1_141 = arith.constant 1 : index
    %c1_142 = arith.constant 1 : index
    %208 = vector.load %arg1[%c0_139, %c16_140, %c1_141, %c1_142] : memref<1x64x9x129xf32, #tpu.memory_space<vmem>>, vector<1x1x8x128xf32>
    %209 = vector.shape_cast %208 : vector<1x1x8x128xf32> to vector<8x128xf32>
    %210 = vector.broadcast %207 : f32 to vector<8x128xf32>
    %211 = arith.mulf %209, %210 : vector<8x128xf32>
    %212 = arith.addf %206, %211 : vector<8x128xf32>
    %c33 = arith.constant 33 : index
    %213 = memref.load %arg2[%c33] : memref<100xf32, #tpu.memory_space<smem>>
    %c0_143 = arith.constant 0 : index
    %c17_144 = arith.constant 17 : index
    %c1_145 = arith.constant 1 : index
    %c1_146 = arith.constant 1 : index
    %214 = vector.load %arg1[%c0_143, %c17_144, %c1_145, %c1_146] : memref<1x64x9x129xf32, #tpu.memory_space<vmem>>, vector<1x1x8x128xf32>
    %215 = vector.shape_cast %214 : vector<1x1x8x128xf32> to vector<8x128xf32>
    %216 = vector.broadcast %213 : f32 to vector<8x128xf32>
    %217 = arith.mulf %215, %216 : vector<8x128xf32>
    %218 = arith.addf %212, %217 : vector<8x128xf32>
    %c34 = arith.constant 34 : index
    %219 = memref.load %arg2[%c34] : memref<100xf32, #tpu.memory_space<smem>>
    %c0_147 = arith.constant 0 : index
    %c18_148 = arith.constant 18 : index
    %c1_149 = arith.constant 1 : index
    %c1_150 = arith.constant 1 : index
    %220 = vector.load %arg1[%c0_147, %c18_148, %c1_149, %c1_150] : memref<1x64x9x129xf32, #tpu.memory_space<vmem>>, vector<1x1x8x128xf32>
    %221 = vector.shape_cast %220 : vector<1x1x8x128xf32> to vector<8x128xf32>
    %222 = vector.broadcast %219 : f32 to vector<8x128xf32>
    %223 = arith.mulf %221, %222 : vector<8x128xf32>
    %224 = arith.addf %218, %223 : vector<8x128xf32>
    %c35 = arith.constant 35 : index
    %225 = memref.load %arg2[%c35] : memref<100xf32, #tpu.memory_space<smem>>
    %c0_151 = arith.constant 0 : index
    %c22_152 = arith.constant 22 : index
    %c1_153 = arith.constant 1 : index
    %c0_154 = arith.constant 0 : index
    %226 = vector.load %arg1[%c0_151, %c22_152, %c1_153, %c0_154] : memref<1x64x9x129xf32, #tpu.memory_space<vmem>>, vector<1x1x8x128xf32>
    %227 = vector.shape_cast %226 : vector<1x1x8x128xf32> to vector<8x128xf32>
    %228 = vector.broadcast %225 : f32 to vector<8x128xf32>
    %229 = arith.mulf %227, %228 : vector<8x128xf32>
    %230 = arith.addf %224, %229 : vector<8x128xf32>
    %c36 = arith.constant 36 : index
    %231 = memref.load %arg2[%c36] : memref<100xf32, #tpu.memory_space<smem>>
    %c0_155 = arith.constant 0 : index
    %c23_156 = arith.constant 23 : index
    %c1_157 = arith.constant 1 : index
    %c0_158 = arith.constant 0 : index
    %232 = vector.load %arg1[%c0_155, %c23_156, %c1_157, %c0_158] : memref<1x64x9x129xf32, #tpu.memory_space<vmem>>, vector<1x1x8x128xf32>
    %233 = vector.shape_cast %232 : vector<1x1x8x128xf32> to vector<8x128xf32>
    %234 = vector.broadcast %231 : f32 to vector<8x128xf32>
    %235 = arith.mulf %233, %234 : vector<8x128xf32>
    %236 = arith.addf %230, %235 : vector<8x128xf32>
    %c37 = arith.constant 37 : index
    %237 = memref.load %arg2[%c37] : memref<100xf32, #tpu.memory_space<smem>>
    %c0_159 = arith.constant 0 : index
    %c20_160 = arith.constant 20 : index
    %c1_161 = arith.constant 1 : index
    %c1_162 = arith.constant 1 : index
    %238 = vector.load %arg1[%c0_159, %c20_160, %c1_161, %c1_162] : memref<1x64x9x129xf32, #tpu.memory_space<vmem>>, vector<1x1x8x128xf32>
    %239 = vector.shape_cast %238 : vector<1x1x8x128xf32> to vector<8x128xf32>
    %240 = vector.broadcast %237 : f32 to vector<8x128xf32>
    %241 = arith.mulf %239, %240 : vector<8x128xf32>
    %242 = arith.addf %236, %241 : vector<8x128xf32>
    %c38 = arith.constant 38 : index
    %243 = memref.load %arg2[%c38] : memref<100xf32, #tpu.memory_space<smem>>
    %c0_163 = arith.constant 0 : index
    %c21_164 = arith.constant 21 : index
    %c1_165 = arith.constant 1 : index
    %c1_166 = arith.constant 1 : index
    %244 = vector.load %arg1[%c0_163, %c21_164, %c1_165, %c1_166] : memref<1x64x9x129xf32, #tpu.memory_space<vmem>>, vector<1x1x8x128xf32>
    %245 = vector.shape_cast %244 : vector<1x1x8x128xf32> to vector<8x128xf32>
    %246 = vector.broadcast %243 : f32 to vector<8x128xf32>
    %247 = arith.mulf %245, %246 : vector<8x128xf32>
    %248 = arith.addf %242, %247 : vector<8x128xf32>
    %c39 = arith.constant 39 : index
    %249 = memref.load %arg2[%c39] : memref<100xf32, #tpu.memory_space<smem>>
    %c0_167 = arith.constant 0 : index
    %c22_168 = arith.constant 22 : index
    %c1_169 = arith.constant 1 : index
    %c1_170 = arith.constant 1 : index
    %250 = vector.load %arg1[%c0_167, %c22_168, %c1_169, %c1_170] : memref<1x64x9x129xf32, #tpu.memory_space<vmem>>, vector<1x1x8x128xf32>
    %251 = vector.shape_cast %250 : vector<1x1x8x128xf32> to vector<8x128xf32>
    %252 = vector.broadcast %249 : f32 to vector<8x128xf32>
    %253 = arith.mulf %251, %252 : vector<8x128xf32>
    %254 = arith.addf %248, %253 : vector<8x128xf32>
    %c40 = arith.constant 40 : index
    %255 = memref.load %arg2[%c40] : memref<100xf32, #tpu.memory_space<smem>>
    %c0_171 = arith.constant 0 : index
    %c26_172 = arith.constant 26 : index
    %c1_173 = arith.constant 1 : index
    %c0_174 = arith.constant 0 : index
    %256 = vector.load %arg1[%c0_171, %c26_172, %c1_173, %c0_174] : memref<1x64x9x129xf32, #tpu.memory_space<vmem>>, vector<1x1x8x128xf32>
    %257 = vector.shape_cast %256 : vector<1x1x8x128xf32> to vector<8x128xf32>
    %258 = vector.broadcast %255 : f32 to vector<8x128xf32>
    %259 = arith.mulf %257, %258 : vector<8x128xf32>
    %260 = arith.addf %254, %259 : vector<8x128xf32>
    %c41 = arith.constant 41 : index
    %261 = memref.load %arg2[%c41] : memref<100xf32, #tpu.memory_space<smem>>
    %c0_175 = arith.constant 0 : index
    %c27_176 = arith.constant 27 : index
    %c1_177 = arith.constant 1 : index
    %c0_178 = arith.constant 0 : index
    %262 = vector.load %arg1[%c0_175, %c27_176, %c1_177, %c0_178] : memref<1x64x9x129xf32, #tpu.memory_space<vmem>>, vector<1x1x8x128xf32>
    %263 = vector.shape_cast %262 : vector<1x1x8x128xf32> to vector<8x128xf32>
    %264 = vector.broadcast %261 : f32 to vector<8x128xf32>
    %265 = arith.mulf %263, %264 : vector<8x128xf32>
    %266 = arith.addf %260, %265 : vector<8x128xf32>
    %c42 = arith.constant 42 : index
    %267 = memref.load %arg2[%c42] : memref<100xf32, #tpu.memory_space<smem>>
    %c0_179 = arith.constant 0 : index
    %c24_180 = arith.constant 24 : index
    %c1_181 = arith.constant 1 : index
    %c1_182 = arith.constant 1 : index
    %268 = vector.load %arg1[%c0_179, %c24_180, %c1_181, %c1_182] : memref<1x64x9x129xf32, #tpu.memory_space<vmem>>, vector<1x1x8x128xf32>
    %269 = vector.shape_cast %268 : vector<1x1x8x128xf32> to vector<8x128xf32>
    %270 = vector.broadcast %267 : f32 to vector<8x128xf32>
    %271 = arith.mulf %269, %270 : vector<8x128xf32>
    %272 = arith.addf %266, %271 : vector<8x128xf32>
    %c43 = arith.constant 43 : index
    %273 = memref.load %arg2[%c43] : memref<100xf32, #tpu.memory_space<smem>>
    %c0_183 = arith.constant 0 : index
    %c25_184 = arith.constant 25 : index
    %c1_185 = arith.constant 1 : index
    %c1_186 = arith.constant 1 : index
    %274 = vector.load %arg1[%c0_183, %c25_184, %c1_185, %c1_186] : memref<1x64x9x129xf32, #tpu.memory_space<vmem>>, vector<1x1x8x128xf32>
    %275 = vector.shape_cast %274 : vector<1x1x8x128xf32> to vector<8x128xf32>
    %276 = vector.broadcast %273 : f32 to vector<8x128xf32>
    %277 = arith.mulf %275, %276 : vector<8x128xf32>
    %278 = arith.addf %272, %277 : vector<8x128xf32>
    %c44 = arith.constant 44 : index
    %279 = memref.load %arg2[%c44] : memref<100xf32, #tpu.memory_space<smem>>
    %c0_187 = arith.constant 0 : index
    %c26_188 = arith.constant 26 : index
    %c1_189 = arith.constant 1 : index
    %c1_190 = arith.constant 1 : index
    %280 = vector.load %arg1[%c0_187, %c26_188, %c1_189, %c1_190] : memref<1x64x9x129xf32, #tpu.memory_space<vmem>>, vector<1x1x8x128xf32>
    %281 = vector.shape_cast %280 : vector<1x1x8x128xf32> to vector<8x128xf32>
    %282 = vector.broadcast %279 : f32 to vector<8x128xf32>
    %283 = arith.mulf %281, %282 : vector<8x128xf32>
    %284 = arith.addf %278, %283 : vector<8x128xf32>
    %c45 = arith.constant 45 : index
    %285 = memref.load %arg2[%c45] : memref<100xf32, #tpu.memory_space<smem>>
    %c0_191 = arith.constant 0 : index
    %c30_192 = arith.constant 30 : index
    %c1_193 = arith.constant 1 : index
    %c0_194 = arith.constant 0 : index
    %286 = vector.load %arg1[%c0_191, %c30_192, %c1_193, %c0_194] : memref<1x64x9x129xf32, #tpu.memory_space<vmem>>, vector<1x1x8x128xf32>
    %287 = vector.shape_cast %286 : vector<1x1x8x128xf32> to vector<8x128xf32>
    %288 = vector.broadcast %285 : f32 to vector<8x128xf32>
    %289 = arith.mulf %287, %288 : vector<8x128xf32>
    %290 = arith.addf %284, %289 : vector<8x128xf32>
    %c46 = arith.constant 46 : index
    %291 = memref.load %arg2[%c46] : memref<100xf32, #tpu.memory_space<smem>>
    %c0_195 = arith.constant 0 : index
    %c31_196 = arith.constant 31 : index
    %c1_197 = arith.constant 1 : index
    %c0_198 = arith.constant 0 : index
    %292 = vector.load %arg1[%c0_195, %c31_196, %c1_197, %c0_198] : memref<1x64x9x129xf32, #tpu.memory_space<vmem>>, vector<1x1x8x128xf32>
    %293 = vector.shape_cast %292 : vector<1x1x8x128xf32> to vector<8x128xf32>
    %294 = vector.broadcast %291 : f32 to vector<8x128xf32>
    %295 = arith.mulf %293, %294 : vector<8x128xf32>
    %296 = arith.addf %290, %295 : vector<8x128xf32>
    %c47 = arith.constant 47 : index
    %297 = memref.load %arg2[%c47] : memref<100xf32, #tpu.memory_space<smem>>
    %c0_199 = arith.constant 0 : index
    %c28_200 = arith.constant 28 : index
    %c1_201 = arith.constant 1 : index
    %c1_202 = arith.constant 1 : index
    %298 = vector.load %arg1[%c0_199, %c28_200, %c1_201, %c1_202] : memref<1x64x9x129xf32, #tpu.memory_space<vmem>>, vector<1x1x8x128xf32>
    %299 = vector.shape_cast %298 : vector<1x1x8x128xf32> to vector<8x128xf32>
    %300 = vector.broadcast %297 : f32 to vector<8x128xf32>
    %301 = arith.mulf %299, %300 : vector<8x128xf32>
    %302 = arith.addf %296, %301 : vector<8x128xf32>
    %c48 = arith.constant 48 : index
    %303 = memref.load %arg2[%c48] : memref<100xf32, #tpu.memory_space<smem>>
    %c0_203 = arith.constant 0 : index
    %c29_204 = arith.constant 29 : index
    %c1_205 = arith.constant 1 : index
    %c1_206 = arith.constant 1 : index
    %304 = vector.load %arg1[%c0_203, %c29_204, %c1_205, %c1_206] : memref<1x64x9x129xf32, #tpu.memory_space<vmem>>, vector<1x1x8x128xf32>
    %305 = vector.shape_cast %304 : vector<1x1x8x128xf32> to vector<8x128xf32>
    %306 = vector.broadcast %303 : f32 to vector<8x128xf32>
    %307 = arith.mulf %305, %306 : vector<8x128xf32>
    %308 = arith.addf %302, %307 : vector<8x128xf32>
    %c49 = arith.constant 49 : index
    %309 = memref.load %arg2[%c49] : memref<100xf32, #tpu.memory_space<smem>>
    %c0_207 = arith.constant 0 : index
    %c30_208 = arith.constant 30 : index
    %c1_209 = arith.constant 1 : index
    %c1_210 = arith.constant 1 : index
    %310 = vector.load %arg1[%c0_207, %c30_208, %c1_209, %c1_210] : memref<1x64x9x129xf32, #tpu.memory_space<vmem>>, vector<1x1x8x128xf32>
    %311 = vector.shape_cast %310 : vector<1x1x8x128xf32> to vector<8x128xf32>
    %312 = vector.broadcast %309 : f32 to vector<8x128xf32>
    %313 = arith.mulf %311, %312 : vector<8x128xf32>
    %314 = arith.addf %308, %313 : vector<8x128xf32>
    %c0_211 = arith.constant 0 : index
    %c1_212 = arith.constant 1 : index
    %c0_213 = arith.constant 0 : index
    %c0_214 = arith.constant 0 : index
    %315 = vector.load %arg3[%c0_211, %c1_212, %c0_213, %c0_214] : memref<1x4x8x128xf32, #tpu.memory_space<vmem>>, vector<1x1x8x128xf32>
    %316 = vector.shape_cast %315 : vector<1x1x8x128xf32> to vector<8x128xf32>
    %317 = arith.mulf %314, %316 : vector<8x128xf32>
    %c0_215 = arith.constant 0 : index
    %c1_216 = arith.constant 1 : index
    %c0_217 = arith.constant 0 : index
    %c0_218 = arith.constant 0 : index
    %318 = vector.load %arg4[%c0_215, %c1_216, %c0_217, %c0_218] : memref<1x4x8x128xf32, #tpu.memory_space<vmem>>, vector<1x1x8x128xf32>
    %319 = vector.shape_cast %318 : vector<1x1x8x128xf32> to vector<8x128xf32>
    %320 = arith.mulf %319, %316 : vector<8x128xf32>
    %321 = arith.subf %317, %320 : vector<8x128xf32>
    %322 = math.absf %321 : vector<8x128xf32>
    %323 = vector.shape_cast %322 : vector<8x128xf32> to vector<1x8x128xf32>
    %cst_219 = arith.constant dense<0.000000e+00> : vector<1xf32>
    %324 = vector.multi_reduction <add>, %323, %cst_219 [1, 2] : vector<1x8x128xf32> to vector<1xf32>
    %325 = vector.shape_cast %324 : vector<1xf32> to vector<1x1x1xf32>
    %326 = vector.extract %325[0, 0, 0] : f32 from vector<1x1x1xf32>
    %327 = arith.addf %163, %326 : f32
    %cst_220 = arith.constant 0.000000e+00 : f32
    %328 = vector.broadcast %cst_220 : f32 to vector<8x128xf32>
    %c50 = arith.constant 50 : index
    %329 = memref.load %arg2[%c50] : memref<100xf32, #tpu.memory_space<smem>>
    %c0_221 = arith.constant 0 : index
    %c43_222 = arith.constant 43 : index
    %c0_223 = arith.constant 0 : index
    %c0_224 = arith.constant 0 : index
    %330 = vector.load %arg1[%c0_221, %c43_222, %c0_223, %c0_224] : memref<1x64x9x129xf32, #tpu.memory_space<vmem>>, vector<1x1x8x128xf32>
    %331 = vector.shape_cast %330 : vector<1x1x8x128xf32> to vector<8x128xf32>
    %332 = vector.broadcast %329 : f32 to vector<8x128xf32>
    %333 = arith.mulf %331, %332 : vector<8x128xf32>
    %334 = arith.addf %328, %333 : vector<8x128xf32>
    %c51 = arith.constant 51 : index
    %335 = memref.load %arg2[%c51] : memref<100xf32, #tpu.memory_space<smem>>
    %c0_225 = arith.constant 0 : index
    %c40_226 = arith.constant 40 : index
    %c0_227 = arith.constant 0 : index
    %c1_228 = arith.constant 1 : index
    %336 = vector.load %arg1[%c0_225, %c40_226, %c0_227, %c1_228] : memref<1x64x9x129xf32, #tpu.memory_space<vmem>>, vector<1x1x8x128xf32>
    %337 = vector.shape_cast %336 : vector<1x1x8x128xf32> to vector<8x128xf32>
    %338 = vector.broadcast %335 : f32 to vector<8x128xf32>
    %339 = arith.mulf %337, %338 : vector<8x128xf32>
    %340 = arith.addf %334, %339 : vector<8x128xf32>
    %c52 = arith.constant 52 : index
    %341 = memref.load %arg2[%c52] : memref<100xf32, #tpu.memory_space<smem>>
    %c0_229 = arith.constant 0 : index
    %c41_230 = arith.constant 41 : index
    %c0_231 = arith.constant 0 : index
    %c1_232 = arith.constant 1 : index
    %342 = vector.load %arg1[%c0_229, %c41_230, %c0_231, %c1_232] : memref<1x64x9x129xf32, #tpu.memory_space<vmem>>, vector<1x1x8x128xf32>
    %343 = vector.shape_cast %342 : vector<1x1x8x128xf32> to vector<8x128xf32>
    %344 = vector.broadcast %341 : f32 to vector<8x128xf32>
    %345 = arith.mulf %343, %344 : vector<8x128xf32>
    %346 = arith.addf %340, %345 : vector<8x128xf32>
    %c53 = arith.constant 53 : index
    %347 = memref.load %arg2[%c53] : memref<100xf32, #tpu.memory_space<smem>>
    %c0_233 = arith.constant 0 : index
    %c42_234 = arith.constant 42 : index
    %c0_235 = arith.constant 0 : index
    %c1_236 = arith.constant 1 : index
    %348 = vector.load %arg1[%c0_233, %c42_234, %c0_235, %c1_236] : memref<1x64x9x129xf32, #tpu.memory_space<vmem>>, vector<1x1x8x128xf32>
    %349 = vector.shape_cast %348 : vector<1x1x8x128xf32> to vector<8x128xf32>
    %350 = vector.broadcast %347 : f32 to vector<8x128xf32>
    %351 = arith.mulf %349, %350 : vector<8x128xf32>
    %352 = arith.addf %346, %351 : vector<8x128xf32>
    %c54 = arith.constant 54 : index
    %353 = memref.load %arg2[%c54] : memref<100xf32, #tpu.memory_space<smem>>
    %c0_237 = arith.constant 0 : index
    %c43_238 = arith.constant 43 : index
    %c0_239 = arith.constant 0 : index
    %c1_240 = arith.constant 1 : index
    %354 = vector.load %arg1[%c0_237, %c43_238, %c0_239, %c1_240] : memref<1x64x9x129xf32, #tpu.memory_space<vmem>>, vector<1x1x8x128xf32>
    %355 = vector.shape_cast %354 : vector<1x1x8x128xf32> to vector<8x128xf32>
    %356 = vector.broadcast %353 : f32 to vector<8x128xf32>
    %357 = arith.mulf %355, %356 : vector<8x128xf32>
    %358 = arith.addf %352, %357 : vector<8x128xf32>
    %c55 = arith.constant 55 : index
    %359 = memref.load %arg2[%c55] : memref<100xf32, #tpu.memory_space<smem>>
    %c0_241 = arith.constant 0 : index
    %c47_242 = arith.constant 47 : index
    %c0_243 = arith.constant 0 : index
    %c0_244 = arith.constant 0 : index
    %360 = vector.load %arg1[%c0_241, %c47_242, %c0_243, %c0_244] : memref<1x64x9x129xf32, #tpu.memory_space<vmem>>, vector<1x1x8x128xf32>
    %361 = vector.shape_cast %360 : vector<1x1x8x128xf32> to vector<8x128xf32>
    %362 = vector.broadcast %359 : f32 to vector<8x128xf32>
    %363 = arith.mulf %361, %362 : vector<8x128xf32>
    %364 = arith.addf %358, %363 : vector<8x128xf32>
    %c56 = arith.constant 56 : index
    %365 = memref.load %arg2[%c56] : memref<100xf32, #tpu.memory_space<smem>>
    %c0_245 = arith.constant 0 : index
    %c44_246 = arith.constant 44 : index
    %c0_247 = arith.constant 0 : index
    %c1_248 = arith.constant 1 : index
    %366 = vector.load %arg1[%c0_245, %c44_246, %c0_247, %c1_248] : memref<1x64x9x129xf32, #tpu.memory_space<vmem>>, vector<1x1x8x128xf32>
    %367 = vector.shape_cast %366 : vector<1x1x8x128xf32> to vector<8x128xf32>
    %368 = vector.broadcast %365 : f32 to vector<8x128xf32>
    %369 = arith.mulf %367, %368 : vector<8x128xf32>
    %370 = arith.addf %364, %369 : vector<8x128xf32>
    %c57 = arith.constant 57 : index
    %371 = memref.load %arg2[%c57] : memref<100xf32, #tpu.memory_space<smem>>
    %c0_249 = arith.constant 0 : index
    %c45_250 = arith.constant 45 : index
    %c0_251 = arith.constant 0 : index
    %c1_252 = arith.constant 1 : index
    %372 = vector.load %arg1[%c0_249, %c45_250, %c0_251, %c1_252] : memref<1x64x9x129xf32, #tpu.memory_space<vmem>>, vector<1x1x8x128xf32>
    %373 = vector.shape_cast %372 : vector<1x1x8x128xf32> to vector<8x128xf32>
    %374 = vector.broadcast %371 : f32 to vector<8x128xf32>
    %375 = arith.mulf %373, %374 : vector<8x128xf32>
    %376 = arith.addf %370, %375 : vector<8x128xf32>
    %c58 = arith.constant 58 : index
    %377 = memref.load %arg2[%c58] : memref<100xf32, #tpu.memory_space<smem>>
    %c0_253 = arith.constant 0 : index
    %c46_254 = arith.constant 46 : index
    %c0_255 = arith.constant 0 : index
    %c1_256 = arith.constant 1 : index
    %378 = vector.load %arg1[%c0_253, %c46_254, %c0_255, %c1_256] : memref<1x64x9x129xf32, #tpu.memory_space<vmem>>, vector<1x1x8x128xf32>
    %379 = vector.shape_cast %378 : vector<1x1x8x128xf32> to vector<8x128xf32>
    %380 = vector.broadcast %377 : f32 to vector<8x128xf32>
    %381 = arith.mulf %379, %380 : vector<8x128xf32>
    %382 = arith.addf %376, %381 : vector<8x128xf32>
    %c59 = arith.constant 59 : index
    %383 = memref.load %arg2[%c59] : memref<100xf32, #tpu.memory_space<smem>>
    %c0_257 = arith.constant 0 : index
    %c47_258 = arith.constant 47 : index
    %c0_259 = arith.constant 0 : index
    %c1_260 = arith.constant 1 : index
    %384 = vector.load %arg1[%c0_257, %c47_258, %c0_259, %c1_260] : memref<1x64x9x129xf32, #tpu.memory_space<vmem>>, vector<1x1x8x128xf32>
    %385 = vector.shape_cast %384 : vector<1x1x8x128xf32> to vector<8x128xf32>
    %386 = vector.broadcast %383 : f32 to vector<8x128xf32>
    %387 = arith.mulf %385, %386 : vector<8x128xf32>
    %388 = arith.addf %382, %387 : vector<8x128xf32>
    %c60 = arith.constant 60 : index
    %389 = memref.load %arg2[%c60] : memref<100xf32, #tpu.memory_space<smem>>
    %c0_261 = arith.constant 0 : index
    %c35_262 = arith.constant 35 : index
    %c1_263 = arith.constant 1 : index
    %c0_264 = arith.constant 0 : index
    %390 = vector.load %arg1[%c0_261, %c35_262, %c1_263, %c0_264] : memref<1x64x9x129xf32, #tpu.memory_space<vmem>>, vector<1x1x8x128xf32>
    %391 = vector.shape_cast %390 : vector<1x1x8x128xf32> to vector<8x128xf32>
    %392 = vector.broadcast %389 : f32 to vector<8x128xf32>
    %393 = arith.mulf %391, %392 : vector<8x128xf32>
    %394 = arith.addf %388, %393 : vector<8x128xf32>
    %c61 = arith.constant 61 : index
    %395 = memref.load %arg2[%c61] : memref<100xf32, #tpu.memory_space<smem>>
    %c0_265 = arith.constant 0 : index
    %c32_266 = arith.constant 32 : index
    %c1_267 = arith.constant 1 : index
    %c1_268 = arith.constant 1 : index
    %396 = vector.load %arg1[%c0_265, %c32_266, %c1_267, %c1_268] : memref<1x64x9x129xf32, #tpu.memory_space<vmem>>, vector<1x1x8x128xf32>
    %397 = vector.shape_cast %396 : vector<1x1x8x128xf32> to vector<8x128xf32>
    %398 = vector.broadcast %395 : f32 to vector<8x128xf32>
    %399 = arith.mulf %397, %398 : vector<8x128xf32>
    %400 = arith.addf %394, %399 : vector<8x128xf32>
    %c62 = arith.constant 62 : index
    %401 = memref.load %arg2[%c62] : memref<100xf32, #tpu.memory_space<smem>>
    %c0_269 = arith.constant 0 : index
    %c33_270 = arith.constant 33 : index
    %c1_271 = arith.constant 1 : index
    %c1_272 = arith.constant 1 : index
    %402 = vector.load %arg1[%c0_269, %c33_270, %c1_271, %c1_272] : memref<1x64x9x129xf32, #tpu.memory_space<vmem>>, vector<1x1x8x128xf32>
    %403 = vector.shape_cast %402 : vector<1x1x8x128xf32> to vector<8x128xf32>
    %404 = vector.broadcast %401 : f32 to vector<8x128xf32>
    %405 = arith.mulf %403, %404 : vector<8x128xf32>
    %406 = arith.addf %400, %405 : vector<8x128xf32>
    %c63 = arith.constant 63 : index
    %407 = memref.load %arg2[%c63] : memref<100xf32, #tpu.memory_space<smem>>
    %c0_273 = arith.constant 0 : index
    %c34_274 = arith.constant 34 : index
    %c1_275 = arith.constant 1 : index
    %c1_276 = arith.constant 1 : index
    %408 = vector.load %arg1[%c0_273, %c34_274, %c1_275, %c1_276] : memref<1x64x9x129xf32, #tpu.memory_space<vmem>>, vector<1x1x8x128xf32>
    %409 = vector.shape_cast %408 : vector<1x1x8x128xf32> to vector<8x128xf32>
    %410 = vector.broadcast %407 : f32 to vector<8x128xf32>
    %411 = arith.mulf %409, %410 : vector<8x128xf32>
    %412 = arith.addf %406, %411 : vector<8x128xf32>
    %c64 = arith.constant 64 : index
    %413 = memref.load %arg2[%c64] : memref<100xf32, #tpu.memory_space<smem>>
    %c0_277 = arith.constant 0 : index
    %c35_278 = arith.constant 35 : index
    %c1_279 = arith.constant 1 : index
    %c1_280 = arith.constant 1 : index
    %414 = vector.load %arg1[%c0_277, %c35_278, %c1_279, %c1_280] : memref<1x64x9x129xf32, #tpu.memory_space<vmem>>, vector<1x1x8x128xf32>
    %415 = vector.shape_cast %414 : vector<1x1x8x128xf32> to vector<8x128xf32>
    %416 = vector.broadcast %413 : f32 to vector<8x128xf32>
    %417 = arith.mulf %415, %416 : vector<8x128xf32>
    %418 = arith.addf %412, %417 : vector<8x128xf32>
    %c65 = arith.constant 65 : index
    %419 = memref.load %arg2[%c65] : memref<100xf32, #tpu.memory_space<smem>>
    %c0_281 = arith.constant 0 : index
    %c39_282 = arith.constant 39 : index
    %c1_283 = arith.constant 1 : index
    %c0_284 = arith.constant 0 : index
    %420 = vector.load %arg1[%c0_281, %c39_282, %c1_283, %c0_284] : memref<1x64x9x129xf32, #tpu.memory_space<vmem>>, vector<1x1x8x128xf32>
    %421 = vector.shape_cast %420 : vector<1x1x8x128xf32> to vector<8x128xf32>
    %422 = vector.broadcast %419 : f32 to vector<8x128xf32>
    %423 = arith.mulf %421, %422 : vector<8x128xf32>
    %424 = arith.addf %418, %423 : vector<8x128xf32>
    %c66 = arith.constant 66 : index
    %425 = memref.load %arg2[%c66] : memref<100xf32, #tpu.memory_space<smem>>
    %c0_285 = arith.constant 0 : index
    %c36_286 = arith.constant 36 : index
    %c1_287 = arith.constant 1 : index
    %c1_288 = arith.constant 1 : index
    %426 = vector.load %arg1[%c0_285, %c36_286, %c1_287, %c1_288] : memref<1x64x9x129xf32, #tpu.memory_space<vmem>>, vector<1x1x8x128xf32>
    %427 = vector.shape_cast %426 : vector<1x1x8x128xf32> to vector<8x128xf32>
    %428 = vector.broadcast %425 : f32 to vector<8x128xf32>
    %429 = arith.mulf %427, %428 : vector<8x128xf32>
    %430 = arith.addf %424, %429 : vector<8x128xf32>
    %c67 = arith.constant 67 : index
    %431 = memref.load %arg2[%c67] : memref<100xf32, #tpu.memory_space<smem>>
    %c0_289 = arith.constant 0 : index
    %c37_290 = arith.constant 37 : index
    %c1_291 = arith.constant 1 : index
    %c1_292 = arith.constant 1 : index
    %432 = vector.load %arg1[%c0_289, %c37_290, %c1_291, %c1_292] : memref<1x64x9x129xf32, #tpu.memory_space<vmem>>, vector<1x1x8x128xf32>
    %433 = vector.shape_cast %432 : vector<1x1x8x128xf32> to vector<8x128xf32>
    %434 = vector.broadcast %431 : f32 to vector<8x128xf32>
    %435 = arith.mulf %433, %434 : vector<8x128xf32>
    %436 = arith.addf %430, %435 : vector<8x128xf32>
    %c68 = arith.constant 68 : index
    %437 = memref.load %arg2[%c68] : memref<100xf32, #tpu.memory_space<smem>>
    %c0_293 = arith.constant 0 : index
    %c38_294 = arith.constant 38 : index
    %c1_295 = arith.constant 1 : index
    %c1_296 = arith.constant 1 : index
    %438 = vector.load %arg1[%c0_293, %c38_294, %c1_295, %c1_296] : memref<1x64x9x129xf32, #tpu.memory_space<vmem>>, vector<1x1x8x128xf32>
    %439 = vector.shape_cast %438 : vector<1x1x8x128xf32> to vector<8x128xf32>
    %440 = vector.broadcast %437 : f32 to vector<8x128xf32>
    %441 = arith.mulf %439, %440 : vector<8x128xf32>
    %442 = arith.addf %436, %441 : vector<8x128xf32>
    %c69 = arith.constant 69 : index
    %443 = memref.load %arg2[%c69] : memref<100xf32, #tpu.memory_space<smem>>
    %c0_297 = arith.constant 0 : index
    %c39_298 = arith.constant 39 : index
    %c1_299 = arith.constant 1 : index
    %c1_300 = arith.constant 1 : index
    %444 = vector.load %arg1[%c0_297, %c39_298, %c1_299, %c1_300] : memref<1x64x9x129xf32, #tpu.memory_space<vmem>>, vector<1x1x8x128xf32>
    %445 = vector.shape_cast %444 : vector<1x1x8x128xf32> to vector<8x128xf32>
    %446 = vector.broadcast %443 : f32 to vector<8x128xf32>
    %447 = arith.mulf %445, %446 : vector<8x128xf32>
    %448 = arith.addf %442, %447 : vector<8x128xf32>
    %c70 = arith.constant 70 : index
    %449 = memref.load %arg2[%c70] : memref<100xf32, #tpu.memory_space<smem>>
    %c0_301 = arith.constant 0 : index
    %c43_302 = arith.constant 43 : index
    %c1_303 = arith.constant 1 : index
    %c0_304 = arith.constant 0 : index
    %450 = vector.load %arg1[%c0_301, %c43_302, %c1_303, %c0_304] : memref<1x64x9x129xf32, #tpu.memory_space<vmem>>, vector<1x1x8x128xf32>
    %451 = vector.shape_cast %450 : vector<1x1x8x128xf32> to vector<8x128xf32>
    %452 = vector.broadcast %449 : f32 to vector<8x128xf32>
    %453 = arith.mulf %451, %452 : vector<8x128xf32>
    %454 = arith.addf %448, %453 : vector<8x128xf32>
    %c71 = arith.constant 71 : index
    %455 = memref.load %arg2[%c71] : memref<100xf32, #tpu.memory_space<smem>>
    %c0_305 = arith.constant 0 : index
    %c40_306 = arith.constant 40 : index
    %c1_307 = arith.constant 1 : index
    %c1_308 = arith.constant 1 : index
    %456 = vector.load %arg1[%c0_305, %c40_306, %c1_307, %c1_308] : memref<1x64x9x129xf32, #tpu.memory_space<vmem>>, vector<1x1x8x128xf32>
    %457 = vector.shape_cast %456 : vector<1x1x8x128xf32> to vector<8x128xf32>
    %458 = vector.broadcast %455 : f32 to vector<8x128xf32>
    %459 = arith.mulf %457, %458 : vector<8x128xf32>
    %460 = arith.addf %454, %459 : vector<8x128xf32>
    %c72 = arith.constant 72 : index
    %461 = memref.load %arg2[%c72] : memref<100xf32, #tpu.memory_space<smem>>
    %c0_309 = arith.constant 0 : index
    %c41_310 = arith.constant 41 : index
    %c1_311 = arith.constant 1 : index
    %c1_312 = arith.constant 1 : index
    %462 = vector.load %arg1[%c0_309, %c41_310, %c1_311, %c1_312] : memref<1x64x9x129xf32, #tpu.memory_space<vmem>>, vector<1x1x8x128xf32>
    %463 = vector.shape_cast %462 : vector<1x1x8x128xf32> to vector<8x128xf32>
    %464 = vector.broadcast %461 : f32 to vector<8x128xf32>
    %465 = arith.mulf %463, %464 : vector<8x128xf32>
    %466 = arith.addf %460, %465 : vector<8x128xf32>
    %c73 = arith.constant 73 : index
    %467 = memref.load %arg2[%c73] : memref<100xf32, #tpu.memory_space<smem>>
    %c0_313 = arith.constant 0 : index
    %c42_314 = arith.constant 42 : index
    %c1_315 = arith.constant 1 : index
    %c1_316 = arith.constant 1 : index
    %468 = vector.load %arg1[%c0_313, %c42_314, %c1_315, %c1_316] : memref<1x64x9x129xf32, #tpu.memory_space<vmem>>, vector<1x1x8x128xf32>
    %469 = vector.shape_cast %468 : vector<1x1x8x128xf32> to vector<8x128xf32>
    %470 = vector.broadcast %467 : f32 to vector<8x128xf32>
    %471 = arith.mulf %469, %470 : vector<8x128xf32>
    %472 = arith.addf %466, %471 : vector<8x128xf32>
    %c74 = arith.constant 74 : index
    %473 = memref.load %arg2[%c74] : memref<100xf32, #tpu.memory_space<smem>>
    %c0_317 = arith.constant 0 : index
    %c43_318 = arith.constant 43 : index
    %c1_319 = arith.constant 1 : index
    %c1_320 = arith.constant 1 : index
    %474 = vector.load %arg1[%c0_317, %c43_318, %c1_319, %c1_320] : memref<1x64x9x129xf32, #tpu.memory_space<vmem>>, vector<1x1x8x128xf32>
    %475 = vector.shape_cast %474 : vector<1x1x8x128xf32> to vector<8x128xf32>
    %476 = vector.broadcast %473 : f32 to vector<8x128xf32>
    %477 = arith.mulf %475, %476 : vector<8x128xf32>
    %478 = arith.addf %472, %477 : vector<8x128xf32>
    %c0_321 = arith.constant 0 : index
    %c2_322 = arith.constant 2 : index
    %c0_323 = arith.constant 0 : index
    %c0_324 = arith.constant 0 : index
    %479 = vector.load %arg3[%c0_321, %c2_322, %c0_323, %c0_324] : memref<1x4x8x128xf32, #tpu.memory_space<vmem>>, vector<1x1x8x128xf32>
    %480 = vector.shape_cast %479 : vector<1x1x8x128xf32> to vector<8x128xf32>
    %481 = arith.mulf %478, %480 : vector<8x128xf32>
    %c0_325 = arith.constant 0 : index
    %c2_326 = arith.constant 2 : index
    %c0_327 = arith.constant 0 : index
    %c0_328 = arith.constant 0 : index
    %482 = vector.load %arg4[%c0_325, %c2_326, %c0_327, %c0_328] : memref<1x4x8x128xf32, #tpu.memory_space<vmem>>, vector<1x1x8x128xf32>
    %483 = vector.shape_cast %482 : vector<1x1x8x128xf32> to vector<8x128xf32>
    %484 = arith.mulf %483, %480 : vector<8x128xf32>
    %485 = arith.subf %481, %484 : vector<8x128xf32>
    %486 = math.absf %485 : vector<8x128xf32>
    %487 = vector.shape_cast %486 : vector<8x128xf32> to vector<1x8x128xf32>
    %cst_329 = arith.constant dense<0.000000e+00> : vector<1xf32>
    %488 = vector.multi_reduction <add>, %487, %cst_329 [1, 2] : vector<1x8x128xf32> to vector<1xf32>
    %489 = vector.shape_cast %488 : vector<1xf32> to vector<1x1x1xf32>
    %490 = vector.extract %489[0, 0, 0] : f32 from vector<1x1x1xf32>
    %491 = arith.addf %327, %490 : f32
    %cst_330 = arith.constant 0.000000e+00 : f32
    %492 = vector.broadcast %cst_330 : f32 to vector<8x128xf32>
    %c75 = arith.constant 75 : index
    %493 = memref.load %arg2[%c75] : memref<100xf32, #tpu.memory_space<smem>>
    %c0_331 = arith.constant 0 : index
    %c62_332 = arith.constant 62 : index
    %c0_333 = arith.constant 0 : index
    %c0_334 = arith.constant 0 : index
    %494 = vector.load %arg1[%c0_331, %c62_332, %c0_333, %c0_334] : memref<1x64x9x129xf32, #tpu.memory_space<vmem>>, vector<1x1x8x128xf32>
    %495 = vector.shape_cast %494 : vector<1x1x8x128xf32> to vector<8x128xf32>
    %496 = vector.broadcast %493 : f32 to vector<8x128xf32>
    %497 = arith.mulf %495, %496 : vector<8x128xf32>
    %498 = arith.addf %492, %497 : vector<8x128xf32>
    %c76 = arith.constant 76 : index
    %499 = memref.load %arg2[%c76] : memref<100xf32, #tpu.memory_space<smem>>
    %c0_335 = arith.constant 0 : index
    %c63_336 = arith.constant 63 : index
    %c0_337 = arith.constant 0 : index
    %c0_338 = arith.constant 0 : index
    %500 = vector.load %arg1[%c0_335, %c63_336, %c0_337, %c0_338] : memref<1x64x9x129xf32, #tpu.memory_space<vmem>>, vector<1x1x8x128xf32>
    %501 = vector.shape_cast %500 : vector<1x1x8x128xf32> to vector<8x128xf32>
    %502 = vector.broadcast %499 : f32 to vector<8x128xf32>
    %503 = arith.mulf %501, %502 : vector<8x128xf32>
    %504 = arith.addf %498, %503 : vector<8x128xf32>
    %c77 = arith.constant 77 : index
    %505 = memref.load %arg2[%c77] : memref<100xf32, #tpu.memory_space<smem>>
    %c0_339 = arith.constant 0 : index
    %c60_340 = arith.constant 60 : index
    %c0_341 = arith.constant 0 : index
    %c1_342 = arith.constant 1 : index
    %506 = vector.load %arg1[%c0_339, %c60_340, %c0_341, %c1_342] : memref<1x64x9x129xf32, #tpu.memory_space<vmem>>, vector<1x1x8x128xf32>
    %507 = vector.shape_cast %506 : vector<1x1x8x128xf32> to vector<8x128xf32>
    %508 = vector.broadcast %505 : f32 to vector<8x128xf32>
    %509 = arith.mulf %507, %508 : vector<8x128xf32>
    %510 = arith.addf %504, %509 : vector<8x128xf32>
    %c78 = arith.constant 78 : index
    %511 = memref.load %arg2[%c78] : memref<100xf32, #tpu.memory_space<smem>>
    %c0_343 = arith.constant 0 : index
    %c61_344 = arith.constant 61 : index
    %c0_345 = arith.constant 0 : index
    %c1_346 = arith.constant 1 : index
    %512 = vector.load %arg1[%c0_343, %c61_344, %c0_345, %c1_346] : memref<1x64x9x129xf32, #tpu.memory_space<vmem>>, vector<1x1x8x128xf32>
    %513 = vector.shape_cast %512 : vector<1x1x8x128xf32> to vector<8x128xf32>
    %514 = vector.broadcast %511 : f32 to vector<8x128xf32>
    %515 = arith.mulf %513, %514 : vector<8x128xf32>
    %516 = arith.addf %510, %515 : vector<8x128xf32>
    %c79 = arith.constant 79 : index
    %517 = memref.load %arg2[%c79] : memref<100xf32, #tpu.memory_space<smem>>
    %c0_347 = arith.constant 0 : index
    %c62_348 = arith.constant 62 : index
    %c0_349 = arith.constant 0 : index
    %c1_350 = arith.constant 1 : index
    %518 = vector.load %arg1[%c0_347, %c62_348, %c0_349, %c1_350] : memref<1x64x9x129xf32, #tpu.memory_space<vmem>>, vector<1x1x8x128xf32>
    %519 = vector.shape_cast %518 : vector<1x1x8x128xf32> to vector<8x128xf32>
    %520 = vector.broadcast %517 : f32 to vector<8x128xf32>
    %521 = arith.mulf %519, %520 : vector<8x128xf32>
    %522 = arith.addf %516, %521 : vector<8x128xf32>
    %c80 = arith.constant 80 : index
    %523 = memref.load %arg2[%c80] : memref<100xf32, #tpu.memory_space<smem>>
    %c0_351 = arith.constant 0 : index
    %c50_352 = arith.constant 50 : index
    %c1_353 = arith.constant 1 : index
    %c0_354 = arith.constant 0 : index
    %524 = vector.load %arg1[%c0_351, %c50_352, %c1_353, %c0_354] : memref<1x64x9x129xf32, #tpu.memory_space<vmem>>, vector<1x1x8x128xf32>
    %525 = vector.shape_cast %524 : vector<1x1x8x128xf32> to vector<8x128xf32>
    %526 = vector.broadcast %523 : f32 to vector<8x128xf32>
    %527 = arith.mulf %525, %526 : vector<8x128xf32>
    %528 = arith.addf %522, %527 : vector<8x128xf32>
    %c81 = arith.constant 81 : index
    %529 = memref.load %arg2[%c81] : memref<100xf32, #tpu.memory_space<smem>>
    %c0_355 = arith.constant 0 : index
    %c51_356 = arith.constant 51 : index
    %c1_357 = arith.constant 1 : index
    %c0_358 = arith.constant 0 : index
    %530 = vector.load %arg1[%c0_355, %c51_356, %c1_357, %c0_358] : memref<1x64x9x129xf32, #tpu.memory_space<vmem>>, vector<1x1x8x128xf32>
    %531 = vector.shape_cast %530 : vector<1x1x8x128xf32> to vector<8x128xf32>
    %532 = vector.broadcast %529 : f32 to vector<8x128xf32>
    %533 = arith.mulf %531, %532 : vector<8x128xf32>
    %534 = arith.addf %528, %533 : vector<8x128xf32>
    %c82 = arith.constant 82 : index
    %535 = memref.load %arg2[%c82] : memref<100xf32, #tpu.memory_space<smem>>
    %c0_359 = arith.constant 0 : index
    %c48_360 = arith.constant 48 : index
    %c1_361 = arith.constant 1 : index
    %c1_362 = arith.constant 1 : index
    %536 = vector.load %arg1[%c0_359, %c48_360, %c1_361, %c1_362] : memref<1x64x9x129xf32, #tpu.memory_space<vmem>>, vector<1x1x8x128xf32>
    %537 = vector.shape_cast %536 : vector<1x1x8x128xf32> to vector<8x128xf32>
    %538 = vector.broadcast %535 : f32 to vector<8x128xf32>
    %539 = arith.mulf %537, %538 : vector<8x128xf32>
    %540 = arith.addf %534, %539 : vector<8x128xf32>
    %c83 = arith.constant 83 : index
    %541 = memref.load %arg2[%c83] : memref<100xf32, #tpu.memory_space<smem>>
    %c0_363 = arith.constant 0 : index
    %c49_364 = arith.constant 49 : index
    %c1_365 = arith.constant 1 : index
    %c1_366 = arith.constant 1 : index
    %542 = vector.load %arg1[%c0_363, %c49_364, %c1_365, %c1_366] : memref<1x64x9x129xf32, #tpu.memory_space<vmem>>, vector<1x1x8x128xf32>
    %543 = vector.shape_cast %542 : vector<1x1x8x128xf32> to vector<8x128xf32>
    %544 = vector.broadcast %541 : f32 to vector<8x128xf32>
    %545 = arith.mulf %543, %544 : vector<8x128xf32>
    %546 = arith.addf %540, %545 : vector<8x128xf32>
    %c84 = arith.constant 84 : index
    %547 = memref.load %arg2[%c84] : memref<100xf32, #tpu.memory_space<smem>>
    %c0_367 = arith.constant 0 : index
    %c50_368 = arith.constant 50 : index
    %c1_369 = arith.constant 1 : index
    %c1_370 = arith.constant 1 : index
    %548 = vector.load %arg1[%c0_367, %c50_368, %c1_369, %c1_370] : memref<1x64x9x129xf32, #tpu.memory_space<vmem>>, vector<1x1x8x128xf32>
    %549 = vector.shape_cast %548 : vector<1x1x8x128xf32> to vector<8x128xf32>
    %550 = vector.broadcast %547 : f32 to vector<8x128xf32>
    %551 = arith.mulf %549, %550 : vector<8x128xf32>
    %552 = arith.addf %546, %551 : vector<8x128xf32>
    %c85 = arith.constant 85 : index
    %553 = memref.load %arg2[%c85] : memref<100xf32, #tpu.memory_space<smem>>
    %c0_371 = arith.constant 0 : index
    %c54_372 = arith.constant 54 : index
    %c1_373 = arith.constant 1 : index
    %c0_374 = arith.constant 0 : index
    %554 = vector.load %arg1[%c0_371, %c54_372, %c1_373, %c0_374] : memref<1x64x9x129xf32, #tpu.memory_space<vmem>>, vector<1x1x8x128xf32>
    %555 = vector.shape_cast %554 : vector<1x1x8x128xf32> to vector<8x128xf32>
    %556 = vector.broadcast %553 : f32 to vector<8x128xf32>
    %557 = arith.mulf %555, %556 : vector<8x128xf32>
    %558 = arith.addf %552, %557 : vector<8x128xf32>
    %c86 = arith.constant 86 : index
    %559 = memref.load %arg2[%c86] : memref<100xf32, #tpu.memory_space<smem>>
    %c0_375 = arith.constant 0 : index
    %c55_376 = arith.constant 55 : index
    %c1_377 = arith.constant 1 : index
    %c0_378 = arith.constant 0 : index
    %560 = vector.load %arg1[%c0_375, %c55_376, %c1_377, %c0_378] : memref<1x64x9x129xf32, #tpu.memory_space<vmem>>, vector<1x1x8x128xf32>
    %561 = vector.shape_cast %560 : vector<1x1x8x128xf32> to vector<8x128xf32>
    %562 = vector.broadcast %559 : f32 to vector<8x128xf32>
    %563 = arith.mulf %561, %562 : vector<8x128xf32>
    %564 = arith.addf %558, %563 : vector<8x128xf32>
    %c87 = arith.constant 87 : index
    %565 = memref.load %arg2[%c87] : memref<100xf32, #tpu.memory_space<smem>>
    %c0_379 = arith.constant 0 : index
    %c52_380 = arith.constant 52 : index
    %c1_381 = arith.constant 1 : index
    %c1_382 = arith.constant 1 : index
    %566 = vector.load %arg1[%c0_379, %c52_380, %c1_381, %c1_382] : memref<1x64x9x129xf32, #tpu.memory_space<vmem>>, vector<1x1x8x128xf32>
    %567 = vector.shape_cast %566 : vector<1x1x8x128xf32> to vector<8x128xf32>
    %568 = vector.broadcast %565 : f32 to vector<8x128xf32>
    %569 = arith.mulf %567, %568 : vector<8x128xf32>
    %570 = arith.addf %564, %569 : vector<8x128xf32>
    %c88 = arith.constant 88 : index
    %571 = memref.load %arg2[%c88] : memref<100xf32, #tpu.memory_space<smem>>
    %c0_383 = arith.constant 0 : index
    %c53_384 = arith.constant 53 : index
    %c1_385 = arith.constant 1 : index
    %c1_386 = arith.constant 1 : index
    %572 = vector.load %arg1[%c0_383, %c53_384, %c1_385, %c1_386] : memref<1x64x9x129xf32, #tpu.memory_space<vmem>>, vector<1x1x8x128xf32>
    %573 = vector.shape_cast %572 : vector<1x1x8x128xf32> to vector<8x128xf32>
    %574 = vector.broadcast %571 : f32 to vector<8x128xf32>
    %575 = arith.mulf %573, %574 : vector<8x128xf32>
    %576 = arith.addf %570, %575 : vector<8x128xf32>
    %c89 = arith.constant 89 : index
    %577 = memref.load %arg2[%c89] : memref<100xf32, #tpu.memory_space<smem>>
    %c0_387 = arith.constant 0 : index
    %c54_388 = arith.constant 54 : index
    %c1_389 = arith.constant 1 : index
    %c1_390 = arith.constant 1 : index
    %578 = vector.load %arg1[%c0_387, %c54_388, %c1_389, %c1_390] : memref<1x64x9x129xf32, #tpu.memory_space<vmem>>, vector<1x1x8x128xf32>
    %579 = vector.shape_cast %578 : vector<1x1x8x128xf32> to vector<8x128xf32>
    %580 = vector.broadcast %577 : f32 to vector<8x128xf32>
    %581 = arith.mulf %579, %580 : vector<8x128xf32>
    %582 = arith.addf %576, %581 : vector<8x128xf32>
    %c90 = arith.constant 90 : index
    %583 = memref.load %arg2[%c90] : memref<100xf32, #tpu.memory_space<smem>>
    %c0_391 = arith.constant 0 : index
    %c58_392 = arith.constant 58 : index
    %c1_393 = arith.constant 1 : index
    %c0_394 = arith.constant 0 : index
    %584 = vector.load %arg1[%c0_391, %c58_392, %c1_393, %c0_394] : memref<1x64x9x129xf32, #tpu.memory_space<vmem>>, vector<1x1x8x128xf32>
    %585 = vector.shape_cast %584 : vector<1x1x8x128xf32> to vector<8x128xf32>
    %586 = vector.broadcast %583 : f32 to vector<8x128xf32>
    %587 = arith.mulf %585, %586 : vector<8x128xf32>
    %588 = arith.addf %582, %587 : vector<8x128xf32>
    %c91 = arith.constant 91 : index
    %589 = memref.load %arg2[%c91] : memref<100xf32, #tpu.memory_space<smem>>
    %c0_395 = arith.constant 0 : index
    %c59_396 = arith.constant 59 : index
    %c1_397 = arith.constant 1 : index
    %c0_398 = arith.constant 0 : index
    %590 = vector.load %arg1[%c0_395, %c59_396, %c1_397, %c0_398] : memref<1x64x9x129xf32, #tpu.memory_space<vmem>>, vector<1x1x8x128xf32>
    %591 = vector.shape_cast %590 : vector<1x1x8x128xf32> to vector<8x128xf32>
    %592 = vector.broadcast %589 : f32 to vector<8x128xf32>
    %593 = arith.mulf %591, %592 : vector<8x128xf32>
    %594 = arith.addf %588, %593 : vector<8x128xf32>
    %c92 = arith.constant 92 : index
    %595 = memref.load %arg2[%c92] : memref<100xf32, #tpu.memory_space<smem>>
    %c0_399 = arith.constant 0 : index
    %c56_400 = arith.constant 56 : index
    %c1_401 = arith.constant 1 : index
    %c1_402 = arith.constant 1 : index
    %596 = vector.load %arg1[%c0_399, %c56_400, %c1_401, %c1_402] : memref<1x64x9x129xf32, #tpu.memory_space<vmem>>, vector<1x1x8x128xf32>
    %597 = vector.shape_cast %596 : vector<1x1x8x128xf32> to vector<8x128xf32>
    %598 = vector.broadcast %595 : f32 to vector<8x128xf32>
    %599 = arith.mulf %597, %598 : vector<8x128xf32>
    %600 = arith.addf %594, %599 : vector<8x128xf32>
    %c93 = arith.constant 93 : index
    %601 = memref.load %arg2[%c93] : memref<100xf32, #tpu.memory_space<smem>>
    %c0_403 = arith.constant 0 : index
    %c57_404 = arith.constant 57 : index
    %c1_405 = arith.constant 1 : index
    %c1_406 = arith.constant 1 : index
    %602 = vector.load %arg1[%c0_403, %c57_404, %c1_405, %c1_406] : memref<1x64x9x129xf32, #tpu.memory_space<vmem>>, vector<1x1x8x128xf32>
    %603 = vector.shape_cast %602 : vector<1x1x8x128xf32> to vector<8x128xf32>
    %604 = vector.broadcast %601 : f32 to vector<8x128xf32>
    %605 = arith.mulf %603, %604 : vector<8x128xf32>
    %606 = arith.addf %600, %605 : vector<8x128xf32>
    %c94 = arith.constant 94 : index
    %607 = memref.load %arg2[%c94] : memref<100xf32, #tpu.memory_space<smem>>
    %c0_407 = arith.constant 0 : index
    %c58_408 = arith.constant 58 : index
    %c1_409 = arith.constant 1 : index
    %c1_410 = arith.constant 1 : index
    %608 = vector.load %arg1[%c0_407, %c58_408, %c1_409, %c1_410] : memref<1x64x9x129xf32, #tpu.memory_space<vmem>>, vector<1x1x8x128xf32>
    %609 = vector.shape_cast %608 : vector<1x1x8x128xf32> to vector<8x128xf32>
    %610 = vector.broadcast %607 : f32 to vector<8x128xf32>
    %611 = arith.mulf %609, %610 : vector<8x128xf32>
    %612 = arith.addf %606, %611 : vector<8x128xf32>
    %c95 = arith.constant 95 : index
    %613 = memref.load %arg2[%c95] : memref<100xf32, #tpu.memory_space<smem>>
    %c0_411 = arith.constant 0 : index
    %c62_412 = arith.constant 62 : index
    %c1_413 = arith.constant 1 : index
    %c0_414 = arith.constant 0 : index
    %614 = vector.load %arg1[%c0_411, %c62_412, %c1_413, %c0_414] : memref<1x64x9x129xf32, #tpu.memory_space<vmem>>, vector<1x1x8x128xf32>
    %615 = vector.shape_cast %614 : vector<1x1x8x128xf32> to vector<8x128xf32>
    %616 = vector.broadcast %613 : f32 to vector<8x128xf32>
    %617 = arith.mulf %615, %616 : vector<8x128xf32>
    %618 = arith.addf %612, %617 : vector<8x128xf32>
    %c96 = arith.constant 96 : index
    %619 = memref.load %arg2[%c96] : memref<100xf32, #tpu.memory_space<smem>>
    %c0_415 = arith.constant 0 : index
    %c63_416 = arith.constant 63 : index
    %c1_417 = arith.constant 1 : index
    %c0_418 = arith.constant 0 : index
    %620 = vector.load %arg1[%c0_415, %c63_416, %c1_417, %c0_418] : memref<1x64x9x129xf32, #tpu.memory_space<vmem>>, vector<1x1x8x128xf32>
    %621 = vector.shape_cast %620 : vector<1x1x8x128xf32> to vector<8x128xf32>
    %622 = vector.broadcast %619 : f32 to vector<8x128xf32>
    %623 = arith.mulf %621, %622 : vector<8x128xf32>
    %624 = arith.addf %618, %623 : vector<8x128xf32>
    %c97 = arith.constant 97 : index
    %625 = memref.load %arg2[%c97] : memref<100xf32, #tpu.memory_space<smem>>
    %c0_419 = arith.constant 0 : index
    %c60_420 = arith.constant 60 : index
    %c1_421 = arith.constant 1 : index
    %c1_422 = arith.constant 1 : index
    %626 = vector.load %arg1[%c0_419, %c60_420, %c1_421, %c1_422] : memref<1x64x9x129xf32, #tpu.memory_space<vmem>>, vector<1x1x8x128xf32>
    %627 = vector.shape_cast %626 : vector<1x1x8x128xf32> to vector<8x128xf32>
    %628 = vector.broadcast %625 : f32 to vector<8x128xf32>
    %629 = arith.mulf %627, %628 : vector<8x128xf32>
    %630 = arith.addf %624, %629 : vector<8x128xf32>
    %c98 = arith.constant 98 : index
    %631 = memref.load %arg2[%c98] : memref<100xf32, #tpu.memory_space<smem>>
    %c0_423 = arith.constant 0 : index
    %c61_424 = arith.constant 61 : index
    %c1_425 = arith.constant 1 : index
    %c1_426 = arith.constant 1 : index
    %632 = vector.load %arg1[%c0_423, %c61_424, %c1_425, %c1_426] : memref<1x64x9x129xf32, #tpu.memory_space<vmem>>, vector<1x1x8x128xf32>
    %633 = vector.shape_cast %632 : vector<1x1x8x128xf32> to vector<8x128xf32>
    %634 = vector.broadcast %631 : f32 to vector<8x128xf32>
    %635 = arith.mulf %633, %634 : vector<8x128xf32>
    %636 = arith.addf %630, %635 : vector<8x128xf32>
    %c99 = arith.constant 99 : index
    %637 = memref.load %arg2[%c99] : memref<100xf32, #tpu.memory_space<smem>>
    %c0_427 = arith.constant 0 : index
    %c62_428 = arith.constant 62 : index
    %c1_429 = arith.constant 1 : index
    %c1_430 = arith.constant 1 : index
    %638 = vector.load %arg1[%c0_427, %c62_428, %c1_429, %c1_430] : memref<1x64x9x129xf32, #tpu.memory_space<vmem>>, vector<1x1x8x128xf32>
    %639 = vector.shape_cast %638 : vector<1x1x8x128xf32> to vector<8x128xf32>
    %640 = vector.broadcast %637 : f32 to vector<8x128xf32>
    %641 = arith.mulf %639, %640 : vector<8x128xf32>
    %642 = arith.addf %636, %641 : vector<8x128xf32>
    %c0_431 = arith.constant 0 : index
    %c3_432 = arith.constant 3 : index
    %c0_433 = arith.constant 0 : index
    %c0_434 = arith.constant 0 : index
    %643 = vector.load %arg3[%c0_431, %c3_432, %c0_433, %c0_434] : memref<1x4x8x128xf32, #tpu.memory_space<vmem>>, vector<1x1x8x128xf32>
    %644 = vector.shape_cast %643 : vector<1x1x8x128xf32> to vector<8x128xf32>
    %645 = arith.mulf %642, %644 : vector<8x128xf32>
    %c0_435 = arith.constant 0 : index
    %c3_436 = arith.constant 3 : index
    %c0_437 = arith.constant 0 : index
    %c0_438 = arith.constant 0 : index
    %646 = vector.load %arg4[%c0_435, %c3_436, %c0_437, %c0_438] : memref<1x4x8x128xf32, #tpu.memory_space<vmem>>, vector<1x1x8x128xf32>
    %647 = vector.shape_cast %646 : vector<1x1x8x128xf32> to vector<8x128xf32>
    %648 = arith.mulf %647, %644 : vector<8x128xf32>
    %649 = arith.subf %645, %648 : vector<8x128xf32>
    %650 = math.absf %649 : vector<8x128xf32>
    %651 = vector.shape_cast %650 : vector<8x128xf32> to vector<1x8x128xf32>
    %cst_439 = arith.constant dense<0.000000e+00> : vector<1xf32>
    %652 = vector.multi_reduction <add>, %651, %cst_439 [1, 2] : vector<1x8x128xf32> to vector<1xf32>
    %653 = vector.shape_cast %652 : vector<1xf32> to vector<1x1x1xf32>
    %654 = vector.extract %653[0, 0, 0] : f32 from vector<1x1x1xf32>
    %655 = arith.addf %491, %654 : f32
    %656 = vector.broadcast %655 : f32 to vector<1x8x128xf32>
    %c0_440 = arith.constant 0 : index
    %c0_441 = arith.constant 0 : index
    %c0_442 = arith.constant 0 : index
    %657 = vector.load %arg5[%c0_440, %c0_441, %c0_442] : memref<1x8x128xf32, #tpu.memory_space<vmem>>, vector<1x8x128xf32>
    tpu.vector_store %arg5[%c0_440, %c0_441, %c0_442], %656 {strides = array<i32>} : memref<1x8x128xf32, #tpu.memory_space<vmem>>, vector<1x8x128xf32>,
    return
  }
  func.func @transform_0(%arg0: i32) -> (i32, i32, i32, i32) {
    %c0_i32 = arith.constant 0 : i32
    %c0_i32_0 = arith.constant 0 : i32
    %c0_i32_1 = arith.constant 0 : i32
    %c0_i32_2 = arith.constant 0 : i32
    return %arg0, %c0_i32, %c0_i32_0, %c0_i32_1 : i32, i32, i32, i32
  }
  func.func @transform_1(%arg0: i32) -> i32 {
    %c0_i32 = arith.constant 0 : i32
    %c0_i32_0 = arith.constant 0 : i32
    return %c0_i32 : i32
  }
  func.func @transform_2(%arg0: i32) -> (i32, i32, i32, i32) {
    %c0_i32 = arith.constant 0 : i32
    %c0_i32_0 = arith.constant 0 : i32
    %c0_i32_1 = arith.constant 0 : i32
    %c0_i32_2 = arith.constant 0 : i32
    %c0_i32_3 = arith.constant 0 : i32
    return %c0_i32, %c0_i32_0, %c0_i32_1, %c0_i32_2 : i32, i32, i32, i32
  }
  func.func @transform_3(%arg0: i32) -> (i32, i32, i32, i32) {
    %c0_i32 = arith.constant 0 : i32
    %c0_i32_0 = arith.constant 0 : i32
    %c0_i32_1 = arith.constant 0 : i32
    %c0_i32_2 = arith.constant 0 : i32
    return %arg0, %c0_i32, %c0_i32_0, %c0_i32_1 : i32, i32, i32, i32
  }
  func.func @transform_4(%arg0: i32) -> (i32, i32, i32) {
    %c0_i32 = arith.constant 0 : i32
    %c0_i32_0 = arith.constant 0 : i32
    %c0_i32_1 = arith.constant 0 : i32
    return %arg0, %c0_i32, %c0_i32_0 : i32, i32, i32
  }
}

</mosaic_0001>

<llo_original>
// kernel: tpu_custom_call.1
$region0: #{tpu_custom_call.1}
  #allocation0 [shape = 'u32[]', space=smem, size = 0x4, offset = 0x4, fixed_abs, tag = 'smem constant byte address 0x4 - core index']
  #allocation1 [shape = 'u32[144,128]{1,0:T(1,128)}', space=vmem, size = 0x12000, scoped, tag = 'internal scratch']
  %s0 = inlined_call_operand.vmem [shape: f32[2,64,9,129], index: 0, kind: input, shape index: {}]
  %s1 = inlined_call_operand.vmem [shape: f32[100], index: 1, kind: input, shape index: {}]
  %s2 = inlined_call_operand.vmem [shape: f32[1,4,8,128], index: 2, kind: input, shape index: {}]
  %s3 = inlined_call_operand.vmem [shape: f32[2,4,8,128], index: 3, kind: input, shape index: {}]
  %s4 = inlined_call_operand.hbm [shape: f32[2,8,128], index: 4, kind: output, shape index: {}]
  %s5 = sld [smem:[#allocation0]]
  $region53: #{tpu_custom_call.1} parent=0
    _
  %s7 = ssub.s32 1, %s5
  %s8 = scalar_select 0, %s7, %s5
  $region1: #{tpu_custom_call.1} parent=0
    #allocation2 [shape = 'u8[512]{0}', space=smem, size = 0x200, scoped, tag = 'input window, operand 1, single buffered']
    #allocation3 [shape = 's32[2]{0}', space=sflag, size = 0x8, scoped, tag = 'scoped memory for tpu_custom_call.1']
    #allocation4 [shape = 's32[2]{0}', space=sflag, size = 0x8, scoped, tag = 'scoped memory for tpu_custom_call.1']
    #allocation5 [shape = 'u8[8192]{0}', space=vmem, size = 0x2000, scoped, tag = 'output window, operand 0']
    %9 = vsyncpa [#allocation4], 0
    %10 = vsyncpa [#allocation3], 0
    %s11 = scalar_lea.sflag [#allocation3], 1
    %12 = vsyncpa %s11, 0
    loop: start=0, step=1, limit=4
    $region2: #{tpu_custom_call.1} parent=1 // loop_pre_header
      _
    $region3: #{tpu_custom_call.1} parent=1 // loop_header
      %s14 = sphi 0, %s18
      %p15 = scmp.ge.s32.totalorder %s14, 4
      %s24 = sphi 0, %s26
      %s27 = sphi 0, %s24
      %s28 = sphi 0, %s27
      %s44 = sphi 0, %s28
      %s48 = sphi 0, %s48
      %s50 = sphi 0, %s48
      %s51 = sphi 0, %s50
      %s65 = sphi 0, %s51
      %s69 = sphi 0, %s69
      %s71 = sphi 0, %s69
      %s72 = sphi 0, %s71
      %s86 = sphi 0, %s72
      %s92 = sphi 0, %s94
      %s95 = sphi 0, %s92
      %s96 = sphi 0, %s95
      %s112 = sphi 0, %s96
      %s118 = sphi 0, %s120
      %s121 = sphi 0, %s118
      %s122 = sphi 0, %s121
      %s138 = sphi 0, %s122
    $region4: #{tpu_custom_call.1} parent=1 // loop_header_branch
      %17 = sbr.rel (%p15) target = $region8
    $region5: #{tpu_custom_call.1} parent=1 // loop_body
      %s19 = ssub.s32 %s14, 1
      %s20 = ssub.s32 %s14, 2
      %s21 = sadd.s32 %s14, 1
      %s22 = ssub.s32 %s14, %s21
      %p23 = scmp.eq.s32.totalorder %s22, 0
      %s25 = sadd.s32 %s24, 1
      %s26 = scalar_select %p23, %s24, %s25
      %p29 = pneg %p23
      %p30 = scmp.eq.s32.totalorder %s14, 1
      %p31 = por %p29, %p30
      %p32 = scmp.ne.s32.totalorder %s24, %s27
      %p33 = scmp.eq.s32.totalorder %s14, 0
      %p34 = por %p32, %p33
      %p35 = scmp.ne.s32.totalorder %s24, %s27
      %p36 = scmp.eq.s32.totalorder %s19, 1
      %p37 = por %p35, %p36
      %p38 = scmp.ne.s32.totalorder %s27, %s28
      %p39 = scmp.eq.s32.totalorder %s19, 0
      %p40 = por %p38, %p39
      %p41 = scmp.ne.s32.totalorder %s27, %s28
      %p42 = scmp.eq.s32.totalorder %s20, 1
      %p43 = por %p41, %p42
      %p45 = scmp.ne.s32.totalorder %s28, %s44
      %p46 = scmp.eq.s32.totalorder %s20, 0
      %p47 = por %p45, %p46
      %s49 = sadd.s32 %s48, 1
      %p52 = scmp.eq.s32.totalorder %s14, 1
      %p53 = scmp.ne.s32.totalorder %s48, %s50
      %p54 = scmp.eq.s32.totalorder %s14, 0
      %p55 = por %p53, %p54
      %p56 = scmp.ne.s32.totalorder %s48, %s50
      %p57 = scmp.eq.s32.totalorder %s19, 1
      %p58 = por %p56, %p57
      %p59 = scmp.ne.s32.totalorder %s50, %s51
      %p60 = scmp.eq.s32.totalorder %s19, 0
      %p61 = por %p59, %p60
      %p62 = scmp.ne.s32.totalorder %s50, %s51
      %p63 = scmp.eq.s32.totalorder %s20, 1
      %p64 = por %p62, %p63
      %p66 = scmp.ne.s32.totalorder %s51, %s65
      %p67 = scmp.eq.s32.totalorder %s20, 0
      %p68 = por %p66, %p67
      %s70 = sadd.s32 %s69, 1
      %p73 = scmp.eq.s32.totalorder %s14, 1
      %p74 = scmp.ne.s32.totalorder %s69, %s71
      %p75 = scmp.eq.s32.totalorder %s14, 0
      %p76 = por %p74, %p75
      %p77 = scmp.ne.s32.totalorder %s69, %s71
      %p78 = scmp.eq.s32.totalorder %s19, 1
      %p79 = por %p77, %p78
      %p80 = scmp.ne.s32.totalorder %s71, %s72
      %p81 = scmp.eq.s32.totalorder %s19, 0
      %p82 = por %p80, %p81
      %p83 = scmp.ne.s32.totalorder %s71, %s72
      %p84 = scmp.eq.s32.totalorder %s20, 1
      %p85 = por %p83, %p84
      %p87 = scmp.ne.s32.totalorder %s72, %s86
      %p88 = scmp.eq.s32.totalorder %s20, 0
      %p89 = por %p87, %p88
      %s90 = ssub.s32 %s14, %s21
      %p91 = scmp.eq.s32.totalorder %s90, 0
      %s93 = sadd.s32 %s92, 1
      %s94 = scalar_select %p91, %s92, %s93
      %p97 = pneg %p91
      %p98 = scmp.eq.s32.totalorder %s14, 1
      %p99 = por %p97, %p98
      %p100 = scmp.ne.s32.totalorder %s92, %s95
      %p101 = scmp.eq.s32.totalorder %s14, 0
      %p102 = por %p100, %p101
      %p103 = scmp.ne.s32.totalorder %s92, %s95
      %p104 = scmp.eq.s32.totalorder %s19, 1
      %p105 = por %p103, %p104
      %p106 = scmp.ne.s32.totalorder %s95, %s96
      %p107 = scmp.eq.s32.totalorder %s19, 0
      %p108 = por %p106, %p107
      %p109 = scmp.ne.s32.totalorder %s95, %s96
      %p110 = scmp.eq.s32.totalorder %s20, 1
      %p111 = por %p109, %p110
      %p113 = scmp.ne.s32.totalorder %s96, %s112
      %p114 = scmp.eq.s32.totalorder %s20, 0
      %p115 = por %p113, %p114
      %s116 = ssub.s32 %s14, %s21
      %p117 = scmp.eq.s32.totalorder %s116, 0
      %s119 = sadd.s32 %s118, 1
      %s120 = scalar_select %p117, %s118, %s119
      %p123 = pneg %p117
      %p124 = scmp.eq.s32.totalorder %s14, 1
      %p125 = por %p123, %p124
      %p126 = scmp.ne.s32.totalorder %s118, %s121
      %p127 = scmp.eq.s32.totalorder %s14, 0
      %p128 = por %p126, %p127
      %p129 = scmp.ne.s32.totalorder %s118, %s121
      %p130 = scmp.eq.s32.totalorder %s19, 1
      %p131 = por %p129, %p130
      %p132 = scmp.ne.s32.totalorder %s121, %s122
      %p133 = scmp.eq.s32.totalorder %s19, 0
      %p134 = por %p132, %p133
      %p135 = scmp.ne.s32.totalorder %s121, %s122
      %p136 = scmp.eq.s32.totalorder %s20, 1
      %p137 = por %p135, %p136
      %p139 = scmp.ne.s32.totalorder %s122, %s138
      %p140 = scmp.eq.s32.totalorder %s20, 0
      %p141 = por %p139, %p140
      %p142 = scmp.le.s32.totalorder 1, %s14
      %p143 = scmp.lt.s32.totalorder %s14, 3
      %p144 = pnand %p142, %p143
      %p145 = pneg %p144
      // Predicated region
      $region9: #{tpu_custom_call.1} parent=5 // pred_check
        _
      $region10: #{tpu_custom_call.1} parent=5 // pred_check_branch
        %147 = sbr.rel (%p144) target = $region12
      $region11: #{tpu_custom_call.1} parent=5 // pred_region
        %s148 = ssub.s32 %s14, 1
        // Predicated region
        $region13: #{tpu_custom_call.1} parent=11 // pred_check
          %p149 = pneg %p61
        $region14: #{tpu_custom_call.1} parent=11 // pred_check_branch
          %151 = sbr.rel (%p149) target = $region16
        $region15: #{tpu_custom_call.1} parent=11 // pred_region
          %s153 = ssub.s32 16, 16
          %154 = vsyncadd [#allocation4], %s153
          %s156 = sshll.u32 %s1, 4
          %s157 = int_to_ptr.vmem [resolvable:$true] %s156
          %159 = dma.vmem_to_smem %s157, 16, [#allocation2], [#allocation4]
        $region16: #{tpu_custom_call.1} parent=11 // pred_fallthru
          _
        // Predicated region
        $region17: #{tpu_custom_call.1} parent=11 // pred_check
          %p160 = pneg %p82
        $region18: #{tpu_custom_call.1} parent=11 // pred_check_branch
          %162 = sbr.rel (%p160) target = $region20
        $region19: #{tpu_custom_call.1} parent=11 // pred_region
          _
        $region20: #{tpu_custom_call.1} parent=11 // pred_fallthru
          _
      $region12: #{tpu_custom_call.1} parent=5 // pred_fallthru
        _
      %p163 = scmp.lt.s32.totalorder %s14, 2
      // Predicated region
      $region21: #{tpu_custom_call.1} parent=5 // pred_check
        %p164 = pneg %p163
      $region22: #{tpu_custom_call.1} parent=5 // pred_check_branch
        %166 = sbr.rel (%p164) target = $region24
      $region23: #{tpu_custom_call.1} parent=5 // pred_region
        // Predicated region
        $region25: #{tpu_custom_call.1} parent=23 // pred_check
          %p167 = pneg %p34
        $region26: #{tpu_custom_call.1} parent=23 // pred_check_branch
          %169 = sbr.rel (%p167) target = $region28
        $region27: #{tpu_custom_call.1} parent=23 // pred_region
          %p170 = scmp.lt.s32.totalorder %s14, 1
          %s171 = scalar_select %p170, %s14, 1
          %s172 = smul.addr %s171, 256
          %s173 = smul.addr %s172, 8
          %s174 = scalar_lea.vmem %s0, %s173
        $region28: #{tpu_custom_call.1} parent=23 // pred_fallthru
          _
        // Predicated region
        $region29: #{tpu_custom_call.1} parent=23 // pred_check
          %p175 = pneg %p102
        $region30: #{tpu_custom_call.1} parent=23 // pred_check_branch
          %177 = sbr.rel (%p175) target = $region32
        $region31: #{tpu_custom_call.1} parent=23 // pred_region
          %p178 = scmp.lt.s32.totalorder %s14, 1
          %s179 = scalar_select %p178, %s14, 1
          %s180 = smul.addr %s179, 4
          %s181 = smul.addr %s180, 8
          %s182 = scalar_lea.vmem %s3, %s181
        $region32: #{tpu_custom_call.1} parent=23 // pred_fallthru
          _
      $region24: #{tpu_custom_call.1} parent=5 // pred_fallthru
        _
      %p183 = scmp.le.s32.totalorder 1, %s14
      %p184 = scmp.lt.s32.totalorder %s14, 3
      %p185 = pnand %p183, %p184
      %p186 = pneg %p185
      // Predicated region
      $region33: #{tpu_custom_call.1} parent=5 // pred_check
        _
      $region34: #{tpu_custom_call.1} parent=5 // pred_check_branch
        %188 = sbr.rel (%p185) target = $region36
      $region35: #{tpu_custom_call.1} parent=5 // pred_region
        %s189 = ssub.s32 %s14, 1
        // Predicated region
        $region37: #{tpu_custom_call.1} parent=35 // pred_check
          %p190 = pneg %p61
        $region38: #{tpu_custom_call.1} parent=35 // pred_check_branch
          %192 = sbr.rel (%p190) target = $region40
        $region39: #{tpu_custom_call.1} parent=35 // pred_region
          %193 = dma.done [#allocation4], 16
        $region40: #{tpu_custom_call.1} parent=35 // pred_fallthru
          _
        %194 = sfence
        %p195 = scmp.lt.s32.totalorder %s19, 1
        %s196 = scalar_select %p195, %s19, 1
        %s197 = smul.addr %s196, 256
        %s198 = smul.addr %s197, 8
        %s199 = scalar_lea.vmem %s0, %s198
        %p200 = pneg %p40
        %p201 = pneg %p37
        %p202 = pneg %p61
        %p203 = pneg %p58
        %p204 = pneg %p82
        %p205 = pneg %p79
        %p206 = scmp.lt.s32.totalorder %s19, 1
        %s207 = scalar_select %p206, %s19, 1
        %s208 = smul.addr %s207, 4
        %s209 = smul.addr %s208, 8
        %s210 = scalar_lea.vmem %s3, %s209
        %p211 = pneg %p108
        %p212 = pneg %p105
        %p213 = pneg %p134
        %p214 = pneg %p131
        %s215 = sand.u32 %s121, 1
        %s216 = scalar_lea.sflag [#allocation3], %s215
        %s217 = sand.u32 %s121, 1
        %s218 = smul.addr %s217, 8
        %s219 = scalar_lea.vmem [#allocation5], %s218
        %p220 = scmp.lt.s32.totalorder %s19, 1
        %s221 = scalar_select %p220, %s19, 1
        %s222 = smul.addr %s221, 256
        %s223 = smul.addr %s222, 8
        %s224 = scalar_lea.vmem %s0, %s223
        %p225 = scmp.lt.s32.totalorder %s19, 1
        %s226 = scalar_select %p225, %s19, 1
        %s227 = smul.addr %s226, 4
        %s228 = smul.addr %s227, 8
        %s229 = scalar_lea.vmem %s3, %s228
        %s230 = sld [smem:[#allocation2]]
        %s231 = scalar_lea.vmem %s224, 352
        %v232 = vld [vmem:[%s231] sm:$0xff]
        %v233 = vstv %s230
        %v234 = vmul.f32 %v232, %v233
        %v235 = vadd.f32 %v234, 0.0
        %s236 = sld [smem:[#allocation2 + $0x1]]
        %s237 = scalar_lea.vmem %s224, 256
        %v238 = vld [vmem:[%s237] sm:$0xff]
        %v239 = vld [vmem:[%s237 + $0x8] sm:$0xff]
        %v240 = vstv %s236
        %v241 = vmul.f32 %v238, %v240
        %v242 = vmul.f32 %v239, %v240
        %245 = vrot.lane.b32.xlu0 %v241, 127
        %v246 = vpop.permute.xlu0 %245
        %247 = vrot.lane.b32.xlu0 %v242, 127
        %v248 = vpop.permute.xlu0 %247
        %vm249 = vcmask 1039360
        %v250 = vsel %vm249, %v246, %v248
        %v252 = vadd.f32 %v235, %v250
        %s253 = sld [smem:[#allocation2 + $0x2]]
        %s254 = scalar_lea.vmem %s224, 288
        %v255 = vld [vmem:[%s254] sm:$0xff]
        %v256 = vld [vmem:[%s254 + $0x8] sm:$0xff]
        %v257 = vstv %s253
        %v258 = vmul.f32 %v255, %v257
        %v259 = vmul.f32 %v256, %v257
        %262 = vrot.lane.b32.xlu0 %v258, 127
        %v263 = vpop.permute.xlu0 %262
        %264 = vrot.lane.b32.xlu0 %v259, 127
        %v265 = vpop.permute.xlu0 %264
        %v266 = vsel %vm249, %v263, %v265
        %v268 = vadd.f32 %v252, %v266
        %s269 = sld [smem:[#allocation2 + $0x3]]
        %s270 = scalar_lea.vmem %s224, 320
        %v271 = vld [vmem:[%s270] sm:$0xff]
        %v272 = vld [vmem:[%s270 + $0x8] sm:$0xff]
        %v273 = vstv %s269
        %v274 = vmul.f32 %v271, %v273
        %v275 = vmul.f32 %v272, %v273
        %278 = vrot.lane.b32.xlu0 %v274, 127
        %v279 = vpop.permute.xlu0 %278
        %280 = vrot.lane.b32.xlu0 %v275, 127
        %v281 = vpop.permute.xlu0 %280
        %v282 = vsel %vm249, %v279, %v281
        %v284 = vadd.f32 %v268, %v282
        %s285 = sld [smem:[#allocation2 + $0x4]]
        %v286 = vld [vmem:[%s231] sm:$0xff]
        %v287 = vld [vmem:[%s231 + $0x8] sm:$0xff]
        %v288 = vstv %s285
        %v289 = vmul.f32 %v286, %v288
        %v290 = vmul.f32 %v287, %v288
        %293 = vrot.lane.b32.xlu0 %v289, 127
        %v294 = vpop.permute.xlu0 %293
        %295 = vrot.lane.b32.xlu0 %v290, 127
        %v296 = vpop.permute.xlu0 %295
        %v297 = vsel %vm249, %v294, %v296
        %v299 = vadd.f32 %v284, %v297
        %s300 = sld [smem:[#allocation2 + $0x5]]
        %s301 = scalar_lea.vmem %s224, 480
        %v302 = vld [vmem:[%s301] sm:$0xff]
        %v303 = vstv %s300
        %v304 = vmul.f32 %v302, %v303
        %v305 = vadd.f32 %v299, %v304
        %s306 = sld [smem:[#allocation2 + $0x6]]
        %s307 = scalar_lea.vmem %s224, 384
        %v308 = vld [vmem:[%s307] sm:$0xff]
        %v309 = vld [vmem:[%s307 + $0x8] sm:$0xff]
        %v310 = vstv %s306
        %v311 = vmul.f32 %v308, %v310
        %v312 = vmul.f32 %v309, %v310
        %315 = vrot.lane.b32.xlu0 %v311, 127
        %v316 = vpop.permute.xlu0 %315
        %317 = vrot.lane.b32.xlu0 %v312, 127
        %v318 = vpop.permute.xlu0 %317
        %v319 = vsel %vm249, %v316, %v318
        %v321 = vadd.f32 %v305, %v319
        %s322 = sld [smem:[#allocation2 + $0x7]]
        %s323 = scalar_lea.vmem %s224, 416
        %v324 = vld [vmem:[%s323] sm:$0xff]
        %v325 = vld [vmem:[%s323 + $0x8] sm:$0xff]
        %v326 = vstv %s322
        %v327 = vmul.f32 %v324, %v326
        %v328 = vmul.f32 %v325, %v326
        %331 = vrot.lane.b32.xlu0 %v327, 127
        %v332 = vpop.permute.xlu0 %331
        %333 = vrot.lane.b32.xlu0 %v328, 127
        %v334 = vpop.permute.xlu0 %333
        %v335 = vsel %vm249, %v332, %v334
        %v337 = vadd.f32 %v321, %v335
        %s338 = sld [smem:[#allocation2 + $0x8]]
        %s339 = scalar_lea.vmem %s224, 448
        %v340 = vld [vmem:[%s339] sm:$0xff]
        %v341 = vld [vmem:[%s339 + $0x8] sm:$0xff]
        %v342 = vstv %s338
        %v343 = vmul.f32 %v340, %v342
        %v344 = vmul.f32 %v341, %v342
        %347 = vrot.lane.b32.xlu0 %v343, 127
        %v348 = vpop.permute.xlu0 %347
        %349 = vrot.lane.b32.xlu0 %v344, 127
        %v350 = vpop.permute.xlu0 %349
        %v351 = vsel %vm249, %v348, %v350
        %v353 = vadd.f32 %v337, %v351
        %s354 = sld [smem:[#allocation2 + $0x9]]
        %v355 = vld [vmem:[%s301] sm:$0xff]
        %v356 = vld [vmem:[%s301 + $0x8] sm:$0xff]
        %v357 = vstv %s354
        %v358 = vmul.f32 %v355, %v357
        %v359 = vmul.f32 %v356, %v357
        %362 = vrot.lane.b32.xlu0 %v358, 127
        %v363 = vpop.permute.xlu0 %362
        %364 = vrot.lane.b32.xlu0 %v359, 127
        %v365 = vpop.permute.xlu0 %364
        %v366 = vsel %vm249, %v363, %v365
        %v368 = vadd.f32 %v353, %v366
        %s369 = sld [smem:[#allocation2 + $0xa]]
        %s370 = scalar_lea.vmem %s224, 96
        %v371 = vld [vmem:[%s370] sm:$0xfe]
        %v372 = vld [vmem:[%s370 + $0x10] sm:$0x1]
        %v373 = vstv %s369
        %v374 = vmul.f32 %v371, %v373
        %v375 = vmul.f32 %v372, %v373
        %vm378 = vcmask 1046528
        %v379 = vrot.slane %v374, 1
        %v380 = vrot.slane %v375, 1
        %v381 = vsel %vm378, %v379, %v380
        %v383 = vadd.f32 %v368, %v381
        %s384 = sld [smem:[#allocation2 + $0xb]]
        %v385 = vld [vmem:[%s224] sm:$0xfe]
        %v386 = vld [vmem:[%s224 + $0x8] sm:$0xfe]
        %v387 = vld [vmem:[%s224 + $0x10] sm:$0x1]
        %v388 = vld [vmem:[%s224 + $0x18] sm:$0x1]
        %v389 = vstv %s384
        %v390 = vmul.f32 %v385, %v389
        %v391 = vmul.f32 %v386, %v389
        %v392 = vmul.f32 %v387, %v389
        %v393 = vmul.f32 %v388, %v389
        %v398 = vrot.slane %v390, 1
        %v399 = vrot.slane %v392, 1
        %v400 = vsel %vm378, %v398, %v399
        %v401 = vrot.slane %v391, 1
        %v402 = vrot.slane %v393, 1
        %v403 = vsel %vm378, %v401, %v402
        %404 = vrot.lane.b32.xlu0 %v400, 127
        %v405 = vpop.permute.xlu0 %404
        %406 = vrot.lane.b32.xlu0 %v403, 127
        %v407 = vpop.permute.xlu0 %406
        %v408 = vsel %vm249, %v405, %v407
        %v410 = vadd.f32 %v383, %v408
        %s411 = sld [smem:[#allocation2 + $0xc]]
        %s412 = scalar_lea.vmem %s224, 32
        %v413 = vld [vmem:[%s412] sm:$0xfe]
        %v414 = vld [vmem:[%s412 + $0x8] sm:$0xfe]
        %v415 = vld [vmem:[%s412 + $0x10] sm:$0x1]
        %v416 = vld [vmem:[%s412 + $0x18] sm:$0x1]
        %v417 = vstv %s411
        %v418 = vmul.f32 %v413, %v417
        %v419 = vmul.f32 %v414, %v417
        %v420 = vmul.f32 %v415, %v417
        %v421 = vmul.f32 %v416, %v417
        %v426 = vrot.slane %v418, 1
        %v427 = vrot.slane %v420, 1
        %v428 = vsel %vm378, %v426, %v427
        %v429 = vrot.slane %v419, 1
        %v430 = vrot.slane %v421, 1
        %v431 = vsel %vm378, %v429, %v430
        %432 = vrot.lane.b32.xlu0 %v428, 127
        %v433 = vpop.permute.xlu0 %432
        %434 = vrot.lane.b32.xlu0 %v431, 127
        %v435 = vpop.permute.xlu0 %434
        %v436 = vsel %vm249, %v433, %v435
        %v438 = vadd.f32 %v410, %v436
        %s439 = sld [smem:[#allocation2 + $0xd]]
        %s440 = scalar_lea.vmem %s224, 64
        %v441 = vld [vmem:[%s440] sm:$0xfe]
        %v442 = vld [vmem:[%s440 + $0x8] sm:$0xfe]
        %v443 = vld [vmem:[%s440 + $0x10] sm:$0x1]
        %v444 = vld [vmem:[%s440 + $0x18] sm:$0x1]
        %v445 = vstv %s439
        %v446 = vmul.f32 %v441, %v445
        %v447 = vmul.f32 %v442, %v445
        %v448 = vmul.f32 %v443, %v445
        %v449 = vmul.f32 %v444, %v445
        %v454 = vrot.slane %v446, 1
        %v455 = vrot.slane %v448, 1
        %v456 = vsel %vm378, %v454, %v455
        %v457 = vrot.slane %v447, 1
        %v458 = vrot.slane %v449, 1
        %v459 = vsel %vm378, %v457, %v458
        %460 = vrot.lane.b32.xlu0 %v456, 127
        %v461 = vpop.permute.xlu0 %460
        %462 = vrot.lane.b32.xlu0 %v459, 127
        %v463 = vpop.permute.xlu0 %462
        %v464 = vsel %vm249, %v461, %v463
        %v466 = vadd.f32 %v438, %v464
        %s467 = sld [smem:[#allocation2 + $0xe]]
        %v468 = vld [vmem:[%s370] sm:$0xfe]
        %v469 = vld [vmem:[%s370 + $0x8] sm:$0xfe]
        %v470 = vld [vmem:[%s370 + $0x10] sm:$0x1]
        %v471 = vld [vmem:[%s370 + $0x18] sm:$0x1]
        %v472 = vstv %s467
        %v473 = vmul.f32 %v468, %v472
        %v474 = vmul.f32 %v469, %v472
        %v475 = vmul.f32 %v470, %v472
        %v476 = vmul.f32 %v471, %v472
        %v481 = vrot.slane %v473, 1
        %v482 = vrot.slane %v475, 1
        %v483 = vsel %vm378, %v481, %v482
        %v484 = vrot.slane %v474, 1
        %v485 = vrot.slane %v476, 1
        %v486 = vsel %vm378, %v484, %v485
        %487 = vrot.lane.b32.xlu0 %v483, 127
        %v488 = vpop.permute.xlu0 %487
        %489 = vrot.lane.b32.xlu0 %v486, 127
        %v490 = vpop.permute.xlu0 %489
        %v491 = vsel %vm249, %v488, %v490
        %v493 = vadd.f32 %v466, %v491
        %s494 = sld [smem:[#allocation2 + $0xf]]
        %s495 = scalar_lea.vmem %s224, 224
        %v496 = vld [vmem:[%s495] sm:$0xfe]
        %v497 = vld [vmem:[%s495 + $0x10] sm:$0x1]
        %v498 = vstv %s494
        %v499 = vmul.f32 %v496, %v498
        %v500 = vmul.f32 %v497, %v498
        %v503 = vrot.slane %v499, 1
        %v504 = vrot.slane %v500, 1
        %v505 = vsel %vm378, %v503, %v504
        %v507 = vadd.f32 %v493, %v505
        %s508 = sld [smem:[#allocation2 + $0x10]]
        %s509 = scalar_lea.vmem %s224, 128
        %v510 = vld [vmem:[%s509] sm:$0xfe]
        %v511 = vld [vmem:[%s509 + $0x8] sm:$0xfe]
        %v512 = vld [vmem:[%s509 + $0x10] sm:$0x1]
        %v513 = vld [vmem:[%s509 + $0x18] sm:$0x1]
        %v514 = vstv %s508
        %v515 = vmul.f32 %v510, %v514
        %v516 = vmul.f32 %v511, %v514
        %v517 = vmul.f32 %v512, %v514
        %v518 = vmul.f32 %v513, %v514
        %v523 = vrot.slane %v515, 1
        %v524 = vrot.slane %v517, 1
        %v525 = vsel %vm378, %v523, %v524
        %v526 = vrot.slane %v516, 1
        %v527 = vrot.slane %v518, 1
        %v528 = vsel %vm378, %v526, %v527
        %529 = vrot.lane.b32.xlu0 %v525, 127
        %v530 = vpop.permute.xlu0 %529
        %531 = vrot.lane.b32.xlu0 %v528, 127
        %v532 = vpop.permute.xlu0 %531
        %v533 = vsel %vm249, %v530, %v532
        %v535 = vadd.f32 %v507, %v533
        %s536 = sld [smem:[#allocation2 + $0x11]]
        %s537 = scalar_lea.vmem %s224, 160
        %v538 = vld [vmem:[%s537] sm:$0xfe]
        %v539 = vld [vmem:[%s537 + $0x8] sm:$0xfe]
        %v540 = vld [vmem:[%s537 + $0x10] sm:$0x1]
        %v541 = vld [vmem:[%s537 + $0x18] sm:$0x1]
        %v542 = vstv %s536
        %v543 = vmul.f32 %v538, %v542
        %v544 = vmul.f32 %v539, %v542
        %v545 = vmul.f32 %v540, %v542
        %v546 = vmul.f32 %v541, %v542
        %v551 = vrot.slane %v543, 1
        %v552 = vrot.slane %v545, 1
        %v553 = vsel %vm378, %v551, %v552
        %v554 = vrot.slane %v544, 1
        %v555 = vrot.slane %v546, 1
        %v556 = vsel %vm378, %v554, %v555
        %557 = vrot.lane.b32.xlu0 %v553, 127
        %v558 = vpop.permute.xlu0 %557
        %559 = vrot.lane.b32.xlu0 %v556, 127
        %v560 = vpop.permute.xlu0 %559
        %v561 = vsel %vm249, %v558, %v560
        %v563 = vadd.f32 %v535, %v561
        %s564 = sld [smem:[#allocation2 + $0x12]]
        %s565 = scalar_lea.vmem %s224, 192
        %v566 = vld [vmem:[%s565] sm:$0xfe]
        %v567 = vld [vmem:[%s565 + $0x8] sm:$0xfe]
        %v568 = vld [vmem:[%s565 + $0x10] sm:$0x1]
        %v569 = vld [vmem:[%s565 + $0x18] sm:$0x1]
        %v570 = vstv %s564
        %v571 = vmul.f32 %v566, %v570
        %v572 = vmul.f32 %v567, %v570
        %v573 = vmul.f32 %v568, %v570
        %v574 = vmul.f32 %v569, %v570
        %v579 = vrot.slane %v571, 1
        %v580 = vrot.slane %v573, 1
        %v581 = vsel %vm378, %v579, %v580
        %v582 = vrot.slane %v572, 1
        %v583 = vrot.slane %v574, 1
        %v584 = vsel %vm378, %v582, %v583
        %585 = vrot.lane.b32.xlu0 %v581, 127
        %v586 = vpop.permute.xlu0 %585
        %587 = vrot.lane.b32.xlu0 %v584, 127
        %v588 = vpop.permute.xlu0 %587
        %v589 = vsel %vm249, %v586, %v588
        %v591 = vadd.f32 %v563, %v589
        %s592 = sld [smem:[#allocation2 + $0x13]]
        %v593 = vld [vmem:[%s495] sm:$0xfe]
        %v594 = vld [vmem:[%s495 + $0x8] sm:$0xfe]
        %v595 = vld [vmem:[%s495 + $0x10] sm:$0x1]
        %v596 = vld [vmem:[%s495 + $0x18] sm:$0x1]
        %v597 = vstv %s592
        %v598 = vmul.f32 %v593, %v597
        %v599 = vmul.f32 %v594, %v597
        %v600 = vmul.f32 %v595, %v597
        %v601 = vmul.f32 %v596, %v597
        %v606 = vrot.slane %v598, 1
        %v607 = vrot.slane %v600, 1
        %v608 = vsel %vm378, %v606, %v607
        %v609 = vrot.slane %v599, 1
        %v610 = vrot.slane %v601, 1
        %v611 = vsel %vm378, %v609, %v610
        %612 = vrot.lane.b32.xlu0 %v608, 127
        %v613 = vpop.permute.xlu0 %612
        %614 = vrot.lane.b32.xlu0 %v611, 127
        %v615 = vpop.permute.xlu0 %614
        %v616 = vsel %vm249, %v613, %v615
        %v618 = vadd.f32 %v591, %v616
        %s619 = sld [smem:[#allocation2 + $0x14]]
        %v620 = vld [vmem:[%s231] sm:$0xfe]
        %v621 = vld [vmem:[%s231 + $0x10] sm:$0x1]
        %v622 = vstv %s619
        %v623 = vmul.f32 %v620, %v622
        %v624 = vmul.f32 %v621, %v622
        %v627 = vrot.slane %v623, 1
        %v628 = vrot.slane %v624, 1
        %v629 = vsel %vm378, %v627, %v628
        %v631 = vadd.f32 %v618, %v629
        %s632 = sld [smem:[#allocation2 + $0x15]]
        %v633 = vld [vmem:[%s237] sm:$0xfe]
        %v634 = vld [vmem:[%s237 + $0x8] sm:$0xfe]
        %v635 = vld [vmem:[%s237 + $0x10] sm:$0x1]
        %v636 = vld [vmem:[%s237 + $0x18] sm:$0x1]
        %v637 = vstv %s632
        %v638 = vmul.f32 %v633, %v637
        %v639 = vmul.f32 %v634, %v637
        %v640 = vmul.f32 %v635, %v637
        %v641 = vmul.f32 %v636, %v637
        %v646 = vrot.slane %v638, 1
        %v647 = vrot.slane %v640, 1
        %v648 = vsel %vm378, %v646, %v647
        %v649 = vrot.slane %v639, 1
        %v650 = vrot.slane %v641, 1
        %v651 = vsel %vm378, %v649, %v650
        %652 = vrot.lane.b32.xlu0 %v648, 127
        %v653 = vpop.permute.xlu0 %652
        %654 = vrot.lane.b32.xlu0 %v651, 127
        %v655 = vpop.permute.xlu0 %654
        %v656 = vsel %vm249, %v653, %v655
        %v658 = vadd.f32 %v631, %v656
        %s659 = sld [smem:[#allocation2 + $0x16]]
        %v660 = vld [vmem:[%s254] sm:$0xfe]
        %v661 = vld [vmem:[%s254 + $0x8] sm:$0xfe]
        %v662 = vld [vmem:[%s254 + $0x10] sm:$0x1]
        %v663 = vld [vmem:[%s254 + $0x18] sm:$0x1]
        %v664 = vstv %s659
        %v665 = vmul.f32 %v660, %v664
        %v666 = vmul.f32 %v661, %v664
        %v667 = vmul.f32 %v662, %v664
        %v668 = vmul.f32 %v663, %v664
        %v673 = vrot.slane %v665, 1
        %v674 = vrot.slane %v667, 1
        %v675 = vsel %vm378, %v673, %v674
        %v676 = vrot.slane %v666, 1
        %v677 = vrot.slane %v668, 1
        %v678 = vsel %vm378, %v676, %v677
        %679 = vrot.lane.b32.xlu0 %v675, 127
        %v680 = vpop.permute.xlu0 %679
        %681 = vrot.lane.b32.xlu0 %v678, 127
        %v682 = vpop.permute.xlu0 %681
        %v683 = vsel %vm249, %v680, %v682
        %v685 = vadd.f32 %v658, %v683
        %s686 = sld [smem:[#allocation2 + $0x17]]
        %v687 = vld [vmem:[%s270] sm:$0xfe]
        %v688 = vld [vmem:[%s270 + $0x8] sm:$0xfe]
        %v689 = vld [vmem:[%s270 + $0x10] sm:$0x1]
        %v690 = vld [vmem:[%s270 + $0x18] sm:$0x1]
        %v691 = vstv %s686
        %v692 = vmul.f32 %v687, %v691
        %v693 = vmul.f32 %v688, %v691
        %v694 = vmul.f32 %v689, %v691
        %v695 = vmul.f32 %v690, %v691
        %v700 = vrot.slane %v692, 1
        %v701 = vrot.slane %v694, 1
        %v702 = vsel %vm378, %v700, %v701
        %v703 = vrot.slane %v693, 1
        %v704 = vrot.slane %v695, 1
        %v705 = vsel %vm378, %v703, %v704
        %706 = vrot.lane.b32.xlu0 %v702, 127
        %v707 = vpop.permute.xlu0 %706
        %708 = vrot.lane.b32.xlu0 %v705, 127
        %v709 = vpop.permute.xlu0 %708
        %v710 = vsel %vm249, %v707, %v709
        %v712 = vadd.f32 %v685, %v710
        %s713 = sld [smem:[#allocation2 + $0x18]]
        %v714 = vld [vmem:[%s231] sm:$0xfe]
        %v715 = vld [vmem:[%s231 + $0x8] sm:$0xfe]
        %v716 = vld [vmem:[%s231 + $0x10] sm:$0x1]
        %v717 = vld [vmem:[%s231 + $0x18] sm:$0x1]
        %v718 = vstv %s713
        %v719 = vmul.f32 %v714, %v718
        %v720 = vmul.f32 %v715, %v718
        %v721 = vmul.f32 %v716, %v718
        %v722 = vmul.f32 %v717, %v718
        %v727 = vrot.slane %v719, 1
        %v728 = vrot.slane %v721, 1
        %v729 = vsel %vm378, %v727, %v728
        %v730 = vrot.slane %v720, 1
        %v731 = vrot.slane %v722, 1
        %v732 = vsel %vm378, %v730, %v731
        %733 = vrot.lane.b32.xlu0 %v729, 127
        %v734 = vpop.permute.xlu0 %733
        %735 = vrot.lane.b32.xlu0 %v732, 127
        %v736 = vpop.permute.xlu0 %735
        %v737 = vsel %vm249, %v734, %v736
        %v739 = vadd.f32 %v712, %v737
        %v740 = vld [vmem:[%s2] sm:$0xff]
        %v741 = vmul.f32 %v739, %v740
        %v742 = vld [vmem:[%s229] sm:$0xff]
        %v743 = vmul.f32 %v742, %v740
        %v744 = vsub.f32 %v741, %v743
        %v745 = vand.u32 2147483647, %v744
        %746 = vadd.xlane.f32.xlu0 %v745
        %v747 = vpop.xlane.xlu0 %746
        %v748 = vrot.slane %v747, 4
        %v749 = vadd.f32 %v747, %v748
        %v750 = vrot.slane %v749, 2
        %v751 = vadd.f32 %v749, %v750
        %v752 = vrot.slane %v751, 1
        %v753 = vadd.f32 %v751, %v752
        %s754 = vtos %v753
        %s755 = sadd.f32 %s754, 0.0
        %s756 = sld [smem:[#allocation2 + $0x19]]
        %s757 = scalar_lea.vmem %s224, 960
        %v758 = vld [vmem:[%s757] sm:$0xff]
        %v759 = vstv %s756
        %v760 = vmul.f32 %v758, %v759
        %v761 = vadd.f32 %v760, 0.0
        %s762 = sld [smem:[#allocation2 + $0x1a]]
        %s763 = scalar_lea.vmem %s224, 992
        %v764 = vld [vmem:[%s763] sm:$0xff]
        %v765 = vstv %s762
        %v766 = vmul.f32 %v764, %v765
        %v767 = vadd.f32 %v761, %v766
        %s768 = sld [smem:[#allocation2 + $0x1b]]
        %s769 = scalar_lea.vmem %s224, 896
        %v770 = vld [vmem:[%s769] sm:$0xff]
        %v771 = vld [vmem:[%s769 + $0x8] sm:$0xff]
        %v772 = vstv %s768
        %v773 = vmul.f32 %v770, %v772
        %v774 = vmul.f32 %v771, %v772
        %777 = vrot.lane.b32.xlu0 %v773, 127
        %v778 = vpop.permute.xlu0 %777
        %779 = vrot.lane.b32.xlu0 %v774, 127
        %v780 = vpop.permute.xlu0 %779
        %v781 = vsel %vm249, %v778, %v780
        %v783 = vadd.f32 %v767, %v781
        %s784 = sld [smem:[#allocation2 + $0x1c]]
        %s785 = scalar_lea.vmem %s224, 928
        %v786 = vld [vmem:[%s785] sm:$0xff]
        %v787 = vld [vmem:[%s785 + $0x8] sm:$0xff]
        %v788 = vstv %s784
        %v789 = vmul.f32 %v786, %v788
        %v790 = vmul.f32 %v787, %v788
        %793 = vrot.lane.b32.xlu0 %v789, 127
        %v794 = vpop.permute.xlu0 %793
        %795 = vrot.lane.b32.xlu0 %v790, 127
        %v796 = vpop.permute.xlu0 %795
        %v797 = vsel %vm249, %v794, %v796
        %v799 = vadd.f32 %v783, %v797
        %s800 = sld [smem:[#allocation2 + $0x1d]]
        %v801 = vld [vmem:[%s757] sm:$0xff]
        %v802 = vld [vmem:[%s757 + $0x8] sm:$0xff]
        %v803 = vstv %s800
        %v804 = vmul.f32 %v801, %v803
        %v805 = vmul.f32 %v802, %v803
        %808 = vrot.lane.b32.xlu0 %v804, 127
        %v809 = vpop.permute.xlu0 %808
        %810 = vrot.lane.b32.xlu0 %v805, 127
        %v811 = vpop.permute.xlu0 %810
        %v812 = vsel %vm249, %v809, %v811
        %v814 = vadd.f32 %v799, %v812
        %s815 = sld [smem:[#allocation2 + $0x1e]]
        %s816 = scalar_lea.vmem %s224, 576
        %v817 = vld [vmem:[%s816] sm:$0xfe]
        %v818 = vld [vmem:[%s816 + $0x10] sm:$0x1]
        %v819 = vstv %s815
        %v820 = vmul.f32 %v817, %v819
        %v821 = vmul.f32 %v818, %v819
        %v824 = vrot.slane %v820, 1
        %v825 = vrot.slane %v821, 1
        %v826 = vsel %vm378, %v824, %v825
        %v828 = vadd.f32 %v814, %v826
        %s829 = sld [smem:[#allocation2 + $0x1f]]
        %s830 = scalar_lea.vmem %s224, 608
        %v831 = vld [vmem:[%s830] sm:$0xfe]
        %v832 = vld [vmem:[%s830 + $0x10] sm:$0x1]
        %v833 = vstv %s829
        %v834 = vmul.f32 %v831, %v833
        %v835 = vmul.f32 %v832, %v833
        %v838 = vrot.slane %v834, 1
        %v839 = vrot.slane %v835, 1
        %v840 = vsel %vm378, %v838, %v839
        %v842 = vadd.f32 %v828, %v840
        %s843 = sld [smem:[#allocation2 + $0x20]]
        %s844 = scalar_lea.vmem %s224, 512
        %v845 = vld [vmem:[%s844] sm:$0xfe]
        %v846 = vld [vmem:[%s844 + $0x8] sm:$0xfe]
        %v847 = vld [vmem:[%s844 + $0x10] sm:$0x1]
        %v848 = vld [vmem:[%s844 + $0x18] sm:$0x1]
        %v849 = vstv %s843
        %v850 = vmul.f32 %v845, %v849
        %v851 = vmul.f32 %v846, %v849
        %v852 = vmul.f32 %v847, %v849
        %v853 = vmul.f32 %v848, %v849
        %v858 = vrot.slane %v850, 1
        %v859 = vrot.slane %v852, 1
        %v860 = vsel %vm378, %v858, %v859
        %v861 = vrot.slane %v851, 1
        %v862 = vrot.slane %v853, 1
        %v863 = vsel %vm378, %v861, %v862
        %864 = vrot.lane.b32.xlu0 %v860, 127
        %v865 = vpop.permute.xlu0 %864
        %866 = vrot.lane.b32.xlu0 %v863, 127
        %v867 = vpop.permute.xlu0 %866
        %v868 = vsel %vm249, %v865, %v867
        %v870 = vadd.f32 %v842, %v868
        %s871 = sld [smem:[#allocation2 + $0x21]]
        %s872 = scalar_lea.vmem %s224, 544
        %v873 = vld [vmem:[%s872] sm:$0xfe]
        %v874 = vld [vmem:[%s872 + $0x8] sm:$0xfe]
        %v875 = vld [vmem:[%s872 + $0x10] sm:$0x1]
        %v876 = vld [vmem:[%s872 + $0x18] sm:$0x1]
        %v877 = vstv %s871
        %v878 = vmul.f32 %v873, %v877
        %v879 = vmul.f32 %v874, %v877
        %v880 = vmul.f32 %v875, %v877
        %v881 = vmul.f32 %v876, %v877
        %v886 = vrot.slane %v878, 1
        %v887 = vrot.slane %v880, 1
        %v888 = vsel %vm378, %v886, %v887
        %v889 = vrot.slane %v879, 1
        %v890 = vrot.slane %v881, 1
        %v891 = vsel %vm378, %v889, %v890
        %892 = vrot.lane.b32.xlu0 %v888, 127
        %v893 = vpop.permute.xlu0 %892
        %894 = vrot.lane.b32.xlu0 %v891, 127
        %v895 = vpop.permute.xlu0 %894
        %v896 = vsel %vm249, %v893, %v895
        %v898 = vadd.f32 %v870, %v896
        %s899 = sld [smem:[#allocation2 + $0x22]]
        %v900 = vld [vmem:[%s816] sm:$0xfe]
        %v901 = vld [vmem:[%s816 + $0x8] sm:$0xfe]
        %v902 = vld [vmem:[%s816 + $0x10] sm:$0x1]
        %v903 = vld [vmem:[%s816 + $0x18] sm:$0x1]
        %v904 = vstv %s899
        %v905 = vmul.f32 %v900, %v904
        %v906 = vmul.f32 %v901, %v904
        %v907 = vmul.f32 %v902, %v904
        %v908 = vmul.f32 %v903, %v904
        %v913 = vrot.slane %v905, 1
        %v914 = vrot.slane %v907, 1
        %v915 = vsel %vm378, %v913, %v914
        %v916 = vrot.slane %v906, 1
        %v917 = vrot.slane %v908, 1
        %v918 = vsel %vm378, %v916, %v917
        %919 = vrot.lane.b32.xlu0 %v915, 127
        %v920 = vpop.permute.xlu0 %919
        %921 = vrot.lane.b32.xlu0 %v918, 127
        %v922 = vpop.permute.xlu0 %921
        %v923 = vsel %vm249, %v920, %v922
        %v925 = vadd.f32 %v898, %v923
        %s926 = sld [smem:[#allocation2 + $0x23]]
        %s927 = scalar_lea.vmem %s224, 704
        %v928 = vld [vmem:[%s927] sm:$0xfe]
        %v929 = vld [vmem:[%s927 + $0x10] sm:$0x1]
        %v930 = vstv %s926
        %v931 = vmul.f32 %v928, %v930
        %v932 = vmul.f32 %v929, %v930
        %v935 = vrot.slane %v931, 1
        %v936 = vrot.slane %v932, 1
        %v937 = vsel %vm378, %v935, %v936
        %v939 = vadd.f32 %v925, %v937
        %s940 = sld [smem:[#allocation2 + $0x24]]
        %s941 = scalar_lea.vmem %s224, 736
        %v942 = vld [vmem:[%s941] sm:$0xfe]
        %v943 = vld [vmem:[%s941 + $0x10] sm:$0x1]
        %v944 = vstv %s940
        %v945 = vmul.f32 %v942, %v944
        %v946 = vmul.f32 %v943, %v944
        %v949 = vrot.slane %v945, 1
        %v950 = vrot.slane %v946, 1
        %v951 = vsel %vm378, %v949, %v950
        %v953 = vadd.f32 %v939, %v951
        %s954 = sld [smem:[#allocation2 + $0x25]]
        %s955 = scalar_lea.vmem %s224, 640
        %v956 = vld [vmem:[%s955] sm:$0xfe]
        %v957 = vld [vmem:[%s955 + $0x8] sm:$0xfe]
        %v958 = vld [vmem:[%s955 + $0x10] sm:$0x1]
        %v959 = vld [vmem:[%s955 + $0x18] sm:$0x1]
        %v960 = vstv %s954
        %v961 = vmul.f32 %v956, %v960
        %v962 = vmul.f32 %v957, %v960
        %v963 = vmul.f32 %v958, %v960
        %v964 = vmul.f32 %v959, %v960
        %v969 = vrot.slane %v961, 1
        %v970 = vrot.slane %v963, 1
        %v971 = vsel %vm378, %v969, %v970
        %v972 = vrot.slane %v962, 1
        %v973 = vrot.slane %v964, 1
        %v974 = vsel %vm378, %v972, %v973
        %975 = vrot.lane.b32.xlu0 %v971, 127
        %v976 = vpop.permute.xlu0 %975
        %977 = vrot.lane.b32.xlu0 %v974, 127
        %v978 = vpop.permute.xlu0 %977
        %v979 = vsel %vm249, %v976, %v978
        %v981 = vadd.f32 %v953, %v979
        %s982 = sld [smem:[#allocation2 + $0x26]]
        %s983 = scalar_lea.vmem %s224, 672
        %v984 = vld [vmem:[%s983] sm:$0xfe]
        %v985 = vld [vmem:[%s983 + $0x8] sm:$0xfe]
        %v986 = vld [vmem:[%s983 + $0x10] sm:$0x1]
        %v987 = vld [vmem:[%s983 + $0x18] sm:$0x1]
        %v988 = vstv %s982
        %v989 = vmul.f32 %v984, %v988
        %v990 = vmul.f32 %v985, %v988
        %v991 = vmul.f32 %v986, %v988
        %v992 = vmul.f32 %v987, %v988
        %v997 = vrot.slane %v989, 1
        %v998 = vrot.slane %v991, 1
        %v999 = vsel %vm378, %v997, %v998
        %v1000 = vrot.slane %v990, 1
        %v1001 = vrot.slane %v992, 1
        %v1002 = vsel %vm378, %v1000, %v1001
        %1003 = vrot.lane.b32.xlu0 %v999, 127
        %v1004 = vpop.permute.xlu0 %1003
        %1005 = vrot.lane.b32.xlu0 %v1002, 127
        %v1006 = vpop.permute.xlu0 %1005
        %v1007 = vsel %vm249, %v1004, %v1006
        %v1009 = vadd.f32 %v981, %v1007
        %s1010 = sld [smem:[#allocation2 + $0x27]]
        %v1011 = vld [vmem:[%s927] sm:$0xfe]
        %v1012 = vld [vmem:[%s927 + $0x8] sm:$0xfe]
        %v1013 = vld [vmem:[%s927 + $0x10] sm:$0x1]
        %v1014 = vld [vmem:[%s927 + $0x18] sm:$0x1]
        %v1015 = vstv %s1010
        %v1016 = vmul.f32 %v1011, %v1015
        %v1017 = vmul.f32 %v1012, %v1015
        %v1018 = vmul.f32 %v1013, %v1015
        %v1019 = vmul.f32 %v1014, %v1015
        %v1024 = vrot.slane %v1016, 1
        %v1025 = vrot.slane %v1018, 1
        %v1026 = vsel %vm378, %v1024, %v1025
        %v1027 = vrot.slane %v1017, 1
        %v1028 = vrot.slane %v1019, 1
        %v1029 = vsel %vm378, %v1027, %v1028
        %1030 = vrot.lane.b32.xlu0 %v1026, 127
        %v1031 = vpop.permute.xlu0 %1030
        %1032 = vrot.lane.b32.xlu0 %v1029, 127
        %v1033 = vpop.permute.xlu0 %1032
        %v1034 = vsel %vm249, %v1031, %v1033
        %v1036 = vadd.f32 %v1009, %v1034
        %s1037 = sld [smem:[#allocation2 + $0x28]]
        %s1038 = scalar_lea.vmem %s224, 832
        %v1039 = vld [vmem:[%s1038] sm:$0xfe]
        %v1040 = vld [vmem:[%s1038 + $0x10] sm:$0x1]
        %v1041 = vstv %s1037
        %v1042 = vmul.f32 %v1039, %v1041
        %v1043 = vmul.f32 %v1040, %v1041
        %v1046 = vrot.slane %v1042, 1
        %v1047 = vrot.slane %v1043, 1
        %v1048 = vsel %vm378, %v1046, %v1047
        %v1050 = vadd.f32 %v1036, %v1048
        %s1051 = sld [smem:[#allocation2 + $0x29]]
        %s1052 = scalar_lea.vmem %s224, 864
        %v1053 = vld [vmem:[%s1052] sm:$0xfe]
        %v1054 = vld [vmem:[%s1052 + $0x10] sm:$0x1]
        %v1055 = vstv %s1051
        %v1056 = vmul.f32 %v1053, %v1055
        %v1057 = vmul.f32 %v1054, %v1055
        %v1060 = vrot.slane %v1056, 1
        %v1061 = vrot.slane %v1057, 1
        %v1062 = vsel %vm378, %v1060, %v1061
        %v1064 = vadd.f32 %v1050, %v1062
        %s1065 = sld [smem:[#allocation2 + $0x2a]]
        %s1066 = scalar_lea.vmem %s224, 768
        %v1067 = vld [vmem:[%s1066] sm:$0xfe]
        %v1068 = vld [vmem:[%s1066 + $0x8] sm:$0xfe]
        %v1069 = vld [vmem:[%s1066 + $0x10] sm:$0x1]
        %v1070 = vld [vmem:[%s1066 + $0x18] sm:$0x1]
        %v1071 = vstv %s1065
        %v1072 = vmul.f32 %v1067, %v1071
        %v1073 = vmul.f32 %v1068, %v1071
        %v1074 = vmul.f32 %v1069, %v1071
        %v1075 = vmul.f32 %v1070, %v1071
        %v1080 = vrot.slane %v1072, 1
        %v1081 = vrot.slane %v1074, 1
        %v1082 = vsel %vm378, %v1080, %v1081
        %v1083 = vrot.slane %v1073, 1
        %v1084 = vrot.slane %v1075, 1
        %v1085 = vsel %vm378, %v1083, %v1084
        %1086 = vrot.lane.b32.xlu0 %v1082, 127
        %v1087 = vpop.permute.xlu0 %1086
        %1088 = vrot.lane.b32.xlu0 %v1085, 127
        %v1089 = vpop.permute.xlu0 %1088
        %v1090 = vsel %vm249, %v1087, %v1089
        %v1092 = vadd.f32 %v1064, %v1090
        %s1093 = sld [smem:[#allocation2 + $0x2b]]
        %s1094 = scalar_lea.vmem %s224, 800
        %v1095 = vld [vmem:[%s1094] sm:$0xfe]
        %v1096 = vld [vmem:[%s1094 + $0x8] sm:$0xfe]
        %v1097 = vld [vmem:[%s1094 + $0x10] sm:$0x1]
        %v1098 = vld [vmem:[%s1094 + $0x18] sm:$0x1]
        %v1099 = vstv %s1093
        %v1100 = vmul.f32 %v1095, %v1099
        %v1101 = vmul.f32 %v1096, %v1099
        %v1102 = vmul.f32 %v1097, %v1099
        %v1103 = vmul.f32 %v1098, %v1099
        %v1108 = vrot.slane %v1100, 1
        %v1109 = vrot.slane %v1102, 1
        %v1110 = vsel %vm378, %v1108, %v1109
        %v1111 = vrot.slane %v1101, 1
        %v1112 = vrot.slane %v1103, 1
        %v1113 = vsel %vm378, %v1111, %v1112
        %1114 = vrot.lane.b32.xlu0 %v1110, 127
        %v1115 = vpop.permute.xlu0 %1114
        %1116 = vrot.lane.b32.xlu0 %v1113, 127
        %v1117 = vpop.permute.xlu0 %1116
        %v1118 = vsel %vm249, %v1115, %v1117
        %v1120 = vadd.f32 %v1092, %v1118
        %s1121 = sld [smem:[#allocation2 + $0x2c]]
        %v1122 = vld [vmem:[%s1038] sm:$0xfe]
        %v1123 = vld [vmem:[%s1038 + $0x8] sm:$0xfe]
        %v1124 = vld [vmem:[%s1038 + $0x10] sm:$0x1]
        %v1125 = vld [vmem:[%s1038 + $0x18] sm:$0x1]
        %v1126 = vstv %s1121
        %v1127 = vmul.f32 %v1122, %v1126
        %v1128 = vmul.f32 %v1123, %v1126
        %v1129 = vmul.f32 %v1124, %v1126
        %v1130 = vmul.f32 %v1125, %v1126
        %v1135 = vrot.slane %v1127, 1
        %v1136 = vrot.slane %v1129, 1
        %v1137 = vsel %vm378, %v1135, %v1136
        %v1138 = vrot.slane %v1128, 1
        %v1139 = vrot.slane %v1130, 1
        %v1140 = vsel %vm378, %v1138, %v1139
        %1141 = vrot.lane.b32.xlu0 %v1137, 127
        %v1142 = vpop.permute.xlu0 %1141
        %1143 = vrot.lane.b32.xlu0 %v1140, 127
        %v1144 = vpop.permute.xlu0 %1143
        %v1145 = vsel %vm249, %v1142, %v1144
        %v1147 = vadd.f32 %v1120, %v1145
        %s1148 = sld [smem:[#allocation2 + $0x2d]]
        %v1149 = vld [vmem:[%s757] sm:$0xfe]
        %v1150 = vld [vmem:[%s757 + $0x10] sm:$0x1]
        %v1151 = vstv %s1148
        %v1152 = vmul.f32 %v1149, %v1151
        %v1153 = vmul.f32 %v1150, %v1151
        %v1156 = vrot.slane %v1152, 1
        %v1157 = vrot.slane %v1153, 1
        %v1158 = vsel %vm378, %v1156, %v1157
        %v1160 = vadd.f32 %v1147, %v1158
        %s1161 = sld [smem:[#allocation2 + $0x2e]]
        %v1162 = vld [vmem:[%s763] sm:$0xfe]
        %v1163 = vld [vmem:[%s763 + $0x10] sm:$0x1]
        %v1164 = vstv %s1161
        %v1165 = vmul.f32 %v1162, %v1164
        %v1166 = vmul.f32 %v1163, %v1164
        %v1169 = vrot.slane %v1165, 1
        %v1170 = vrot.slane %v1166, 1
        %v1171 = vsel %vm378, %v1169, %v1170
        %v1173 = vadd.f32 %v1160, %v1171
        %s1174 = sld [smem:[#allocation2 + $0x2f]]
        %v1175 = vld [vmem:[%s769] sm:$0xfe]
        %v1176 = vld [vmem:[%s769 + $0x8] sm:$0xfe]
        %v1177 = vld [vmem:[%s769 + $0x10] sm:$0x1]
        %v1178 = vld [vmem:[%s769 + $0x18] sm:$0x1]
        %v1179 = vstv %s1174
        %v1180 = vmul.f32 %v1175, %v1179
        %v1181 = vmul.f32 %v1176, %v1179
        %v1182 = vmul.f32 %v1177, %v1179
        %v1183 = vmul.f32 %v1178, %v1179
        %v1188 = vrot.slane %v1180, 1
        %v1189 = vrot.slane %v1182, 1
        %v1190 = vsel %vm378, %v1188, %v1189
        %v1191 = vrot.slane %v1181, 1
        %v1192 = vrot.slane %v1183, 1
        %v1193 = vsel %vm378, %v1191, %v1192
        %1194 = vrot.lane.b32.xlu0 %v1190, 127
        %v1195 = vpop.permute.xlu0 %1194
        %1196 = vrot.lane.b32.xlu0 %v1193, 127
        %v1197 = vpop.permute.xlu0 %1196
        %v1198 = vsel %vm249, %v1195, %v1197
        %v1200 = vadd.f32 %v1173, %v1198
        %s1201 = sld [smem:[#allocation2 + $0x30]]
        %v1202 = vld [vmem:[%s785] sm:$0xfe]
        %v1203 = vld [vmem:[%s785 + $0x8] sm:$0xfe]
        %v1204 = vld [vmem:[%s785 + $0x10] sm:$0x1]
        %v1205 = vld [vmem:[%s785 + $0x18] sm:$0x1]
        %v1206 = vstv %s1201
        %v1207 = vmul.f32 %v1202, %v1206
        %v1208 = vmul.f32 %v1203, %v1206
        %v1209 = vmul.f32 %v1204, %v1206
        %v1210 = vmul.f32 %v1205, %v1206
        %v1215 = vrot.slane %v1207, 1
        %v1216 = vrot.slane %v1209, 1
        %v1217 = vsel %vm378, %v1215, %v1216
        %v1218 = vrot.slane %v1208, 1
        %v1219 = vrot.slane %v1210, 1
        %v1220 = vsel %vm378, %v1218, %v1219
        %1221 = vrot.lane.b32.xlu0 %v1217, 127
        %v1222 = vpop.permute.xlu0 %1221
        %1223 = vrot.lane.b32.xlu0 %v1220, 127
        %v1224 = vpop.permute.xlu0 %1223
        %v1225 = vsel %vm249, %v1222, %v1224
        %v1227 = vadd.f32 %v1200, %v1225
        %s1228 = sld [smem:[#allocation2 + $0x31]]
        %v1229 = vld [vmem:[%s757] sm:$0xfe]
        %v1230 = vld [vmem:[%s757 + $0x8] sm:$0xfe]
        %v1231 = vld [vmem:[%s757 + $0x10] sm:$0x1]
        %v1232 = vld [vmem:[%s757 + $0x18] sm:$0x1]
        %v1233 = vstv %s1228
        %v1234 = vmul.f32 %v1229, %v1233
        %v1235 = vmul.f32 %v1230, %v1233
        %v1236 = vmul.f32 %v1231, %v1233
        %v1237 = vmul.f32 %v1232, %v1233
        %v1242 = vrot.slane %v1234, 1
        %v1243 = vrot.slane %v1236, 1
        %v1244 = vsel %vm378, %v1242, %v1243
        %v1245 = vrot.slane %v1235, 1
        %v1246 = vrot.slane %v1237, 1
        %v1247 = vsel %vm378, %v1245, %v1246
        %1248 = vrot.lane.b32.xlu0 %v1244, 127
        %v1249 = vpop.permute.xlu0 %1248
        %1250 = vrot.lane.b32.xlu0 %v1247, 127
        %v1251 = vpop.permute.xlu0 %1250
        %v1252 = vsel %vm249, %v1249, %v1251
        %v1254 = vadd.f32 %v1227, %v1252
        %s1255 = scalar_lea.vmem %s2, 8
        %v1256 = vld [vmem:[%s1255] sm:$0xff]
        %v1257 = vmul.f32 %v1254, %v1256
        %s1258 = scalar_lea.vmem %s229, 8
        %v1259 = vld [vmem:[%s1258] sm:$0xff]
        %v1260 = vmul.f32 %v1259, %v1256
        %v1261 = vsub.f32 %v1257, %v1260
        %v1262 = vand.u32 2147483647, %v1261
        %1263 = vadd.xlane.f32.xlu0 %v1262
        %v1264 = vpop.xlane.xlu0 %1263
        %v1265 = vrot.slane %v1264, 4
        %v1266 = vadd.f32 %v1264, %v1265
        %v1267 = vrot.slane %v1266, 2
        %v1268 = vadd.f32 %v1266, %v1267
        %v1269 = vrot.slane %v1268, 1
        %v1270 = vadd.f32 %v1268, %v1269
        %s1271 = vtos %v1270
        %s1272 = sadd.f32 %s755, %s1271
        %s1273 = sld [smem:[#allocation2 + $0x32]]
        %s1274 = scalar_lea.vmem %s224, 1376
        %v1275 = vld [vmem:[%s1274] sm:$0xff]
        %v1276 = vstv %s1273
        %v1277 = vmul.f32 %v1275, %v1276
        %v1278 = vadd.f32 %v1277, 0.0
        %s1279 = sld [smem:[#allocation2 + $0x33]]
        %s1280 = scalar_lea.vmem %s224, 1280
        %v1281 = vld [vmem:[%s1280] sm:$0xff]
        %v1282 = vld [vmem:[%s1280 + $0x8] sm:$0xff]
        %v1283 = vstv %s1279
        %v1284 = vmul.f32 %v1281, %v1283
        %v1285 = vmul.f32 %v1282, %v1283
        %1288 = vrot.lane.b32.xlu0 %v1284, 127
        %v1289 = vpop.permute.xlu0 %1288
        %1290 = vrot.lane.b32.xlu0 %v1285, 127
        %v1291 = vpop.permute.xlu0 %1290
        %v1292 = vsel %vm249, %v1289, %v1291
        %v1294 = vadd.f32 %v1278, %v1292
        %s1295 = sld [smem:[#allocation2 + $0x34]]
        %s1296 = scalar_lea.vmem %s224, 1312
        %v1297 = vld [vmem:[%s1296] sm:$0xff]
        %v1298 = vld [vmem:[%s1296 + $0x8] sm:$0xff]
        %v1299 = vstv %s1295
        %v1300 = vmul.f32 %v1297, %v1299
        %v1301 = vmul.f32 %v1298, %v1299
        %1304 = vrot.lane.b32.xlu0 %v1300, 127
        %v1305 = vpop.permute.xlu0 %1304
        %1306 = vrot.lane.b32.xlu0 %v1301, 127
        %v1307 = vpop.permute.xlu0 %1306
        %v1308 = vsel %vm249, %v1305, %v1307
        %v1310 = vadd.f32 %v1294, %v1308
        %s1311 = sld [smem:[#allocation2 + $0x35]]
        %s1312 = scalar_lea.vmem %s224, 1344
        %v1313 = vld [vmem:[%s1312] sm:$0xff]
        %v1314 = vld [vmem:[%s1312 + $0x8] sm:$0xff]
        %v1315 = vstv %s1311
        %v1316 = vmul.f32 %v1313, %v1315
        %v1317 = vmul.f32 %v1314, %v1315
        %1320 = vrot.lane.b32.xlu0 %v1316, 127
        %v1321 = vpop.permute.xlu0 %1320
        %1322 = vrot.lane.b32.xlu0 %v1317, 127
        %v1323 = vpop.permute.xlu0 %1322
        %v1324 = vsel %vm249, %v1321, %v1323
        %v1326 = vadd.f32 %v1310, %v1324
        %s1327 = sld [smem:[#allocation2 + $0x36]]
        %v1328 = vld [vmem:[%s1274] sm:$0xff]
        %v1329 = vld [vmem:[%s1274 + $0x8] sm:$0xff]
        %v1330 = vstv %s1327
        %v1331 = vmul.f32 %v1328, %v1330
        %v1332 = vmul.f32 %v1329, %v1330
        %1335 = vrot.lane.b32.xlu0 %v1331, 127
        %v1336 = vpop.permute.xlu0 %1335
        %1337 = vrot.lane.b32.xlu0 %v1332, 127
        %v1338 = vpop.permute.xlu0 %1337
        %v1339 = vsel %vm249, %v1336, %v1338
        %v1341 = vadd.f32 %v1326, %v1339
        %s1342 = sld [smem:[#allocation2 + $0x37]]
        %s1343 = scalar_lea.vmem %s224, 1504
        %v1344 = vld [vmem:[%s1343] sm:$0xff]
        %v1345 = vstv %s1342
        %v1346 = vmul.f32 %v1344, %v1345
        %v1347 = vadd.f32 %v1341, %v1346
        %s1348 = sld [smem:[#allocation2 + $0x38]]
        %s1349 = scalar_lea.vmem %s224, 1408
        %v1350 = vld [vmem:[%s1349] sm:$0xff]
        %v1351 = vld [vmem:[%s1349 + $0x8] sm:$0xff]
        %v1352 = vstv %s1348
        %v1353 = vmul.f32 %v1350, %v1352
        %v1354 = vmul.f32 %v1351, %v1352
        %1357 = vrot.lane.b32.xlu0 %v1353, 127
        %v1358 = vpop.permute.xlu0 %1357
        %1359 = vrot.lane.b32.xlu0 %v1354, 127
        %v1360 = vpop.permute.xlu0 %1359
        %v1361 = vsel %vm249, %v1358, %v1360
        %v1363 = vadd.f32 %v1347, %v1361
        %s1364 = sld [smem:[#allocation2 + $0x39]]
        %s1365 = scalar_lea.vmem %s224, 1440
        %v1366 = vld [vmem:[%s1365] sm:$0xff]
        %v1367 = vld [vmem:[%s1365 + $0x8] sm:$0xff]
        %v1368 = vstv %s1364
        %v1369 = vmul.f32 %v1366, %v1368
        %v1370 = vmul.f32 %v1367, %v1368
        %1373 = vrot.lane.b32.xlu0 %v1369, 127
        %v1374 = vpop.permute.xlu0 %1373
        %1375 = vrot.lane.b32.xlu0 %v1370, 127
        %v1376 = vpop.permute.xlu0 %1375
        %v1377 = vsel %vm249, %v1374, %v1376
        %v1379 = vadd.f32 %v1363, %v1377
        %s1380 = sld [smem:[#allocation2 + $0x3a]]
        %s1381 = scalar_lea.vmem %s224, 1472
        %v1382 = vld [vmem:[%s1381] sm:$0xff]
        %v1383 = vld [vmem:[%s1381 + $0x8] sm:$0xff]
        %v1384 = vstv %s1380
        %v1385 = vmul.f32 %v1382, %v1384
        %v1386 = vmul.f32 %v1383, %v1384
        %1389 = vrot.lane.b32.xlu0 %v1385, 127
        %v1390 = vpop.permute.xlu0 %1389
        %1391 = vrot.lane.b32.xlu0 %v1386, 127
        %v1392 = vpop.permute.xlu0 %1391
        %v1393 = vsel %vm249, %v1390, %v1392
        %v1395 = vadd.f32 %v1379, %v1393
        %s1396 = sld [smem:[#allocation2 + $0x3b]]
        %v1397 = vld [vmem:[%s1343] sm:$0xff]
        %v1398 = vld [vmem:[%s1343 + $0x8] sm:$0xff]
        %v1399 = vstv %s1396
        %v1400 = vmul.f32 %v1397, %v1399
        %v1401 = vmul.f32 %v1398, %v1399
        %1404 = vrot.lane.b32.xlu0 %v1400, 127
        %v1405 = vpop.permute.xlu0 %1404
        %1406 = vrot.lane.b32.xlu0 %v1401, 127
        %v1407 = vpop.permute.xlu0 %1406
        %v1408 = vsel %vm249, %v1405, %v1407
        %v1410 = vadd.f32 %v1395, %v1408
        %s1411 = sld [smem:[#allocation2 + $0x3c]]
        %s1412 = scalar_lea.vmem %s224, 1120
        %v1413 = vld [vmem:[%s1412] sm:$0xfe]
        %v1414 = vld [vmem:[%s1412 + $0x10] sm:$0x1]
        %v1415 = vstv %s1411
        %v1416 = vmul.f32 %v1413, %v1415
        %v1417 = vmul.f32 %v1414, %v1415
        %v1420 = vrot.slane %v1416, 1
        %v1421 = vrot.slane %v1417, 1
        %v1422 = vsel %vm378, %v1420, %v1421
        %v1424 = vadd.f32 %v1410, %v1422
        %s1425 = sld [smem:[#allocation2 + $0x3d]]
        %s1426 = scalar_lea.vmem %s224, 1024
        %v1427 = vld [vmem:[%s1426] sm:$0xfe]
        %v1428 = vld [vmem:[%s1426 + $0x8] sm:$0xfe]
        %v1429 = vld [vmem:[%s1426 + $0x10] sm:$0x1]
        %v1430 = vld [vmem:[%s1426 + $0x18] sm:$0x1]
        %v1431 = vstv %s1425
        %v1432 = vmul.f32 %v1427, %v1431
        %v1433 = vmul.f32 %v1428, %v1431
        %v1434 = vmul.f32 %v1429, %v1431
        %v1435 = vmul.f32 %v1430, %v1431
        %v1440 = vrot.slane %v1432, 1
        %v1441 = vrot.slane %v1434, 1
        %v1442 = vsel %vm378, %v1440, %v1441
        %v1443 = vrot.slane %v1433, 1
        %v1444 = vrot.slane %v1435, 1
        %v1445 = vsel %vm378, %v1443, %v1444
        %1446 = vrot.lane.b32.xlu0 %v1442, 127
        %v1447 = vpop.permute.xlu0 %1446
        %1448 = vrot.lane.b32.xlu0 %v1445, 127
        %v1449 = vpop.permute.xlu0 %1448
        %v1450 = vsel %vm249, %v1447, %v1449
        %v1452 = vadd.f32 %v1424, %v1450
        %s1453 = sld [smem:[#allocation2 + $0x3e]]
        %s1454 = scalar_lea.vmem %s224, 1056
        %v1455 = vld [vmem:[%s1454] sm:$0xfe]
        %v1456 = vld [vmem:[%s1454 + $0x8] sm:$0xfe]
        %v1457 = vld [vmem:[%s1454 + $0x10] sm:$0x1]
        %v1458 = vld [vmem:[%s1454 + $0x18] sm:$0x1]
        %v1459 = vstv %s1453
        %v1460 = vmul.f32 %v1455, %v1459
        %v1461 = vmul.f32 %v1456, %v1459
        %v1462 = vmul.f32 %v1457, %v1459
        %v1463 = vmul.f32 %v1458, %v1459
        %v1468 = vrot.slane %v1460, 1
        %v1469 = vrot.slane %v1462, 1
        %v1470 = vsel %vm378, %v1468, %v1469
        %v1471 = vrot.slane %v1461, 1
        %v1472 = vrot.slane %v1463, 1
        %v1473 = vsel %vm378, %v1471, %v1472
        %1474 = vrot.lane.b32.xlu0 %v1470, 127
        %v1475 = vpop.permute.xlu0 %1474
        %1476 = vrot.lane.b32.xlu0 %v1473, 127
        %v1477 = vpop.permute.xlu0 %1476
        %v1478 = vsel %vm249, %v1475, %v1477
        %v1480 = vadd.f32 %v1452, %v1478
        %s1481 = sld [smem:[#allocation2 + $0x3f]]
        %s1482 = scalar_lea.vmem %s224, 1088
        %v1483 = vld [vmem:[%s1482] sm:$0xfe]
        %v1484 = vld [vmem:[%s1482 + $0x8] sm:$0xfe]
        %v1485 = vld [vmem:[%s1482 + $0x10] sm:$0x1]
        %v1486 = vld [vmem:[%s1482 + $0x18] sm:$0x1]
        %v1487 = vstv %s1481
        %v1488 = vmul.f32 %v1483, %v1487
        %v1489 = vmul.f32 %v1484, %v1487
        %v1490 = vmul.f32 %v1485, %v1487
        %v1491 = vmul.f32 %v1486, %v1487
        %v1496 = vrot.slane %v1488, 1
        %v1497 = vrot.slane %v1490, 1
        %v1498 = vsel %vm378, %v1496, %v1497
        %v1499 = vrot.slane %v1489, 1
        %v1500 = vrot.slane %v1491, 1
        %v1501 = vsel %vm378, %v1499, %v1500
        %1502 = vrot.lane.b32.xlu0 %v1498, 127
        %v1503 = vpop.permute.xlu0 %1502
        %1504 = vrot.lane.b32.xlu0 %v1501, 127
        %v1505 = vpop.permute.xlu0 %1504
        %v1506 = vsel %vm249, %v1503, %v1505
        %v1508 = vadd.f32 %v1480, %v1506
        %s1509 = sld [smem:[#allocation2 + $0x40]]
        %v1510 = vld [vmem:[%s1412] sm:$0xfe]
        %v1511 = vld [vmem:[%s1412 + $0x8] sm:$0xfe]
        %v1512 = vld [vmem:[%s1412 + $0x10] sm:$0x1]
        %v1513 = vld [vmem:[%s1412 + $0x18] sm:$0x1]
        %v1514 = vstv %s1509
        %v1515 = vmul.f32 %v1510, %v1514
        %v1516 = vmul.f32 %v1511, %v1514
        %v1517 = vmul.f32 %v1512, %v1514
        %v1518 = vmul.f32 %v1513, %v1514
        %v1523 = vrot.slane %v1515, 1
        %v1524 = vrot.slane %v1517, 1
        %v1525 = vsel %vm378, %v1523, %v1524
        %v1526 = vrot.slane %v1516, 1
        %v1527 = vrot.slane %v1518, 1
        %v1528 = vsel %vm378, %v1526, %v1527
        %1529 = vrot.lane.b32.xlu0 %v1525, 127
        %v1530 = vpop.permute.xlu0 %1529
        %1531 = vrot.lane.b32.xlu0 %v1528, 127
        %v1532 = vpop.permute.xlu0 %1531
        %v1533 = vsel %vm249, %v1530, %v1532
        %v1535 = vadd.f32 %v1508, %v1533
        %s1536 = sld [smem:[#allocation2 + $0x41]]
        %s1537 = scalar_lea.vmem %s224, 1248
        %v1538 = vld [vmem:[%s1537] sm:$0xfe]
        %v1539 = vld [vmem:[%s1537 + $0x10] sm:$0x1]
        %v1540 = vstv %s1536
        %v1541 = vmul.f32 %v1538, %v1540
        %v1542 = vmul.f32 %v1539, %v1540
        %v1545 = vrot.slane %v1541, 1
        %v1546 = vrot.slane %v1542, 1
        %v1547 = vsel %vm378, %v1545, %v1546
        %v1549 = vadd.f32 %v1535, %v1547
        %s1550 = sld [smem:[#allocation2 + $0x42]]
        %s1551 = scalar_lea.vmem %s224, 1152
        %v1552 = vld [vmem:[%s1551] sm:$0xfe]
        %v1553 = vld [vmem:[%s1551 + $0x8] sm:$0xfe]
        %v1554 = vld [vmem:[%s1551 + $0x10] sm:$0x1]
        %v1555 = vld [vmem:[%s1551 + $0x18] sm:$0x1]
        %v1556 = vstv %s1550
        %v1557 = vmul.f32 %v1552, %v1556
        %v1558 = vmul.f32 %v1553, %v1556
        %v1559 = vmul.f32 %v1554, %v1556
        %v1560 = vmul.f32 %v1555, %v1556
        %v1565 = vrot.slane %v1557, 1
        %v1566 = vrot.slane %v1559, 1
        %v1567 = vsel %vm378, %v1565, %v1566
        %v1568 = vrot.slane %v1558, 1
        %v1569 = vrot.slane %v1560, 1
        %v1570 = vsel %vm378, %v1568, %v1569
        %1571 = vrot.lane.b32.xlu0 %v1567, 127
        %v1572 = vpop.permute.xlu0 %1571
        %1573 = vrot.lane.b32.xlu0 %v1570, 127
        %v1574 = vpop.permute.xlu0 %1573
        %v1575 = vsel %vm249, %v1572, %v1574
        %v1577 = vadd.f32 %v1549, %v1575
        %s1578 = sld [smem:[#allocation2 + $0x43]]
        %s1579 = scalar_lea.vmem %s224, 1184
        %v1580 = vld [vmem:[%s1579] sm:$0xfe]
        %v1581 = vld [vmem:[%s1579 + $0x8] sm:$0xfe]
        %v1582 = vld [vmem:[%s1579 + $0x10] sm:$0x1]
        %v1583 = vld [vmem:[%s1579 + $0x18] sm:$0x1]
        %v1584 = vstv %s1578
        %v1585 = vmul.f32 %v1580, %v1584
        %v1586 = vmul.f32 %v1581, %v1584
        %v1587 = vmul.f32 %v1582, %v1584
        %v1588 = vmul.f32 %v1583, %v1584
        %v1593 = vrot.slane %v1585, 1
        %v1594 = vrot.slane %v1587, 1
        %v1595 = vsel %vm378, %v1593, %v1594
        %v1596 = vrot.slane %v1586, 1
        %v1597 = vrot.slane %v1588, 1
        %v1598 = vsel %vm378, %v1596, %v1597
        %1599 = vrot.lane.b32.xlu0 %v1595, 127
        %v1600 = vpop.permute.xlu0 %1599
        %1601 = vrot.lane.b32.xlu0 %v1598, 127
        %v1602 = vpop.permute.xlu0 %1601
        %v1603 = vsel %vm249, %v1600, %v1602
        %v1605 = vadd.f32 %v1577, %v1603
        %s1606 = sld [smem:[#allocation2 + $0x44]]
        %s1607 = scalar_lea.vmem %s224, 1216
        %v1608 = vld [vmem:[%s1607] sm:$0xfe]
        %v1609 = vld [vmem:[%s1607 + $0x8] sm:$0xfe]
        %v1610 = vld [vmem:[%s1607 + $0x10] sm:$0x1]
        %v1611 = vld [vmem:[%s1607 + $0x18] sm:$0x1]
        %v1612 = vstv %s1606
        %v1613 = vmul.f32 %v1608, %v1612
        %v1614 = vmul.f32 %v1609, %v1612
        %v1615 = vmul.f32 %v1610, %v1612
        %v1616 = vmul.f32 %v1611, %v1612
        %v1621 = vrot.slane %v1613, 1
        %v1622 = vrot.slane %v1615, 1
        %v1623 = vsel %vm378, %v1621, %v1622
        %v1624 = vrot.slane %v1614, 1
        %v1625 = vrot.slane %v1616, 1
        %v1626 = vsel %vm378, %v1624, %v1625
        %1627 = vrot.lane.b32.xlu0 %v1623, 127
        %v1628 = vpop.permute.xlu0 %1627
        %1629 = vrot.lane.b32.xlu0 %v1626, 127
        %v1630 = vpop.permute.xlu0 %1629
        %v1631 = vsel %vm249, %v1628, %v1630
        %v1633 = vadd.f32 %v1605, %v1631
        %s1634 = sld [smem:[#allocation2 + $0x45]]
        %v1635 = vld [vmem:[%s1537] sm:$0xfe]
        %v1636 = vld [vmem:[%s1537 + $0x8] sm:$0xfe]
        %v1637 = vld [vmem:[%s1537 + $0x10] sm:$0x1]
        %v1638 = vld [vmem:[%s1537 + $0x18] sm:$0x1]
        %v1639 = vstv %s1634
        %v1640 = vmul.f32 %v1635, %v1639
        %v1641 = vmul.f32 %v1636, %v1639
        %v1642 = vmul.f32 %v1637, %v1639
        %v1643 = vmul.f32 %v1638, %v1639
        %v1648 = vrot.slane %v1640, 1
        %v1649 = vrot.slane %v1642, 1
        %v1650 = vsel %vm378, %v1648, %v1649
        %v1651 = vrot.slane %v1641, 1
        %v1652 = vrot.slane %v1643, 1
        %v1653 = vsel %vm378, %v1651, %v1652
        %1654 = vrot.lane.b32.xlu0 %v1650, 127
        %v1655 = vpop.permute.xlu0 %1654
        %1656 = vrot.lane.b32.xlu0 %v1653, 127
        %v1657 = vpop.permute.xlu0 %1656
        %v1658 = vsel %vm249, %v1655, %v1657
        %v1660 = vadd.f32 %v1633, %v1658
        %s1661 = sld [smem:[#allocation2 + $0x46]]
        %v1662 = vld [vmem:[%s1274] sm:$0xfe]
        %v1663 = vld [vmem:[%s1274 + $0x10] sm:$0x1]
        %v1664 = vstv %s1661
        %v1665 = vmul.f32 %v1662, %v1664
        %v1666 = vmul.f32 %v1663, %v1664
        %v1669 = vrot.slane %v1665, 1
        %v1670 = vrot.slane %v1666, 1
        %v1671 = vsel %vm378, %v1669, %v1670
        %v1673 = vadd.f32 %v1660, %v1671
        %s1674 = sld [smem:[#allocation2 + $0x47]]
        %v1675 = vld [vmem:[%s1280] sm:$0xfe]
        %v1676 = vld [vmem:[%s1280 + $0x8] sm:$0xfe]
        %v1677 = vld [vmem:[%s1280 + $0x10] sm:$0x1]
        %v1678 = vld [vmem:[%s1280 + $0x18] sm:$0x1]
        %v1679 = vstv %s1674
        %v1680 = vmul.f32 %v1675, %v1679
        %v1681 = vmul.f32 %v1676, %v1679
        %v1682 = vmul.f32 %v1677, %v1679
        %v1683 = vmul.f32 %v1678, %v1679
        %v1688 = vrot.slane %v1680, 1
        %v1689 = vrot.slane %v1682, 1
        %v1690 = vsel %vm378, %v1688, %v1689
        %v1691 = vrot.slane %v1681, 1
        %v1692 = vrot.slane %v1683, 1
        %v1693 = vsel %vm378, %v1691, %v1692
        %1694 = vrot.lane.b32.xlu0 %v1690, 127
        %v1695 = vpop.permute.xlu0 %1694
        %1696 = vrot.lane.b32.xlu0 %v1693, 127
        %v1697 = vpop.permute.xlu0 %1696
        %v1698 = vsel %vm249, %v1695, %v1697
        %v1700 = vadd.f32 %v1673, %v1698
        %s1701 = sld [smem:[#allocation2 + $0x48]]
        %v1702 = vld [vmem:[%s1296] sm:$0xfe]
        %v1703 = vld [vmem:[%s1296 + $0x8] sm:$0xfe]
        %v1704 = vld [vmem:[%s1296 + $0x10] sm:$0x1]
        %v1705 = vld [vmem:[%s1296 + $0x18] sm:$0x1]
        %v1706 = vstv %s1701
        %v1707 = vmul.f32 %v1702, %v1706
        %v1708 = vmul.f32 %v1703, %v1706
        %v1709 = vmul.f32 %v1704, %v1706
        %v1710 = vmul.f32 %v1705, %v1706
        %v1715 = vrot.slane %v1707, 1
        %v1716 = vrot.slane %v1709, 1
        %v1717 = vsel %vm378, %v1715, %v1716
        %v1718 = vrot.slane %v1708, 1
        %v1719 = vrot.slane %v1710, 1
        %v1720 = vsel %vm378, %v1718, %v1719
        %1721 = vrot.lane.b32.xlu0 %v1717, 127
        %v1722 = vpop.permute.xlu0 %1721
        %1723 = vrot.lane.b32.xlu0 %v1720, 127
        %v1724 = vpop.permute.xlu0 %1723
        %v1725 = vsel %vm249, %v1722, %v1724
        %v1727 = vadd.f32 %v1700, %v1725
        %s1728 = sld [smem:[#allocation2 + $0x49]]
        %v1729 = vld [vmem:[%s1312] sm:$0xfe]
        %v1730 = vld [vmem:[%s1312 + $0x8] sm:$0xfe]
        %v1731 = vld [vmem:[%s1312 + $0x10] sm:$0x1]
        %v1732 = vld [vmem:[%s1312 + $0x18] sm:$0x1]
        %v1733 = vstv %s1728
        %v1734 = vmul.f32 %v1729, %v1733
        %v1735 = vmul.f32 %v1730, %v1733
        %v1736 = vmul.f32 %v1731, %v1733
        %v1737 = vmul.f32 %v1732, %v1733
        %v1742 = vrot.slane %v1734, 1
        %v1743 = vrot.slane %v1736, 1
        %v1744 = vsel %vm378, %v1742, %v1743
        %v1745 = vrot.slane %v1735, 1
        %v1746 = vrot.slane %v1737, 1
        %v1747 = vsel %vm378, %v1745, %v1746
        %1748 = vrot.lane.b32.xlu0 %v1744, 127
        %v1749 = vpop.permute.xlu0 %1748
        %1750 = vrot.lane.b32.xlu0 %v1747, 127
        %v1751 = vpop.permute.xlu0 %1750
        %v1752 = vsel %vm249, %v1749, %v1751
        %v1754 = vadd.f32 %v1727, %v1752
        %s1755 = sld [smem:[#allocation2 + $0x4a]]
        %v1756 = vld [vmem:[%s1274] sm:$0xfe]
        %v1757 = vld [vmem:[%s1274 + $0x8] sm:$0xfe]
        %v1758 = vld [vmem:[%s1274 + $0x10] sm:$0x1]
        %v1759 = vld [vmem:[%s1274 + $0x18] sm:$0x1]
        %v1760 = vstv %s1755
        %v1761 = vmul.f32 %v1756, %v1760
        %v1762 = vmul.f32 %v1757, %v1760
        %v1763 = vmul.f32 %v1758, %v1760
        %v1764 = vmul.f32 %v1759, %v1760
        %v1769 = vrot.slane %v1761, 1
        %v1770 = vrot.slane %v1763, 1
        %v1771 = vsel %vm378, %v1769, %v1770
        %v1772 = vrot.slane %v1762, 1
        %v1773 = vrot.slane %v1764, 1
        %v1774 = vsel %vm378, %v1772, %v1773
        %1775 = vrot.lane.b32.xlu0 %v1771, 127
        %v1776 = vpop.permute.xlu0 %1775
        %1777 = vrot.lane.b32.xlu0 %v1774, 127
        %v1778 = vpop.permute.xlu0 %1777
        %v1779 = vsel %vm249, %v1776, %v1778
        %v1781 = vadd.f32 %v1754, %v1779
        %s1782 = scalar_lea.vmem %s2, 16
        %v1783 = vld [vmem:[%s1782] sm:$0xff]
        %v1784 = vmul.f32 %v1781, %v1783
        %s1785 = scalar_lea.vmem %s229, 16
        %v1786 = vld [vmem:[%s1785] sm:$0xff]
        %v1787 = vmul.f32 %v1786, %v1783
        %v1788 = vsub.f32 %v1784, %v1787
        %v1789 = vand.u32 2147483647, %v1788
        %1790 = vadd.xlane.f32.xlu0 %v1789
        %v1791 = vpop.xlane.xlu0 %1790
        %v1792 = vrot.slane %v1791, 4
        %v1793 = vadd.f32 %v1791, %v1792
        %v1794 = vrot.slane %v1793, 2
        %v1795 = vadd.f32 %v1793, %v1794
        %v1796 = vrot.slane %v1795, 1
        %v1797 = vadd.f32 %v1795, %v1796
        %s1798 = vtos %v1797
        %s1799 = sadd.f32 %s1272, %s1798
        %s1800 = sld [smem:[#allocation2 + $0x4b]]
        %s1801 = scalar_lea.vmem %s224, 1984
        %v1802 = vld [vmem:[%s1801] sm:$0xff]
        %v1803 = vstv %s1800
        %v1804 = vmul.f32 %v1802, %v1803
        %v1805 = vadd.f32 %v1804, 0.0
        %s1806 = sld [smem:[#allocation2 + $0x4c]]
        %s1807 = scalar_lea.vmem %s224, 2016
        %v1808 = vld [vmem:[%s1807] sm:$0xff]
        %v1809 = vstv %s1806
        %v1810 = vmul.f32 %v1808, %v1809
        %v1811 = vadd.f32 %v1805, %v1810
        %s1812 = sld [smem:[#allocation2 + $0x4d]]
        %s1813 = scalar_lea.vmem %s224, 1920
        %v1814 = vld [vmem:[%s1813] sm:$0xff]
        %v1815 = vld [vmem:[%s1813 + $0x8] sm:$0xff]
        %v1816 = vstv %s1812
        %v1817 = vmul.f32 %v1814, %v1816
        %v1818 = vmul.f32 %v1815, %v1816
        %1821 = vrot.lane.b32.xlu0 %v1817, 127
        %v1822 = vpop.permute.xlu0 %1821
        %1823 = vrot.lane.b32.xlu0 %v1818, 127
        %v1824 = vpop.permute.xlu0 %1823
        %v1825 = vsel %vm249, %v1822, %v1824
        %v1827 = vadd.f32 %v1811, %v1825
        %s1828 = sld [smem:[#allocation2 + $0x4e]]
        %s1829 = scalar_lea.vmem %s224, 1952
        %v1830 = vld [vmem:[%s1829] sm:$0xff]
        %v1831 = vld [vmem:[%s1829 + $0x8] sm:$0xff]
        %v1832 = vstv %s1828
        %v1833 = vmul.f32 %v1830, %v1832
        %v1834 = vmul.f32 %v1831, %v1832
        %1837 = vrot.lane.b32.xlu0 %v1833, 127
        %v1838 = vpop.permute.xlu0 %1837
        %1839 = vrot.lane.b32.xlu0 %v1834, 127
        %v1840 = vpop.permute.xlu0 %1839
        %v1841 = vsel %vm249, %v1838, %v1840
        %v1843 = vadd.f32 %v1827, %v1841
        %s1844 = sld [smem:[#allocation2 + $0x4f]]
        %v1845 = vld [vmem:[%s1801] sm:$0xff]
        %v1846 = vld [vmem:[%s1801 + $0x8] sm:$0xff]
        %v1847 = vstv %s1844
        %v1848 = vmul.f32 %v1845, %v1847
        %v1849 = vmul.f32 %v1846, %v1847
        %1852 = vrot.lane.b32.xlu0 %v1848, 127
        %v1853 = vpop.permute.xlu0 %1852
        %1854 = vrot.lane.b32.xlu0 %v1849, 127
        %v1855 = vpop.permute.xlu0 %1854
        %v1856 = vsel %vm249, %v1853, %v1855
        %v1858 = vadd.f32 %v1843, %v1856
        %s1859 = sld [smem:[#allocation2 + $0x50]]
        %s1860 = scalar_lea.vmem %s224, 1600
        %v1861 = vld [vmem:[%s1860] sm:$0xfe]
        %v1862 = vld [vmem:[%s1860 + $0x10] sm:$0x1]
        %v1863 = vstv %s1859
        %v1864 = vmul.f32 %v1861, %v1863
        %v1865 = vmul.f32 %v1862, %v1863
        %v1868 = vrot.slane %v1864, 1
        %v1869 = vrot.slane %v1865, 1
        %v1870 = vsel %vm378, %v1868, %v1869
        %v1872 = vadd.f32 %v1858, %v1870
        %s1873 = sld [smem:[#allocation2 + $0x51]]
        %s1874 = scalar_lea.vmem %s224, 1632
        %v1875 = vld [vmem:[%s1874] sm:$0xfe]
        %v1876 = vld [vmem:[%s1874 + $0x10] sm:$0x1]
        %v1877 = vstv %s1873
        %v1878 = vmul.f32 %v1875, %v1877
        %v1879 = vmul.f32 %v1876, %v1877
        %v1882 = vrot.slane %v1878, 1
        %v1883 = vrot.slane %v1879, 1
        %v1884 = vsel %vm378, %v1882, %v1883
        %v1886 = vadd.f32 %v1872, %v1884
        %s1887 = sld [smem:[#allocation2 + $0x52]]
        %s1888 = scalar_lea.vmem %s224, 1536
        %v1889 = vld [vmem:[%s1888] sm:$0xfe]
        %v1890 = vld [vmem:[%s1888 + $0x8] sm:$0xfe]
        %v1891 = vld [vmem:[%s1888 + $0x10] sm:$0x1]
        %v1892 = vld [vmem:[%s1888 + $0x18] sm:$0x1]
        %v1893 = vstv %s1887
        %v1894 = vmul.f32 %v1889, %v1893
        %v1895 = vmul.f32 %v1890, %v1893
        %v1896 = vmul.f32 %v1891, %v1893
        %v1897 = vmul.f32 %v1892, %v1893
        %v1902 = vrot.slane %v1894, 1
        %v1903 = vrot.slane %v1896, 1
        %v1904 = vsel %vm378, %v1902, %v1903
        %v1905 = vrot.slane %v1895, 1
        %v1906 = vrot.slane %v1897, 1
        %v1907 = vsel %vm378, %v1905, %v1906
        %1908 = vrot.lane.b32.xlu0 %v1904, 127
        %v1909 = vpop.permute.xlu0 %1908
        %1910 = vrot.lane.b32.xlu0 %v1907, 127
        %v1911 = vpop.permute.xlu0 %1910
        %v1912 = vsel %vm249, %v1909, %v1911
        %v1914 = vadd.f32 %v1886, %v1912
        %s1915 = sld [smem:[#allocation2 + $0x53]]
        %s1916 = scalar_lea.vmem %s224, 1568
        %v1917 = vld [vmem:[%s1916] sm:$0xfe]
        %v1918 = vld [vmem:[%s1916 + $0x8] sm:$0xfe]
        %v1919 = vld [vmem:[%s1916 + $0x10] sm:$0x1]
        %v1920 = vld [vmem:[%s1916 + $0x18] sm:$0x1]
        %v1921 = vstv %s1915
        %v1922 = vmul.f32 %v1917, %v1921
        %v1923 = vmul.f32 %v1918, %v1921
        %v1924 = vmul.f32 %v1919, %v1921
        %v1925 = vmul.f32 %v1920, %v1921
        %v1930 = vrot.slane %v1922, 1
        %v1931 = vrot.slane %v1924, 1
        %v1932 = vsel %vm378, %v1930, %v1931
        %v1933 = vrot.slane %v1923, 1
        %v1934 = vrot.slane %v1925, 1
        %v1935 = vsel %vm378, %v1933, %v1934
        %1936 = vrot.lane.b32.xlu0 %v1932, 127
        %v1937 = vpop.permute.xlu0 %1936
        %1938 = vrot.lane.b32.xlu0 %v1935, 127
        %v1939 = vpop.permute.xlu0 %1938
        %v1940 = vsel %vm249, %v1937, %v1939
        %v1942 = vadd.f32 %v1914, %v1940
        %s1943 = sld [smem:[#allocation2 + $0x54]]
        %v1944 = vld [vmem:[%s1860] sm:$0xfe]
        %v1945 = vld [vmem:[%s1860 + $0x8] sm:$0xfe]
        %v1946 = vld [vmem:[%s1860 + $0x10] sm:$0x1]
        %v1947 = vld [vmem:[%s1860 + $0x18] sm:$0x1]
        %v1948 = vstv %s1943
        %v1949 = vmul.f32 %v1944, %v1948
        %v1950 = vmul.f32 %v1945, %v1948
        %v1951 = vmul.f32 %v1946, %v1948
        %v1952 = vmul.f32 %v1947, %v1948
        %v1957 = vrot.slane %v1949, 1
        %v1958 = vrot.slane %v1951, 1
        %v1959 = vsel %vm378, %v1957, %v1958
        %v1960 = vrot.slane %v1950, 1
        %v1961 = vrot.slane %v1952, 1
        %v1962 = vsel %vm378, %v1960, %v1961
        %1963 = vrot.lane.b32.xlu0 %v1959, 127
        %v1964 = vpop.permute.xlu0 %1963
        %1965 = vrot.lane.b32.xlu0 %v1962, 127
        %v1966 = vpop.permute.xlu0 %1965
        %v1967 = vsel %vm249, %v1964, %v1966
        %v1969 = vadd.f32 %v1942, %v1967
        %s1970 = sld [smem:[#allocation2 + $0x55]]
        %s1971 = scalar_lea.vmem %s224, 1728
        %v1972 = vld [vmem:[%s1971] sm:$0xfe]
        %v1973 = vld [vmem:[%s1971 + $0x10] sm:$0x1]
        %v1974 = vstv %s1970
        %v1975 = vmul.f32 %v1972, %v1974
        %v1976 = vmul.f32 %v1973, %v1974
        %v1979 = vrot.slane %v1975, 1
        %v1980 = vrot.slane %v1976, 1
        %v1981 = vsel %vm378, %v1979, %v1980
        %v1983 = vadd.f32 %v1969, %v1981
        %s1984 = sld [smem:[#allocation2 + $0x56]]
        %s1985 = scalar_lea.vmem %s224, 1760
        %v1986 = vld [vmem:[%s1985] sm:$0xfe]
        %v1987 = vld [vmem:[%s1985 + $0x10] sm:$0x1]
        %v1988 = vstv %s1984
        %v1989 = vmul.f32 %v1986, %v1988
        %v1990 = vmul.f32 %v1987, %v1988
        %v1993 = vrot.slane %v1989, 1
        %v1994 = vrot.slane %v1990, 1
        %v1995 = vsel %vm378, %v1993, %v1994
        %v1997 = vadd.f32 %v1983, %v1995
        %s1998 = sld [smem:[#allocation2 + $0x57]]
        %s1999 = scalar_lea.vmem %s224, 1664
        %v2000 = vld [vmem:[%s1999] sm:$0xfe]
        %v2001 = vld [vmem:[%s1999 + $0x8] sm:$0xfe]
        %v2002 = vld [vmem:[%s1999 + $0x10] sm:$0x1]
        %v2003 = vld [vmem:[%s1999 + $0x18] sm:$0x1]
        %v2004 = vstv %s1998
        %v2005 = vmul.f32 %v2000, %v2004
        %v2006 = vmul.f32 %v2001, %v2004
        %v2007 = vmul.f32 %v2002, %v2004
        %v2008 = vmul.f32 %v2003, %v2004
        %v2013 = vrot.slane %v2005, 1
        %v2014 = vrot.slane %v2007, 1
        %v2015 = vsel %vm378, %v2013, %v2014
        %v2016 = vrot.slane %v2006, 1
        %v2017 = vrot.slane %v2008, 1
        %v2018 = vsel %vm378, %v2016, %v2017
        %2019 = vrot.lane.b32.xlu0 %v2015, 127
        %v2020 = vpop.permute.xlu0 %2019
        %2021 = vrot.lane.b32.xlu0 %v2018, 127
        %v2022 = vpop.permute.xlu0 %2021
        %v2023 = vsel %vm249, %v2020, %v2022
        %v2025 = vadd.f32 %v1997, %v2023
        %s2026 = sld [smem:[#allocation2 + $0x58]]
        %s2027 = scalar_lea.vmem %s224, 1696
        %v2028 = vld [vmem:[%s2027] sm:$0xfe]
        %v2029 = vld [vmem:[%s2027 + $0x8] sm:$0xfe]
        %v2030 = vld [vmem:[%s2027 + $0x10] sm:$0x1]
        %v2031 = vld [vmem:[%s2027 + $0x18] sm:$0x1]
        %v2032 = vstv %s2026
        %v2033 = vmul.f32 %v2028, %v2032
        %v2034 = vmul.f32 %v2029, %v2032
        %v2035 = vmul.f32 %v2030, %v2032
        %v2036 = vmul.f32 %v2031, %v2032
        %v2041 = vrot.slane %v2033, 1
        %v2042 = vrot.slane %v2035, 1
        %v2043 = vsel %vm378, %v2041, %v2042
        %v2044 = vrot.slane %v2034, 1
        %v2045 = vrot.slane %v2036, 1
        %v2046 = vsel %vm378, %v2044, %v2045
        %2047 = vrot.lane.b32.xlu0 %v2043, 127
        %v2048 = vpop.permute.xlu0 %2047
        %2049 = vrot.lane.b32.xlu0 %v2046, 127
        %v2050 = vpop.permute.xlu0 %2049
        %v2051 = vsel %vm249, %v2048, %v2050
        %v2053 = vadd.f32 %v2025, %v2051
        %s2054 = sld [smem:[#allocation2 + $0x59]]
        %v2055 = vld [vmem:[%s1971] sm:$0xfe]
        %v2056 = vld [vmem:[%s1971 + $0x8] sm:$0xfe]
        %v2057 = vld [vmem:[%s1971 + $0x10] sm:$0x1]
        %v2058 = vld [vmem:[%s1971 + $0x18] sm:$0x1]
        %v2059 = vstv %s2054
        %v2060 = vmul.f32 %v2055, %v2059
        %v2061 = vmul.f32 %v2056, %v2059
        %v2062 = vmul.f32 %v2057, %v2059
        %v2063 = vmul.f32 %v2058, %v2059
        %v2068 = vrot.slane %v2060, 1
        %v2069 = vrot.slane %v2062, 1
        %v2070 = vsel %vm378, %v2068, %v2069
        %v2071 = vrot.slane %v2061, 1
        %v2072 = vrot.slane %v2063, 1
        %v2073 = vsel %vm378, %v2071, %v2072
        %2074 = vrot.lane.b32.xlu0 %v2070, 127
        %v2075 = vpop.permute.xlu0 %2074
        %2076 = vrot.lane.b32.xlu0 %v2073, 127
        %v2077 = vpop.permute.xlu0 %2076
        %v2078 = vsel %vm249, %v2075, %v2077
        %v2080 = vadd.f32 %v2053, %v2078
        %s2081 = sld [smem:[#allocation2 + $0x5a]]
        %s2082 = scalar_lea.vmem %s224, 1856
        %v2083 = vld [vmem:[%s2082] sm:$0xfe]
        %v2084 = vld [vmem:[%s2082 + $0x10] sm:$0x1]
        %v2085 = vstv %s2081
        %v2086 = vmul.f32 %v2083, %v2085
        %v2087 = vmul.f32 %v2084, %v2085
        %v2090 = vrot.slane %v2086, 1
        %v2091 = vrot.slane %v2087, 1
        %v2092 = vsel %vm378, %v2090, %v2091
        %v2094 = vadd.f32 %v2080, %v2092
        %s2095 = sld [smem:[#allocation2 + $0x5b]]
        %s2096 = scalar_lea.vmem %s224, 1888
        %v2097 = vld [vmem:[%s2096] sm:$0xfe]
        %v2098 = vld [vmem:[%s2096 + $0x10] sm:$0x1]
        %v2099 = vstv %s2095
        %v2100 = vmul.f32 %v2097, %v2099
        %v2101 = vmul.f32 %v2098, %v2099
        %v2104 = vrot.slane %v2100, 1
        %v2105 = vrot.slane %v2101, 1
        %v2106 = vsel %vm378, %v2104, %v2105
        %v2108 = vadd.f32 %v2094, %v2106
        %s2109 = sld [smem:[#allocation2 + $0x5c]]
        %s2110 = scalar_lea.vmem %s224, 1792
        %v2111 = vld [vmem:[%s2110] sm:$0xfe]
        %v2112 = vld [vmem:[%s2110 + $0x8] sm:$0xfe]
        %v2113 = vld [vmem:[%s2110 + $0x10] sm:$0x1]
        %v2114 = vld [vmem:[%s2110 + $0x18] sm:$0x1]
        %v2115 = vstv %s2109
        %v2116 = vmul.f32 %v2111, %v2115
        %v2117 = vmul.f32 %v2112, %v2115
        %v2118 = vmul.f32 %v2113, %v2115
        %v2119 = vmul.f32 %v2114, %v2115
        %v2124 = vrot.slane %v2116, 1
        %v2125 = vrot.slane %v2118, 1
        %v2126 = vsel %vm378, %v2124, %v2125
        %v2127 = vrot.slane %v2117, 1
        %v2128 = vrot.slane %v2119, 1
        %v2129 = vsel %vm378, %v2127, %v2128
        %2130 = vrot.lane.b32.xlu0 %v2126, 127
        %v2131 = vpop.permute.xlu0 %2130
        %2132 = vrot.lane.b32.xlu0 %v2129, 127
        %v2133 = vpop.permute.xlu0 %2132
        %v2134 = vsel %vm249, %v2131, %v2133
        %v2136 = vadd.f32 %v2108, %v2134
        %s2137 = sld [smem:[#allocation2 + $0x5d]]
        %s2138 = scalar_lea.vmem %s224, 1824
        %v2139 = vld [vmem:[%s2138] sm:$0xfe]
        %v2140 = vld [vmem:[%s2138 + $0x8] sm:$0xfe]
        %v2141 = vld [vmem:[%s2138 + $0x10] sm:$0x1]
        %v2142 = vld [vmem:[%s2138 + $0x18] sm:$0x1]
        %v2143 = vstv %s2137
        %v2144 = vmul.f32 %v2139, %v2143
        %v2145 = vmul.f32 %v2140, %v2143
        %v2146 = vmul.f32 %v2141, %v2143
        %v2147 = vmul.f32 %v2142, %v2143
        %v2152 = vrot.slane %v2144, 1
        %v2153 = vrot.slane %v2146, 1
        %v2154 = vsel %vm378, %v2152, %v2153
        %v2155 = vrot.slane %v2145, 1
        %v2156 = vrot.slane %v2147, 1
        %v2157 = vsel %vm378, %v2155, %v2156
        %2158 = vrot.lane.b32.xlu0 %v2154, 127
        %v2159 = vpop.permute.xlu0 %2158
        %2160 = vrot.lane.b32.xlu0 %v2157, 127
        %v2161 = vpop.permute.xlu0 %2160
        %v2162 = vsel %vm249, %v2159, %v2161
        %v2164 = vadd.f32 %v2136, %v2162
        %s2165 = sld [smem:[#allocation2 + $0x5e]]
        %v2166 = vld [vmem:[%s2082] sm:$0xfe]
        %v2167 = vld [vmem:[%s2082 + $0x8] sm:$0xfe]
        %v2168 = vld [vmem:[%s2082 + $0x10] sm:$0x1]
        %v2169 = vld [vmem:[%s2082 + $0x18] sm:$0x1]
        %v2170 = vstv %s2165
        %v2171 = vmul.f32 %v2166, %v2170
        %v2172 = vmul.f32 %v2167, %v2170
        %v2173 = vmul.f32 %v2168, %v2170
        %v2174 = vmul.f32 %v2169, %v2170
        %v2179 = vrot.slane %v2171, 1
        %v2180 = vrot.slane %v2173, 1
        %v2181 = vsel %vm378, %v2179, %v2180
        %v2182 = vrot.slane %v2172, 1
        %v2183 = vrot.slane %v2174, 1
        %v2184 = vsel %vm378, %v2182, %v2183
        %2185 = vrot.lane.b32.xlu0 %v2181, 127
        %v2186 = vpop.permute.xlu0 %2185
        %2187 = vrot.lane.b32.xlu0 %v2184, 127
        %v2188 = vpop.permute.xlu0 %2187
        %v2189 = vsel %vm249, %v2186, %v2188
        %v2191 = vadd.f32 %v2164, %v2189
        %s2192 = sld [smem:[#allocation2 + $0x5f]]
        %v2193 = vld [vmem:[%s1801] sm:$0xfe]
        %v2194 = vld [vmem:[%s1801 + $0x10] sm:$0x1]
        %v2195 = vstv %s2192
        %v2196 = vmul.f32 %v2193, %v2195
        %v2197 = vmul.f32 %v2194, %v2195
        %v2200 = vrot.slane %v2196, 1
        %v2201 = vrot.slane %v2197, 1
        %v2202 = vsel %vm378, %v2200, %v2201
        %v2204 = vadd.f32 %v2191, %v2202
        %s2205 = sld [smem:[#allocation2 + $0x60]]
        %v2206 = vld [vmem:[%s1807] sm:$0xfe]
        %v2207 = vld [vmem:[%s1807 + $0x10] sm:$0x1]
        %v2208 = vstv %s2205
        %v2209 = vmul.f32 %v2206, %v2208
        %v2210 = vmul.f32 %v2207, %v2208
        %v2213 = vrot.slane %v2209, 1
        %v2214 = vrot.slane %v2210, 1
        %v2215 = vsel %vm378, %v2213, %v2214
        %v2217 = vadd.f32 %v2204, %v2215
        %s2218 = sld [smem:[#allocation2 + $0x61]]
        %v2219 = vld [vmem:[%s1813] sm:$0xfe]
        %v2220 = vld [vmem:[%s1813 + $0x8] sm:$0xfe]
        %v2221 = vld [vmem:[%s1813 + $0x10] sm:$0x1]
        %v2222 = vld [vmem:[%s1813 + $0x18] sm:$0x1]
        %v2223 = vstv %s2218
        %v2224 = vmul.f32 %v2219, %v2223
        %v2225 = vmul.f32 %v2220, %v2223
        %v2226 = vmul.f32 %v2221, %v2223
        %v2227 = vmul.f32 %v2222, %v2223
        %v2232 = vrot.slane %v2224, 1
        %v2233 = vrot.slane %v2226, 1
        %v2234 = vsel %vm378, %v2232, %v2233
        %v2235 = vrot.slane %v2225, 1
        %v2236 = vrot.slane %v2227, 1
        %v2237 = vsel %vm378, %v2235, %v2236
        %2238 = vrot.lane.b32.xlu0 %v2234, 127
        %v2239 = vpop.permute.xlu0 %2238
        %2240 = vrot.lane.b32.xlu0 %v2237, 127
        %v2241 = vpop.permute.xlu0 %2240
        %v2242 = vsel %vm249, %v2239, %v2241
        %v2244 = vadd.f32 %v2217, %v2242
        %s2245 = sld [smem:[#allocation2 + $0x62]]
        %v2246 = vld [vmem:[%s1829] sm:$0xfe]
        %v2247 = vld [vmem:[%s1829 + $0x8] sm:$0xfe]
        %v2248 = vld [vmem:[%s1829 + $0x10] sm:$0x1]
        %v2249 = vld [vmem:[%s1829 + $0x18] sm:$0x1]
        %v2250 = vstv %s2245
        %v2251 = vmul.f32 %v2246, %v2250
        %v2252 = vmul.f32 %v2247, %v2250
        %v2253 = vmul.f32 %v2248, %v2250
        %v2254 = vmul.f32 %v2249, %v2250
        %v2259 = vrot.slane %v2251, 1
        %v2260 = vrot.slane %v2253, 1
        %v2261 = vsel %vm378, %v2259, %v2260
        %v2262 = vrot.slane %v2252, 1
        %v2263 = vrot.slane %v2254, 1
        %v2264 = vsel %vm378, %v2262, %v2263
        %2265 = vrot.lane.b32.xlu0 %v2261, 127
        %v2266 = vpop.permute.xlu0 %2265
        %2267 = vrot.lane.b32.xlu0 %v2264, 127
        %v2268 = vpop.permute.xlu0 %2267
        %v2269 = vsel %vm249, %v2266, %v2268
        %v2271 = vadd.f32 %v2244, %v2269
        %s2272 = sld [smem:[#allocation2 + $0x63]]
        %v2273 = vld [vmem:[%s1801] sm:$0xfe]
        %v2274 = vld [vmem:[%s1801 + $0x8] sm:$0xfe]
        %v2275 = vld [vmem:[%s1801 + $0x10] sm:$0x1]
        %v2276 = vld [vmem:[%s1801 + $0x18] sm:$0x1]
        %v2277 = vstv %s2272
        %v2278 = vmul.f32 %v2273, %v2277
        %v2279 = vmul.f32 %v2274, %v2277
        %v2280 = vmul.f32 %v2275, %v2277
        %v2281 = vmul.f32 %v2276, %v2277
        %v2286 = vrot.slane %v2278, 1
        %v2287 = vrot.slane %v2280, 1
        %v2288 = vsel %vm378, %v2286, %v2287
        %v2289 = vrot.slane %v2279, 1
        %v2290 = vrot.slane %v2281, 1
        %v2291 = vsel %vm378, %v2289, %v2290
        %2292 = vrot.lane.b32.xlu0 %v2288, 127
        %v2293 = vpop.permute.xlu0 %2292
        %2294 = vrot.lane.b32.xlu0 %v2291, 127
        %v2295 = vpop.permute.xlu0 %2294
        %v2296 = vsel %vm249, %v2293, %v2295
        %v2298 = vadd.f32 %v2271, %v2296
        %s2299 = scalar_lea.vmem %s2, 24
        %v2300 = vld [vmem:[%s2299] sm:$0xff]
        %v2301 = vmul.f32 %v2298, %v2300
        %s2302 = scalar_lea.vmem %s229, 24
        %v2303 = vld [vmem:[%s2302] sm:$0xff]
        %v2304 = vmul.f32 %v2303, %v2300
        %v2305 = vsub.f32 %v2301, %v2304
        %v2306 = vand.u32 2147483647, %v2305
        %2307 = vadd.xlane.f32.xlu0 %v2306
        %v2308 = vpop.xlane.xlu0 %2307
        %v2309 = vrot.slane %v2308, 4
        %v2310 = vadd.f32 %v2308, %v2309
        %v2311 = vrot.slane %v2310, 2
        %v2312 = vadd.f32 %v2310, %v2311
        %v2313 = vrot.slane %v2312, 1
        %v2314 = vadd.f32 %v2312, %v2313
        %s2315 = vtos %v2314
        %s2316 = sadd.f32 %s1799, %s2315
        %v2317 = vstv %s2316
        %2318 = vst [vmem:[%s219] sm:$0xff] %v2317
        %s2319 = sand.u32 %s121, 1
        %s2320 = scalar_lea.sflag [#allocation3], %s2319
        %s2321 = sand.u32 %s121, 1
        %s2322 = smul.addr %s2321, 8
        %s2323 = scalar_lea.vmem [#allocation5], %s2322
        // Predicated region
        $region41: #{tpu_custom_call.1} parent=35 // pred_check
          %p2324 = pneg %p131
        $region42: #{tpu_custom_call.1} parent=35 // pred_check_branch
          %2326 = sbr.rel (%p2324) target = $region44
        $region43: #{tpu_custom_call.1} parent=35 // pred_region
          %s2328 = ssub.s32 128, 128
          %2329 = vsyncadd %s2320, %s2328
          %s2330 = smul.addr %s19, 128
          %s2331 = scalar_lea.hbm %s4, %s2330
          %s2333 = sshll.u32 %s2323, 4
          %s2334 = int_to_ptr.vmem [resolvable:$true] %s2333
          %2336 = dma.vmem_to_hbm [thread:$0]  %s2334, 128, %s2331, %s2320
        $region44: #{tpu_custom_call.1} parent=35 // pred_fallthru
          _
      $region36: #{tpu_custom_call.1} parent=5 // pred_fallthru
        _
      %p2337 = scmp.le.s32.totalorder 2, %s14
      // Predicated region
      $region45: #{tpu_custom_call.1} parent=5 // pred_check
        %p2338 = pneg %p2337
      $region46: #{tpu_custom_call.1} parent=5 // pred_check_branch
        %2340 = sbr.rel (%p2338) target = $region48
      $region47: #{tpu_custom_call.1} parent=5 // pred_region
        %s2341 = ssub.s32 %s14, 2
        // Predicated region
        $region49: #{tpu_custom_call.1} parent=47 // pred_check
          %p2342 = pneg %p137
        $region50: #{tpu_custom_call.1} parent=47 // pred_check_branch
          %2344 = sbr.rel (%p2342) target = $region52
        $region51: #{tpu_custom_call.1} parent=47 // pred_region
          %s2345 = sand.u32 %s122, 1
          %s2346 = scalar_lea.sflag [#allocation3], %s2345
          %s2347 = sand.u32 %s122, 1
          %s2348 = smul.addr %s2347, 8
          %s2349 = scalar_lea.vmem [#allocation5], %s2348
          %2350 = dma.done %s2346, 128
        $region52: #{tpu_custom_call.1} parent=47 // pred_fallthru
          _
      $region48: #{tpu_custom_call.1} parent=5 // pred_fallthru
        _
    $region6: #{tpu_custom_call.1} parent=1 // loop_footer
      %s18 = sadd.s32 1, %s14
    $region7: #{tpu_custom_call.1} parent=1 // loop_footer_branch
      %13 = sbr.rel target = $region3
    $region8: #{tpu_custom_call.1} parent=1 // loop_exit
      _
    %2351 = vsyncpa [#allocation3], 1
    %s2352 = scalar_lea.sflag [#allocation3], 1
    %2353 = vsyncpa %s2352, 1
    %2354 = vsyncpa [#allocation4], 1
    %s2355 = scalar_lea.sflag [#allocation4], 1
    %2356 = vsyncpa %s2355, 1

</llo_original>
